<compile_context>
chip_gen: v5e
topology: v5e:2x2
jax: 0.10.0
libtpu: 0.0.40
codegen_flags: <defaults>
</compile_context>

<pallas_src>
import functools

import jax
import jax.numpy as jnp
from jax import lax
from jax.experimental import pallas as pl
from jax.experimental.pallas import tpu as pltpu


def _round_up(x, m):
    return (x + m - 1) // m * m


# ----------------------------------------------------------------------------
# Fused Pallas kernel: the whole _DenseBlock for one batch element.
# ----------------------------------------------------------------------------
def _dense_block_kernel(x_ref, s1_ref, b1_ref, w1_ref, s2_ref, b2_ref, w2_ref,
                        o_ref, pad_ref, *, num_layers, c0, growth, width):
    H, Ws, c_pad = o_ref.shape          # o_ref doubles as the bf16 feature slab
    Hp, Wp, cmid_pad = pad_ref.shape    # Hp = H + 2 (zero halo for the 3x3)
    n3 = w2_ref.shape[-1]               # round_up(9*growth, 128)
    W = width
    G = growth

    # --- per-grid-step init ---------------------------------------------------
    # Channels >= c0 must be finite zeros: zero-padded BN scales / w1 rows mask
    # stale *finite* data, but 0 * NaN = NaN, so uninitialized VMEM is unsafe.
    o_ref[:, :, c0:] = jnp.zeros((H, Ws, c_pad - c0), o_ref.dtype)
    o_ref[:, :W, :c0] = x_ref[...]
    if Ws > W:  # width-alignment columns (W not a multiple of 8)
        o_ref[:, W:, :c0] = jnp.zeros((H, Ws - W, c0), o_ref.dtype)
    # Only the halo border of the 3x3 scratch needs zeroing; the interior is
    # fully rewritten each layer.
    zrow = jnp.zeros((1, Wp, cmid_pad), pad_ref.dtype)
    pad_ref[0:1, :, :] = zrow
    pad_ref[H + 1:H + 2, :, :] = zrow
    pad_ref[:, 0:1, :] = jnp.zeros((Hp, 1, cmid_pad), pad_ref.dtype)
    pad_ref[:, W + 1:, :] = jnp.zeros((Hp, Wp - (W + 1), cmid_pad), pad_ref.dtype)

    # --- layers (static unroll: per-layer weights and K differ) ---------------
    for i in range(num_layers):
        c_live = c0 + i * G                   # channels written so far
        k_i = _round_up(c_live, 128)          # MXU-aligned live-K slice

        # BN1 (folded scale/bias, f32 math) + ReLU over the live channels only.
        feats = o_ref[:, :, :k_i]                                       # bf16
        y1 = jnp.maximum(feats * s1_ref[i, :, :k_i] + b1_ref[i, :, :k_i], 0.0)
        y1 = y1.astype(jnp.bfloat16).reshape(H * Ws, k_i)

        # 1x1 conv: one MXU matmul with K sliced to the live channel count.
        z = jnp.dot(y1, w1_ref[i, :k_i, :], preferred_element_type=jnp.float32)

        # BN2 (folded) + ReLU, store bf16 into the zero-halo scratch interior.
        y2 = jnp.maximum(z * s2_ref[i, :, :] + b2_ref[i, :, :], 0.0)
        y2 = y2.reshape(H, Ws, cmid_pad)[:, :W, :].astype(pad_ref.dtype)
        pad_ref[1:H + 1, 1:W + 1, :] = y2

        # 3x3 conv: one tap-packed matmul (K = cmid_pad, N = round_up(9G,128))
        # over the halo-padded slab, then 9 shifted adds of the G-wide column
        # groups (cheap VPU/XLU work that hides under the MXU).
        zp = jnp.dot(pad_ref[...].reshape(Hp * Wp, cmid_pad), w2_ref[i, :, :],
                     preferred_element_type=jnp.float32)
        zp = zp.reshape(Hp, Wp, n3)
        acc = zp[0:H, 0:W, 0:G]                           # tap t = 0 (ky=kx=0)
        for t in range(1, 9):
            ky, kx = t // 3, t % 3
            acc = acc + zp[ky:ky + H, kx:kx + W, t * G:(t + 1) * G]

        # DenseNet concat: append this layer's growth channels in place.
        # Dropout is identity (eval mode).
        o_ref[:, :W, c_live:c_live + G] = acc.astype(o_ref.dtype)


# ----------------------------------------------------------------------------
# Parameter packing: pad channel dims to 128, tap-pack the 3x3 weights.
# ----------------------------------------------------------------------------
def _pack_params(params, c0, growth, c_pad, cmid_pad, n3):
    cmid = params[0]["w1"].shape[1]
    G = growth
    s1_l, b1_l, w1_l, s2_l, b2_l, w2_l = [], [], [], [], [], []
    for i, p in enumerate(params):
        cin = c0 + i * G
        s1_l.append(jnp.zeros((c_pad,), jnp.float32).at[:cin].set(p["s1"].reshape(-1)))
        b1_l.append(jnp.zeros((c_pad,), jnp.float32).at[:cin].set(p["b1"].reshape(-1)))
        w1_l.append(jnp.zeros((c_pad, cmid_pad), jnp.float32)
                    .at[:cin, :cmid].set(p["w1"]))
        s2_l.append(jnp.zeros((cmid_pad,), jnp.float32).at[:cmid].set(p["s2"].reshape(-1)))
        b2_l.append(jnp.zeros((cmid_pad,), jnp.float32).at[:cmid].set(p["b2"].reshape(-1)))
        # w2: (9, cmid, G) -> tap-packed (cmid_pad, n3); columns t*G:(t+1)*G
        # (t = 3*ky + kx) hold w2[ky, kx, :, :].
        w2 = p["w2"].reshape(3, 3, cmid, G)
        w2_flat = jnp.transpose(w2, (2, 0, 1, 3)).reshape(cmid, 9 * G)
        w2_l.append(jnp.zeros((cmid_pad, n3), jnp.float32)
                    .at[:cmid, :9 * G].set(w2_flat))
    s1_all = jnp.stack(s1_l)[:, None, :]
    b1_all = jnp.stack(b1_l)[:, None, :]
    w1_all = jnp.stack(w1_l).astype(jnp.bfloat16)
    s2_all = jnp.stack(s2_l)[:, None, :]
    b2_all = jnp.stack(b2_l)[:, None, :]
    w2_all = jnp.stack(w2_l).astype(jnp.bfloat16)
    return s1_all, b1_all, w1_all, s2_all, b2_all, w2_all


# ----------------------------------------------------------------------------
# _DenseBlock wrapper (layout transpose + one fused pallas_call)
# ----------------------------------------------------------------------------
def dense_block_forward(x_nchw, params):
    N, C0, H, W = x_nchw.shape
    L = len(params)
    G = params[0]["w2"].shape[2]
    cmid = params[0]["w1"].shape[1]
    c_total = C0 + L * G
    c_pad = _round_up(c_total, 128)
    cmid_pad = _round_up(cmid, 128)
    n3 = _round_up(9 * G, 128)
    Ws = _round_up(W, 8)            # 8-aligned slab width (sublane alignment)
    Wp = _round_up(W + 2, 8)        # 3x3 halo scratch width

    # TODO(synk): if the surrounding model runs NHWC, drop these transposes.
    x = jnp.transpose(x_nchw, (0, 2, 3, 1)).astype(jnp.bfloat16)   # NCHW->NHWC
    s1_all, b1_all, w1_all, s2_all, b2_all, w2_all = _pack_params(
        params, C0, G, c_pad, cmid_pad, n3)

    kernel = functools.partial(_dense_block_kernel, num_layers=L, c0=C0,
                               growth=G, width=W)
    out_nhwc = pl.pallas_call(
        kernel,
        out_shape=jax.ShapeDtypeStruct((N, H, Ws, c_pad), jnp.bfloat16),
        grid_spec=pltpu.PrefetchScalarGridSpec(
            num_scalar_prefetch=0,
            grid=(N,),
            in_specs=[
                pl.BlockSpec((None, H, W, C0), lambda n: (n, 0, 0, 0)),
                pl.BlockSpec((L, 1, c_pad), lambda n: (0, 0, 0)),
                pl.BlockSpec((L, 1, c_pad), lambda n: (0, 0, 0)),
                pl.BlockSpec((L, c_pad, cmid_pad), lambda n: (0, 0, 0)),
                pl.BlockSpec((L, 1, cmid_pad), lambda n: (0, 0, 0)),
                pl.BlockSpec((L, 1, cmid_pad), lambda n: (0, 0, 0)),
                pl.BlockSpec((L, cmid_pad, n3), lambda n: (0, 0, 0)),
            ],
            out_specs=pl.BlockSpec((None, H, Ws, c_pad), lambda n: (n, 0, 0, 0)),
            scratch_shapes=[
                pltpu.VMEM((H + 2, Wp, cmid_pad), jnp.bfloat16),  # 3x3 halo buf
            ],
        ),
        compiler_params=pltpu.CompilerParams(
            dimension_semantics=("parallel",),
            vmem_limit_bytes=48 * 1024 * 1024,   # <= v7x's 64 MiB physical VMEM
        ),
    )(x, s1_all, b1_all, w1_all, s2_all, b2_all, w2_all)

    # Lane-dense kernel output (c_pad channels, Ws width); slice/cast in HBM.
    out = out_nhwc[:, :, :W, :c_total].astype(jnp.float32)
    return jnp.transpose(out, (0, 3, 1, 2))                       # NHWC -> NCHW


# ----------------------------------------------------------------------------
# Deterministic parameter initialization (synthetic weights, folded BN)
# ----------------------------------------------------------------------------
def init_params(key, num_layers, num_features_in, growth_rate, eps=1e-5):
    params = []
    for i in range(num_layers):
        cin = num_features_in + i * growth_rate
        cmid = 4 * growth_rate
        g = growth_rate
        ks = jax.random.split(jax.random.fold_in(key, i), 10)

        gamma1 = jax.random.uniform(ks[0], (cin,), minval=0.5, maxval=1.5)
        beta1 = 0.1 * jax.random.normal(ks[1], (cin,))
        mean1 = 0.1 * jax.random.normal(ks[2], (cin,))
        var1 = jax.random.uniform(ks[3], (cin,), minval=0.5, maxval=1.5)

        gamma2 = jax.random.uniform(ks[4], (cmid,), minval=0.5, maxval=1.5)
        beta2 = 0.1 * jax.random.normal(ks[5], (cmid,))
        mean2 = 0.1 * jax.random.normal(ks[6], (cmid,))
        var2 = jax.random.uniform(ks[7], (cmid,), minval=0.5, maxval=1.5)

        w1 = jax.random.normal(ks[8], (cin, cmid)) / jnp.sqrt(cin)        # 1x1 conv
        w2 = jax.random.normal(ks[9], (9, cmid, g)) / jnp.sqrt(9 * cmid)  # 3x3 conv

        s1 = gamma1 / jnp.sqrt(var1 + eps)
        b1 = beta1 - mean1 * s1
        s2 = gamma2 / jnp.sqrt(var2 + eps)
        b2 = beta2 - mean2 * s2

        params.append(dict(
            s1=s1.reshape(1, cin).astype(jnp.float32),
            b1=b1.reshape(1, cin).astype(jnp.float32),
            w1=w1.astype(jnp.float32),
            s2=s2.reshape(1, cmid).astype(jnp.float32),
            b2=b2.reshape(1, cmid).astype(jnp.float32),
            w2=w2.astype(jnp.float32),
        ))
    return params


# ----------------------------------------------------------------------------
# Pure-JAX reference (for validation)
# ----------------------------------------------------------------------------
def ref_dense_layer(x, s1, b1, w1, s2, b2, w2):
    y1 = jnp.maximum(x * s1[0] + b1[0], 0.0)
    z = jnp.einsum("nhwc,cd->nhwd", y1, w1)
    y2 = jnp.maximum(z * s2[0] + b2[0], 0.0)
    w2_hwio = w2.reshape(3, 3, w2.shape[1], w2.shape[2])
    return lax.conv_general_dilated(
        y2, w2_hwio, window_strides=(1, 1), padding="SAME",
        dimension_numbers=("NHWC", "HWIO", "NHWC"))


def ref_dense_block(x_nchw, params):
    x = jnp.transpose(x_nchw, (0, 2, 3, 1))
    feats = [x]
    for p in params:
        inp = jnp.concatenate(feats, axis=-1)
        feats.append(ref_dense_layer(inp, p["s1"], p["b1"], p["w1"],
                                     p["s2"], p["b2"], p["w2"]))
    return jnp.transpose(jnp.concatenate(feats, axis=-1), (0, 3, 1, 2))


if __name__ == "__main__":
    # Small shapes: batch=2, num_features_in=4, growth_rate=4, num_layers=2,
    # spatial 16x16, dropout=0.1 (identity in eval).
    N, C0, H, W = 2, 4, 16, 16
    num_layers, growth_rate = 2, 4

    key = jax.random.PRNGKey(0)
    kx, kp = jax.random.split(key)
    x = jax.random.normal(kx, (N, C0, H, W), dtype=jnp.float32)
    params = init_params(kp, num_layers, C0, growth_rate)

    out = dense_block_forward(x, params)
    out = jax.block_until_ready(out)

    expected_channels = C0 + num_layers * growth_rate
    assert out.shape == (N, expected_channels, H, W), out.shape

    ref = jax.block_until_ready(ref_dense_block(x, params))
    err = jnp.max(jnp.abs(out - ref))
    # bf16 feature storage + bf16 MXU inputs (f32 accumulation) vs f32 ref.
    assert err < 5e-2, f"max abs error too large: {err}"

    print("KERNEL_OK")
</pallas_src>

<mosaic_0001>
module attributes {stable_mosaic.version = 11 : i64} {
  func.func @_dense_block_kernel(%arg0: i32, %arg1: memref<1x16x16x4xbf16, #tpu.memory_space<vmem>>, %arg2: memref<2x1x128xf32, #tpu.memory_space<vmem>>, %arg3: memref<2x1x128xf32, #tpu.memory_space<vmem>>, %arg4: memref<2x128x128xbf16, #tpu.memory_space<vmem>>, %arg5: memref<2x1x128xf32, #tpu.memory_space<vmem>>, %arg6: memref<2x1x128xf32, #tpu.memory_space<vmem>>, %arg7: memref<2x128x128xbf16, #tpu.memory_space<vmem>>, %arg8: memref<1x16x16x128xbf16, #tpu.memory_space<vmem>>, %arg9: memref<18x24x128xbf16, #tpu.memory_space<vmem>>) attributes {dimension_semantics = [#tpu.dimension_semantics<parallel>], iteration_bounds = array<i64: 2>, scalar_prefetch = 0 : i64, scratch_operands = 1 : i64, tpu.core_type = #tpu.core_type<tc>, window_params = [{transform_indices = @transform_0, window_bounds = array<i64: 1, 16, 16, 4>}, {pipeline_mode = #tpu.pipeline_mode<synchronous>, transform_indices = @transform_1, window_bounds = array<i64: 2, 1, 128>}, {pipeline_mode = #tpu.pipeline_mode<synchronous>, transform_indices = @transform_2, window_bounds = array<i64: 2, 1, 128>}, {pipeline_mode = #tpu.pipeline_mode<synchronous>, transform_indices = @transform_3, window_bounds = array<i64: 2, 128, 128>}, {pipeline_mode = #tpu.pipeline_mode<synchronous>, transform_indices = @transform_4, window_bounds = array<i64: 2, 1, 128>}, {pipeline_mode = #tpu.pipeline_mode<synchronous>, transform_indices = @transform_5, window_bounds = array<i64: 2, 1, 128>}, {pipeline_mode = #tpu.pipeline_mode<synchronous>, transform_indices = @transform_6, window_bounds = array<i64: 2, 128, 128>}, {transform_indices = @transform_7, window_bounds = array<i64: 1, 16, 16, 128>}]} {
    %cst = arith.constant 0.000000e+00 : bf16
    %0 = vector.broadcast %cst : bf16 to vector<16x16x124xbf16>
    %c0 = arith.constant 0 : index
    %c0_0 = arith.constant 0 : index
    %c0_1 = arith.constant 0 : index
    %c4 = arith.constant 4 : index
    %1 = vector.load %arg8[%c0, %c0_0, %c0_1, %c4] : memref<1x16x16x128xbf16, #tpu.memory_space<vmem>>, vector<1x16x16x124xbf16>
    %2 = vector.shape_cast %1 : vector<1x16x16x124xbf16> to vector<16x16x124xbf16>
    %3 = vector.shape_cast %0 : vector<16x16x124xbf16> to vector<1x16x16x124xbf16>
    tpu.vector_store %arg8[%c0, %c0_0, %c0_1, %c4], %3 {strides = array<i32>} : memref<1x16x16x128xbf16, #tpu.memory_space<vmem>>, vector<1x16x16x124xbf16>,
    %c0_2 = arith.constant 0 : index
    %c0_3 = arith.constant 0 : index
    %c0_4 = arith.constant 0 : index
    %c0_5 = arith.constant 0 : index
    %4 = vector.load %arg1[%c0_2, %c0_3, %c0_4, %c0_5] : memref<1x16x16x4xbf16, #tpu.memory_space<vmem>>, vector<1x16x16x4xbf16>
    %5 = vector.shape_cast %4 : vector<1x16x16x4xbf16> to vector<16x16x4xbf16>
    %c0_6 = arith.constant 0 : index
    %c0_7 = arith.constant 0 : index
    %c0_8 = arith.constant 0 : index
    %c0_9 = arith.constant 0 : index
    %6 = vector.load %arg8[%c0_6, %c0_7, %c0_8, %c0_9] : memref<1x16x16x128xbf16, #tpu.memory_space<vmem>>, vector<1x16x16x4xbf16>
    %7 = vector.shape_cast %6 : vector<1x16x16x4xbf16> to vector<16x16x4xbf16>
    %8 = vector.shape_cast %5 : vector<16x16x4xbf16> to vector<1x16x16x4xbf16>
    tpu.vector_store %arg8[%c0_6, %c0_7, %c0_8, %c0_9], %8 {strides = array<i32>} : memref<1x16x16x128xbf16, #tpu.memory_space<vmem>>, vector<1x16x16x4xbf16>,
    %cst_10 = arith.constant 0.000000e+00 : bf16
    %9 = vector.broadcast %cst_10 : bf16 to vector<1x24x128xbf16>
    %c0_11 = arith.constant 0 : index
    %c0_12 = arith.constant 0 : index
    %c0_13 = arith.constant 0 : index
    %10 = vector.load %arg9[%c0_11, %c0_12, %c0_13] : memref<18x24x128xbf16, #tpu.memory_space<vmem>>, vector<1x24x128xbf16>
    tpu.vector_store %arg9[%c0_11, %c0_12, %c0_13], %9 {strides = array<i32>} : memref<18x24x128xbf16, #tpu.memory_space<vmem>>, vector<1x24x128xbf16>,
    %c17 = arith.constant 17 : index
    %c0_14 = arith.constant 0 : index
    %c0_15 = arith.constant 0 : index
    %11 = vector.load %arg9[%c17, %c0_14, %c0_15] : memref<18x24x128xbf16, #tpu.memory_space<vmem>>, vector<1x24x128xbf16>
    tpu.vector_store %arg9[%c17, %c0_14, %c0_15], %9 {strides = array<i32>} : memref<18x24x128xbf16, #tpu.memory_space<vmem>>, vector<1x24x128xbf16>,
    %cst_16 = arith.constant 0.000000e+00 : bf16
    %12 = vector.broadcast %cst_16 : bf16 to vector<18x1x128xbf16>
    %c0_17 = arith.constant 0 : index
    %c0_18 = arith.constant 0 : index
    %c0_19 = arith.constant 0 : index
    %13 = vector.load %arg9[%c0_17, %c0_18, %c0_19] : memref<18x24x128xbf16, #tpu.memory_space<vmem>>, vector<18x1x128xbf16>
    tpu.vector_store %arg9[%c0_17, %c0_18, %c0_19], %12 {strides = array<i32>} : memref<18x24x128xbf16, #tpu.memory_space<vmem>>, vector<18x1x128xbf16>,
    %cst_20 = arith.constant 0.000000e+00 : bf16
    %14 = vector.broadcast %cst_20 : bf16 to vector<18x7x128xbf16>
    %c0_21 = arith.constant 0 : index
    %c17_22 = arith.constant 17 : index
    %c0_23 = arith.constant 0 : index
    %15 = vector.load %arg9[%c0_21, %c17_22, %c0_23] : memref<18x24x128xbf16, #tpu.memory_space<vmem>>, vector<18x7x128xbf16>
    tpu.vector_store %arg9[%c0_21, %c17_22, %c0_23], %14 {strides = array<i32>} : memref<18x24x128xbf16, #tpu.memory_space<vmem>>, vector<18x7x128xbf16>,
    %c0_24 = arith.constant 0 : index
    %c0_25 = arith.constant 0 : index
    %c0_26 = arith.constant 0 : index
    %c0_27 = arith.constant 0 : index
    %16 = vector.load %arg8[%c0_24, %c0_25, %c0_26, %c0_27] : memref<1x16x16x128xbf16, #tpu.memory_space<vmem>>, vector<1x16x16x128xbf16>
    %17 = vector.shape_cast %16 : vector<1x16x16x128xbf16> to vector<16x16x128xbf16>
    %c0_28 = arith.constant 0 : index
    %c0_29 = arith.constant 0 : index
    %c0_30 = arith.constant 0 : index
    %18 = vector.load %arg2[%c0_28, %c0_29, %c0_30] : memref<2x1x128xf32, #tpu.memory_space<vmem>>, vector<1x1x128xf32>
    %19 = vector.shape_cast %18 : vector<1x1x128xf32> to vector<1x128xf32>
    %20 = arith.extf %17 : vector<16x16x128xbf16> to vector<16x16x128xf32>
    %21 = vector.shape_cast %19 : vector<1x128xf32> to vector<1x1x128xf32>
    %22 = vector.broadcast %21 : vector<1x1x128xf32> to vector<16x16x128xf32>
    %23 = arith.mulf %20, %22 : vector<16x16x128xf32>
    %c0_31 = arith.constant 0 : index
    %c0_32 = arith.constant 0 : index
    %c0_33 = arith.constant 0 : index
    %24 = vector.load %arg3[%c0_31, %c0_32, %c0_33] : memref<2x1x128xf32, #tpu.memory_space<vmem>>, vector<1x1x128xf32>
    %25 = vector.shape_cast %24 : vector<1x1x128xf32> to vector<1x128xf32>
    %26 = vector.shape_cast %25 : vector<1x128xf32> to vector<1x1x128xf32>
    %27 = vector.broadcast %26 : vector<1x1x128xf32> to vector<16x16x128xf32>
    %28 = arith.addf %23, %27 : vector<16x16x128xf32>
    %cst_34 = arith.constant 0.000000e+00 : f32
    %29 = vector.broadcast %cst_34 : f32 to vector<16x16x128xf32>
    %30 = arith.maximumf %28, %29 : vector<16x16x128xf32>
    %31 = arith.truncf %30 : vector<16x16x128xf32> to vector<16x16x128xbf16>
    %32 = vector.shape_cast %31 : vector<16x16x128xbf16> to vector<256x128xbf16>
    %c0_35 = arith.constant 0 : index
    %c0_36 = arith.constant 0 : index
    %c0_37 = arith.constant 0 : index
    %33 = vector.load %arg4[%c0_35, %c0_36, %c0_37] : memref<2x128x128xbf16, #tpu.memory_space<vmem>>, vector<1x128x128xbf16>
    %34 = vector.shape_cast %33 : vector<1x128x128xbf16> to vector<128x128xbf16>
    %cst_38 = arith.constant dense<0.000000e+00> : vector<256x128xf32>
    %35 = tpu.matmul %32, %34, %cst_38 {dimension_numbers = #tpu.dot_dimension_numbers<[1], [0], [0], [1], [0, 0, 1, 1], [], []>} : vector<256x128xbf16>, vector<128x128xbf16>, vector<256x128xf32> -> vector<256x128xf32>
    %c0_39 = arith.constant 0 : index
    %c0_40 = arith.constant 0 : index
    %c0_41 = arith.constant 0 : index
    %36 = vector.load %arg5[%c0_39, %c0_40, %c0_41] : memref<2x1x128xf32, #tpu.memory_space<vmem>>, vector<1x1x128xf32>
    %37 = vector.shape_cast %36 : vector<1x1x128xf32> to vector<1x128xf32>
    %38 = vector.broadcast %37 : vector<1x128xf32> to vector<256x128xf32>
    %39 = arith.mulf %35, %38 : vector<256x128xf32>
    %c0_42 = arith.constant 0 : index
    %c0_43 = arith.constant 0 : index
    %c0_44 = arith.constant 0 : index
    %40 = vector.load %arg6[%c0_42, %c0_43, %c0_44] : memref<2x1x128xf32, #tpu.memory_space<vmem>>, vector<1x1x128xf32>
    %41 = vector.shape_cast %40 : vector<1x1x128xf32> to vector<1x128xf32>
    %42 = vector.broadcast %41 : vector<1x128xf32> to vector<256x128xf32>
    %43 = arith.addf %39, %42 : vector<256x128xf32>
    %cst_45 = arith.constant 0.000000e+00 : f32
    %44 = vector.broadcast %cst_45 : f32 to vector<256x128xf32>
    %45 = arith.maximumf %43, %44 : vector<256x128xf32>
    %46 = vector.shape_cast %45 : vector<256x128xf32> to vector<16x16x128xf32>
    %47 = arith.truncf %46 : vector<16x16x128xf32> to vector<16x16x128xbf16>
    %c1 = arith.constant 1 : index
    %c1_46 = arith.constant 1 : index
    %c0_47 = arith.constant 0 : index
    %48 = vector.load %arg9[%c1, %c1_46, %c0_47] : memref<18x24x128xbf16, #tpu.memory_space<vmem>>, vector<16x16x128xbf16>
    tpu.vector_store %arg9[%c1, %c1_46, %c0_47], %47 {strides = array<i32>} : memref<18x24x128xbf16, #tpu.memory_space<vmem>>, vector<16x16x128xbf16>,
    %c0_48 = arith.constant 0 : index
    %c0_49 = arith.constant 0 : index
    %c0_50 = arith.constant 0 : index
    %49 = vector.load %arg9[%c0_48, %c0_49, %c0_50] : memref<18x24x128xbf16, #tpu.memory_space<vmem>>, vector<18x24x128xbf16>
    %50 = vector.shape_cast %49 : vector<18x24x128xbf16> to vector<432x128xbf16>
    %c0_51 = arith.constant 0 : index
    %c0_52 = arith.constant 0 : index
    %c0_53 = arith.constant 0 : index
    %51 = vector.load %arg7[%c0_51, %c0_52, %c0_53] : memref<2x128x128xbf16, #tpu.memory_space<vmem>>, vector<1x128x128xbf16>
    %52 = vector.shape_cast %51 : vector<1x128x128xbf16> to vector<128x128xbf16>
    %cst_54 = arith.constant dense<0.000000e+00> : vector<432x128xf32>
    %53 = tpu.matmul %50, %52, %cst_54 {dimension_numbers = #tpu.dot_dimension_numbers<[1], [0], [0], [1], [0, 0, 1, 1], [], []>} : vector<432x128xbf16>, vector<128x128xbf16>, vector<432x128xf32> -> vector<432x128xf32>
    %54 = vector.shape_cast %53 : vector<432x128xf32> to vector<18x24x128xf32>
    %55 = vector.extract_strided_slice %54 {offsets = [0, 0, 0], sizes = [16, 16, 4], strides = [1, 1, 1]} : vector<18x24x128xf32> to vector<16x16x4xf32>
    %56 = vector.extract_strided_slice %54 {offsets = [0, 1, 4], sizes = [16, 16, 4], strides = [1, 1, 1]} : vector<18x24x128xf32> to vector<16x16x4xf32>
    %57 = arith.addf %55, %56 : vector<16x16x4xf32>
    %58 = vector.extract_strided_slice %54 {offsets = [0, 2, 8], sizes = [16, 16, 4], strides = [1, 1, 1]} : vector<18x24x128xf32> to vector<16x16x4xf32>
    %59 = arith.addf %57, %58 : vector<16x16x4xf32>
    %60 = vector.extract_strided_slice %54 {offsets = [1, 0, 12], sizes = [16, 16, 4], strides = [1, 1, 1]} : vector<18x24x128xf32> to vector<16x16x4xf32>
    %61 = arith.addf %59, %60 : vector<16x16x4xf32>
    %62 = vector.extract_strided_slice %54 {offsets = [1, 1, 16], sizes = [16, 16, 4], strides = [1, 1, 1]} : vector<18x24x128xf32> to vector<16x16x4xf32>
    %63 = arith.addf %61, %62 : vector<16x16x4xf32>
    %64 = vector.extract_strided_slice %54 {offsets = [1, 2, 20], sizes = [16, 16, 4], strides = [1, 1, 1]} : vector<18x24x128xf32> to vector<16x16x4xf32>
    %65 = arith.addf %63, %64 : vector<16x16x4xf32>
    %66 = vector.extract_strided_slice %54 {offsets = [2, 0, 24], sizes = [16, 16, 4], strides = [1, 1, 1]} : vector<18x24x128xf32> to vector<16x16x4xf32>
    %67 = arith.addf %65, %66 : vector<16x16x4xf32>
    %68 = vector.extract_strided_slice %54 {offsets = [2, 1, 28], sizes = [16, 16, 4], strides = [1, 1, 1]} : vector<18x24x128xf32> to vector<16x16x4xf32>
    %69 = arith.addf %67, %68 : vector<16x16x4xf32>
    %70 = vector.extract_strided_slice %54 {offsets = [2, 2, 32], sizes = [16, 16, 4], strides = [1, 1, 1]} : vector<18x24x128xf32> to vector<16x16x4xf32>
    %71 = arith.addf %69, %70 : vector<16x16x4xf32>
    %72 = arith.truncf %71 : vector<16x16x4xf32> to vector<16x16x4xbf16>
    %c0_55 = arith.constant 0 : index
    %c0_56 = arith.constant 0 : index
    %c0_57 = arith.constant 0 : index
    %c4_58 = arith.constant 4 : index
    %73 = vector.load %arg8[%c0_55, %c0_56, %c0_57, %c4_58] : memref<1x16x16x128xbf16, #tpu.memory_space<vmem>>, vector<1x16x16x4xbf16>
    %74 = vector.shape_cast %73 : vector<1x16x16x4xbf16> to vector<16x16x4xbf16>
    %75 = vector.shape_cast %72 : vector<16x16x4xbf16> to vector<1x16x16x4xbf16>
    tpu.vector_store %arg8[%c0_55, %c0_56, %c0_57, %c4_58], %75 {strides = array<i32>} : memref<1x16x16x128xbf16, #tpu.memory_space<vmem>>, vector<1x16x16x4xbf16>,
    %c0_59 = arith.constant 0 : index
    %c0_60 = arith.constant 0 : index
    %c0_61 = arith.constant 0 : index
    %c0_62 = arith.constant 0 : index
    %76 = vector.load %arg8[%c0_59, %c0_60, %c0_61, %c0_62] : memref<1x16x16x128xbf16, #tpu.memory_space<vmem>>, vector<1x16x16x128xbf16>
    %77 = vector.shape_cast %76 : vector<1x16x16x128xbf16> to vector<16x16x128xbf16>
    %c1_63 = arith.constant 1 : index
    %c0_64 = arith.constant 0 : index
    %c0_65 = arith.constant 0 : index
    %78 = vector.load %arg2[%c1_63, %c0_64, %c0_65] : memref<2x1x128xf32, #tpu.memory_space<vmem>>, vector<1x1x128xf32>
    %79 = vector.shape_cast %78 : vector<1x1x128xf32> to vector<1x128xf32>
    %80 = arith.extf %77 : vector<16x16x128xbf16> to vector<16x16x128xf32>
    %81 = vector.shape_cast %79 : vector<1x128xf32> to vector<1x1x128xf32>
    %82 = vector.broadcast %81 : vector<1x1x128xf32> to vector<16x16x128xf32>
    %83 = arith.mulf %80, %82 : vector<16x16x128xf32>
    %c1_66 = arith.constant 1 : index
    %c0_67 = arith.constant 0 : index
    %c0_68 = arith.constant 0 : index
    %84 = vector.load %arg3[%c1_66, %c0_67, %c0_68] : memref<2x1x128xf32, #tpu.memory_space<vmem>>, vector<1x1x128xf32>
    %85 = vector.shape_cast %84 : vector<1x1x128xf32> to vector<1x128xf32>
    %86 = vector.shape_cast %85 : vector<1x128xf32> to vector<1x1x128xf32>
    %87 = vector.broadcast %86 : vector<1x1x128xf32> to vector<16x16x128xf32>
    %88 = arith.addf %83, %87 : vector<16x16x128xf32>
    %cst_69 = arith.constant 0.000000e+00 : f32
    %89 = vector.broadcast %cst_69 : f32 to vector<16x16x128xf32>
    %90 = arith.maximumf %88, %89 : vector<16x16x128xf32>
    %91 = arith.truncf %90 : vector<16x16x128xf32> to vector<16x16x128xbf16>
    %92 = vector.shape_cast %91 : vector<16x16x128xbf16> to vector<256x128xbf16>
    %c1_70 = arith.constant 1 : index
    %c0_71 = arith.constant 0 : index
    %c0_72 = arith.constant 0 : index
    %93 = vector.load %arg4[%c1_70, %c0_71, %c0_72] : memref<2x128x128xbf16, #tpu.memory_space<vmem>>, vector<1x128x128xbf16>
    %94 = vector.shape_cast %93 : vector<1x128x128xbf16> to vector<128x128xbf16>
    %cst_73 = arith.constant dense<0.000000e+00> : vector<256x128xf32>
    %95 = tpu.matmul %92, %94, %cst_73 {dimension_numbers = #tpu.dot_dimension_numbers<[1], [0], [0], [1], [0, 0, 1, 1], [], []>} : vector<256x128xbf16>, vector<128x128xbf16>, vector<256x128xf32> -> vector<256x128xf32>
    %c1_74 = arith.constant 1 : index
    %c0_75 = arith.constant 0 : index
    %c0_76 = arith.constant 0 : index
    %96 = vector.load %arg5[%c1_74, %c0_75, %c0_76] : memref<2x1x128xf32, #tpu.memory_space<vmem>>, vector<1x1x128xf32>
    %97 = vector.shape_cast %96 : vector<1x1x128xf32> to vector<1x128xf32>
    %98 = vector.broadcast %97 : vector<1x128xf32> to vector<256x128xf32>
    %99 = arith.mulf %95, %98 : vector<256x128xf32>
    %c1_77 = arith.constant 1 : index
    %c0_78 = arith.constant 0 : index
    %c0_79 = arith.constant 0 : index
    %100 = vector.load %arg6[%c1_77, %c0_78, %c0_79] : memref<2x1x128xf32, #tpu.memory_space<vmem>>, vector<1x1x128xf32>
    %101 = vector.shape_cast %100 : vector<1x1x128xf32> to vector<1x128xf32>
    %102 = vector.broadcast %101 : vector<1x128xf32> to vector<256x128xf32>
    %103 = arith.addf %99, %102 : vector<256x128xf32>
    %cst_80 = arith.constant 0.000000e+00 : f32
    %104 = vector.broadcast %cst_80 : f32 to vector<256x128xf32>
    %105 = arith.maximumf %103, %104 : vector<256x128xf32>
    %106 = vector.shape_cast %105 : vector<256x128xf32> to vector<16x16x128xf32>
    %107 = arith.truncf %106 : vector<16x16x128xf32> to vector<16x16x128xbf16>
    %c1_81 = arith.constant 1 : index
    %c1_82 = arith.constant 1 : index
    %c0_83 = arith.constant 0 : index
    %108 = vector.load %arg9[%c1_81, %c1_82, %c0_83] : memref<18x24x128xbf16, #tpu.memory_space<vmem>>, vector<16x16x128xbf16>
    tpu.vector_store %arg9[%c1_81, %c1_82, %c0_83], %107 {strides = array<i32>} : memref<18x24x128xbf16, #tpu.memory_space<vmem>>, vector<16x16x128xbf16>,
    %c0_84 = arith.constant 0 : index
    %c0_85 = arith.constant 0 : index
    %c0_86 = arith.constant 0 : index
    %109 = vector.load %arg9[%c0_84, %c0_85, %c0_86] : memref<18x24x128xbf16, #tpu.memory_space<vmem>>, vector<18x24x128xbf16>
    %110 = vector.shape_cast %109 : vector<18x24x128xbf16> to vector<432x128xbf16>
    %c1_87 = arith.constant 1 : index
    %c0_88 = arith.constant 0 : index
    %c0_89 = arith.constant 0 : index
    %111 = vector.load %arg7[%c1_87, %c0_88, %c0_89] : memref<2x128x128xbf16, #tpu.memory_space<vmem>>, vector<1x128x128xbf16>
    %112 = vector.shape_cast %111 : vector<1x128x128xbf16> to vector<128x128xbf16>
    %cst_90 = arith.constant dense<0.000000e+00> : vector<432x128xf32>
    %113 = tpu.matmul %110, %112, %cst_90 {dimension_numbers = #tpu.dot_dimension_numbers<[1], [0], [0], [1], [0, 0, 1, 1], [], []>} : vector<432x128xbf16>, vector<128x128xbf16>, vector<432x128xf32> -> vector<432x128xf32>
    %114 = vector.shape_cast %113 : vector<432x128xf32> to vector<18x24x128xf32>
    %115 = vector.extract_strided_slice %114 {offsets = [0, 0, 0], sizes = [16, 16, 4], strides = [1, 1, 1]} : vector<18x24x128xf32> to vector<16x16x4xf32>
    %116 = vector.extract_strided_slice %114 {offsets = [0, 1, 4], sizes = [16, 16, 4], strides = [1, 1, 1]} : vector<18x24x128xf32> to vector<16x16x4xf32>
    %117 = arith.addf %115, %116 : vector<16x16x4xf32>
    %118 = vector.extract_strided_slice %114 {offsets = [0, 2, 8], sizes = [16, 16, 4], strides = [1, 1, 1]} : vector<18x24x128xf32> to vector<16x16x4xf32>
    %119 = arith.addf %117, %118 : vector<16x16x4xf32>
    %120 = vector.extract_strided_slice %114 {offsets = [1, 0, 12], sizes = [16, 16, 4], strides = [1, 1, 1]} : vector<18x24x128xf32> to vector<16x16x4xf32>
    %121 = arith.addf %119, %120 : vector<16x16x4xf32>
    %122 = vector.extract_strided_slice %114 {offsets = [1, 1, 16], sizes = [16, 16, 4], strides = [1, 1, 1]} : vector<18x24x128xf32> to vector<16x16x4xf32>
    %123 = arith.addf %121, %122 : vector<16x16x4xf32>
    %124 = vector.extract_strided_slice %114 {offsets = [1, 2, 20], sizes = [16, 16, 4], strides = [1, 1, 1]} : vector<18x24x128xf32> to vector<16x16x4xf32>
    %125 = arith.addf %123, %124 : vector<16x16x4xf32>
    %126 = vector.extract_strided_slice %114 {offsets = [2, 0, 24], sizes = [16, 16, 4], strides = [1, 1, 1]} : vector<18x24x128xf32> to vector<16x16x4xf32>
    %127 = arith.addf %125, %126 : vector<16x16x4xf32>
    %128 = vector.extract_strided_slice %114 {offsets = [2, 1, 28], sizes = [16, 16, 4], strides = [1, 1, 1]} : vector<18x24x128xf32> to vector<16x16x4xf32>
    %129 = arith.addf %127, %128 : vector<16x16x4xf32>
    %130 = vector.extract_strided_slice %114 {offsets = [2, 2, 32], sizes = [16, 16, 4], strides = [1, 1, 1]} : vector<18x24x128xf32> to vector<16x16x4xf32>
    %131 = arith.addf %129, %130 : vector<16x16x4xf32>
    %132 = arith.truncf %131 : vector<16x16x4xf32> to vector<16x16x4xbf16>
    %c0_91 = arith.constant 0 : index
    %c0_92 = arith.constant 0 : index
    %c0_93 = arith.constant 0 : index
    %c8 = arith.constant 8 : index
    %133 = vector.load %arg8[%c0_91, %c0_92, %c0_93, %c8] : memref<1x16x16x128xbf16, #tpu.memory_space<vmem>>, vector<1x16x16x4xbf16>
    %134 = vector.shape_cast %133 : vector<1x16x16x4xbf16> to vector<16x16x4xbf16>
    %135 = vector.shape_cast %132 : vector<16x16x4xbf16> to vector<1x16x16x4xbf16>
    tpu.vector_store %arg8[%c0_91, %c0_92, %c0_93, %c8], %135 {strides = array<i32>} : memref<1x16x16x128xbf16, #tpu.memory_space<vmem>>, vector<1x16x16x4xbf16>,
    return
  }
  func.func @transform_0(%arg0: i32) -> (i32, i32, i32, i32) {
    %c0_i32 = arith.constant 0 : i32
    %c0_i32_0 = arith.constant 0 : i32
    %c0_i32_1 = arith.constant 0 : i32
    %c0_i32_2 = arith.constant 0 : i32
    return %arg0, %c0_i32, %c0_i32_0, %c0_i32_1 : i32, i32, i32, i32
  }
  func.func @transform_1(%arg0: i32) -> (i32, i32, i32) {
    %c0_i32 = arith.constant 0 : i32
    %c0_i32_0 = arith.constant 0 : i32
    %c0_i32_1 = arith.constant 0 : i32
    %c0_i32_2 = arith.constant 0 : i32
    return %c0_i32, %c0_i32_0, %c0_i32_1 : i32, i32, i32
  }
  func.func @transform_2(%arg0: i32) -> (i32, i32, i32) {
    %c0_i32 = arith.constant 0 : i32
    %c0_i32_0 = arith.constant 0 : i32
    %c0_i32_1 = arith.constant 0 : i32
    %c0_i32_2 = arith.constant 0 : i32
    return %c0_i32, %c0_i32_0, %c0_i32_1 : i32, i32, i32
  }
  func.func @transform_3(%arg0: i32) -> (i32, i32, i32) {
    %c0_i32 = arith.constant 0 : i32
    %c0_i32_0 = arith.constant 0 : i32
    %c0_i32_1 = arith.constant 0 : i32
    %c0_i32_2 = arith.constant 0 : i32
    return %c0_i32, %c0_i32_0, %c0_i32_1 : i32, i32, i32
  }
  func.func @transform_4(%arg0: i32) -> (i32, i32, i32) {
    %c0_i32 = arith.constant 0 : i32
    %c0_i32_0 = arith.constant 0 : i32
    %c0_i32_1 = arith.constant 0 : i32
    %c0_i32_2 = arith.constant 0 : i32
    return %c0_i32, %c0_i32_0, %c0_i32_1 : i32, i32, i32
  }
  func.func @transform_5(%arg0: i32) -> (i32, i32, i32) {
    %c0_i32 = arith.constant 0 : i32
    %c0_i32_0 = arith.constant 0 : i32
    %c0_i32_1 = arith.constant 0 : i32
    %c0_i32_2 = arith.constant 0 : i32
    return %c0_i32, %c0_i32_0, %c0_i32_1 : i32, i32, i32
  }
  func.func @transform_6(%arg0: i32) -> (i32, i32, i32) {
    %c0_i32 = arith.constant 0 : i32
    %c0_i32_0 = arith.constant 0 : i32
    %c0_i32_1 = arith.constant 0 : i32
    %c0_i32_2 = arith.constant 0 : i32
    return %c0_i32, %c0_i32_0, %c0_i32_1 : i32, i32, i32
  }
  func.func @transform_7(%arg0: i32) -> (i32, i32, i32, i32) {
    %c0_i32 = arith.constant 0 : i32
    %c0_i32_0 = arith.constant 0 : i32
    %c0_i32_1 = arith.constant 0 : i32
    %c0_i32_2 = arith.constant 0 : i32
    return %arg0, %c0_i32, %c0_i32_0, %c0_i32_1 : i32, i32, i32, i32
  }
}

</mosaic_0001>

<llo_original>
// kernel: tpu_custom_call.1
$region0: #{tpu_custom_call.1}
  #allocation0 [shape = 'u32[]', space=smem, size = 0x4, offset = 0x4, fixed_abs, tag = 'smem constant byte address 0x4 - core index']
  #allocation1 [shape = 'u32[72,128]{1,0:T(1,128)}', space=vmem, size = 0x9000, scoped, tag = 'internal scratch']
  #allocation2 [shape = 'bf16[18,24,128]{2,1,0:T(8,128)(2,1)}', space=vmem, size = 0x1b000, scoped, tag = 'scratch operand']
  %s0 = inlined_call_operand.vmem [shape: bf16[2,16,16,4], index: 0, kind: input, shape index: {}]
  %s1 = inlined_call_operand.vmem [shape: f32[2,1,128], index: 1, kind: input, shape index: {}]
  %s2 = inlined_call_operand.vmem [shape: f32[2,1,128], index: 2, kind: input, shape index: {}]
  %s3 = inlined_call_operand.vmem [shape: bf16[2,128,128], index: 3, kind: input, shape index: {}]
  %s4 = inlined_call_operand.vmem [shape: f32[2,1,128], index: 4, kind: input, shape index: {}]
  %s5 = inlined_call_operand.vmem [shape: f32[2,1,128], index: 5, kind: input, shape index: {}]
  %s6 = inlined_call_operand.vmem [shape: bf16[2,128,128], index: 6, kind: input, shape index: {}]
  %s7 = inlined_call_operand.hbm [shape: bf16[2,16,16,128], index: 7, kind: output, shape index: {}]
  %s8 = sld [smem:[#allocation0]]
  $region61: #{tpu_custom_call.1} parent=0
    _
  %s10 = ssub.s32 1, %s8
  %s11 = scalar_select 0, %s10, %s8
  $region1: #{tpu_custom_call.1} parent=0
    #allocation3 [shape = 'u8[131072]{0}', space=vmem, size = 0x20000, scoped, tag = 'output window, operand 0']
    #allocation4 [shape = 's32[2]{0}', space=sflag, size = 0x8, scoped, tag = 'scoped memory for tpu_custom_call.1']
    %12 = vsyncpa [#allocation4], 0
    %s13 = scalar_lea.sflag [#allocation4], 1
    %14 = vsyncpa %s13, 0
    loop: start=0, step=1, limit=4
    $region2: #{tpu_custom_call.1} parent=1 // loop_pre_header
      _
    $region3: #{tpu_custom_call.1} parent=1 // loop_header
      %s16 = sphi 0, %s20
      %p17 = scmp.ge.s32.totalorder %s16, 4
      %s26 = sphi 0, %s28
      %s29 = sphi 0, %s26
      %s30 = sphi 0, %s29
      %s46 = sphi 0, %s30
      %s50 = sphi 0, %s50
      %s52 = sphi 0, %s50
      %s53 = sphi 0, %s52
      %s67 = sphi 0, %s53
      %s71 = sphi 0, %s71
      %s73 = sphi 0, %s71
      %s74 = sphi 0, %s73
      %s88 = sphi 0, %s74
      %s92 = sphi 0, %s92
      %s94 = sphi 0, %s92
      %s95 = sphi 0, %s94
      %s109 = sphi 0, %s95
      %s113 = sphi 0, %s113
      %s115 = sphi 0, %s113
      %s116 = sphi 0, %s115
      %s130 = sphi 0, %s116
      %s134 = sphi 0, %s134
      %s136 = sphi 0, %s134
      %s137 = sphi 0, %s136
      %s151 = sphi 0, %s137
      %s155 = sphi 0, %s155
      %s157 = sphi 0, %s155
      %s158 = sphi 0, %s157
      %s172 = sphi 0, %s158
      %s178 = sphi 0, %s180
      %s181 = sphi 0, %s178
      %s182 = sphi 0, %s181
      %s198 = sphi 0, %s182
    $region4: #{tpu_custom_call.1} parent=1 // loop_header_branch
      %19 = sbr.rel (%p17) target = $region8
    $region5: #{tpu_custom_call.1} parent=1 // loop_body
      %s21 = ssub.s32 %s16, 1
      %s22 = ssub.s32 %s16, 2
      %s23 = sadd.s32 %s16, 1
      %s24 = ssub.s32 %s16, %s23
      %p25 = scmp.eq.s32.totalorder %s24, 0
      %s27 = sadd.s32 %s26, 1
      %s28 = scalar_select %p25, %s26, %s27
      %p31 = pneg %p25
      %p32 = scmp.eq.s32.totalorder %s16, 1
      %p33 = por %p31, %p32
      %p34 = scmp.ne.s32.totalorder %s26, %s29
      %p35 = scmp.eq.s32.totalorder %s16, 0
      %p36 = por %p34, %p35
      %p37 = scmp.ne.s32.totalorder %s26, %s29
      %p38 = scmp.eq.s32.totalorder %s21, 1
      %p39 = por %p37, %p38
      %p40 = scmp.ne.s32.totalorder %s29, %s30
      %p41 = scmp.eq.s32.totalorder %s21, 0
      %p42 = por %p40, %p41
      %p43 = scmp.ne.s32.totalorder %s29, %s30
      %p44 = scmp.eq.s32.totalorder %s22, 1
      %p45 = por %p43, %p44
      %p47 = scmp.ne.s32.totalorder %s30, %s46
      %p48 = scmp.eq.s32.totalorder %s22, 0
      %p49 = por %p47, %p48
      %s51 = sadd.s32 %s50, 1
      %p54 = scmp.eq.s32.totalorder %s16, 1
      %p55 = scmp.ne.s32.totalorder %s50, %s52
      %p56 = scmp.eq.s32.totalorder %s16, 0
      %p57 = por %p55, %p56
      %p58 = scmp.ne.s32.totalorder %s50, %s52
      %p59 = scmp.eq.s32.totalorder %s21, 1
      %p60 = por %p58, %p59
      %p61 = scmp.ne.s32.totalorder %s52, %s53
      %p62 = scmp.eq.s32.totalorder %s21, 0
      %p63 = por %p61, %p62
      %p64 = scmp.ne.s32.totalorder %s52, %s53
      %p65 = scmp.eq.s32.totalorder %s22, 1
      %p66 = por %p64, %p65
      %p68 = scmp.ne.s32.totalorder %s53, %s67
      %p69 = scmp.eq.s32.totalorder %s22, 0
      %p70 = por %p68, %p69
      %s72 = sadd.s32 %s71, 1
      %p75 = scmp.eq.s32.totalorder %s16, 1
      %p76 = scmp.ne.s32.totalorder %s71, %s73
      %p77 = scmp.eq.s32.totalorder %s16, 0
      %p78 = por %p76, %p77
      %p79 = scmp.ne.s32.totalorder %s71, %s73
      %p80 = scmp.eq.s32.totalorder %s21, 1
      %p81 = por %p79, %p80
      %p82 = scmp.ne.s32.totalorder %s73, %s74
      %p83 = scmp.eq.s32.totalorder %s21, 0
      %p84 = por %p82, %p83
      %p85 = scmp.ne.s32.totalorder %s73, %s74
      %p86 = scmp.eq.s32.totalorder %s22, 1
      %p87 = por %p85, %p86
      %p89 = scmp.ne.s32.totalorder %s74, %s88
      %p90 = scmp.eq.s32.totalorder %s22, 0
      %p91 = por %p89, %p90
      %s93 = sadd.s32 %s92, 1
      %p96 = scmp.eq.s32.totalorder %s16, 1
      %p97 = scmp.ne.s32.totalorder %s92, %s94
      %p98 = scmp.eq.s32.totalorder %s16, 0
      %p99 = por %p97, %p98
      %p100 = scmp.ne.s32.totalorder %s92, %s94
      %p101 = scmp.eq.s32.totalorder %s21, 1
      %p102 = por %p100, %p101
      %p103 = scmp.ne.s32.totalorder %s94, %s95
      %p104 = scmp.eq.s32.totalorder %s21, 0
      %p105 = por %p103, %p104
      %p106 = scmp.ne.s32.totalorder %s94, %s95
      %p107 = scmp.eq.s32.totalorder %s22, 1
      %p108 = por %p106, %p107
      %p110 = scmp.ne.s32.totalorder %s95, %s109
      %p111 = scmp.eq.s32.totalorder %s22, 0
      %p112 = por %p110, %p111
      %s114 = sadd.s32 %s113, 1
      %p117 = scmp.eq.s32.totalorder %s16, 1
      %p118 = scmp.ne.s32.totalorder %s113, %s115
      %p119 = scmp.eq.s32.totalorder %s16, 0
      %p120 = por %p118, %p119
      %p121 = scmp.ne.s32.totalorder %s113, %s115
      %p122 = scmp.eq.s32.totalorder %s21, 1
      %p123 = por %p121, %p122
      %p124 = scmp.ne.s32.totalorder %s115, %s116
      %p125 = scmp.eq.s32.totalorder %s21, 0
      %p126 = por %p124, %p125
      %p127 = scmp.ne.s32.totalorder %s115, %s116
      %p128 = scmp.eq.s32.totalorder %s22, 1
      %p129 = por %p127, %p128
      %p131 = scmp.ne.s32.totalorder %s116, %s130
      %p132 = scmp.eq.s32.totalorder %s22, 0
      %p133 = por %p131, %p132
      %s135 = sadd.s32 %s134, 1
      %p138 = scmp.eq.s32.totalorder %s16, 1
      %p139 = scmp.ne.s32.totalorder %s134, %s136
      %p140 = scmp.eq.s32.totalorder %s16, 0
      %p141 = por %p139, %p140
      %p142 = scmp.ne.s32.totalorder %s134, %s136
      %p143 = scmp.eq.s32.totalorder %s21, 1
      %p144 = por %p142, %p143
      %p145 = scmp.ne.s32.totalorder %s136, %s137
      %p146 = scmp.eq.s32.totalorder %s21, 0
      %p147 = por %p145, %p146
      %p148 = scmp.ne.s32.totalorder %s136, %s137
      %p149 = scmp.eq.s32.totalorder %s22, 1
      %p150 = por %p148, %p149
      %p152 = scmp.ne.s32.totalorder %s137, %s151
      %p153 = scmp.eq.s32.totalorder %s22, 0
      %p154 = por %p152, %p153
      %s156 = sadd.s32 %s155, 1
      %p159 = scmp.eq.s32.totalorder %s16, 1
      %p160 = scmp.ne.s32.totalorder %s155, %s157
      %p161 = scmp.eq.s32.totalorder %s16, 0
      %p162 = por %p160, %p161
      %p163 = scmp.ne.s32.totalorder %s155, %s157
      %p164 = scmp.eq.s32.totalorder %s21, 1
      %p165 = por %p163, %p164
      %p166 = scmp.ne.s32.totalorder %s157, %s158
      %p167 = scmp.eq.s32.totalorder %s21, 0
      %p168 = por %p166, %p167
      %p169 = scmp.ne.s32.totalorder %s157, %s158
      %p170 = scmp.eq.s32.totalorder %s22, 1
      %p171 = por %p169, %p170
      %p173 = scmp.ne.s32.totalorder %s158, %s172
      %p174 = scmp.eq.s32.totalorder %s22, 0
      %p175 = por %p173, %p174
      %s176 = ssub.s32 %s16, %s23
      %p177 = scmp.eq.s32.totalorder %s176, 0
      %s179 = sadd.s32 %s178, 1
      %s180 = scalar_select %p177, %s178, %s179
      %p183 = pneg %p177
      %p184 = scmp.eq.s32.totalorder %s16, 1
      %p185 = por %p183, %p184
      %p186 = scmp.ne.s32.totalorder %s178, %s181
      %p187 = scmp.eq.s32.totalorder %s16, 0
      %p188 = por %p186, %p187
      %p189 = scmp.ne.s32.totalorder %s178, %s181
      %p190 = scmp.eq.s32.totalorder %s21, 1
      %p191 = por %p189, %p190
      %p192 = scmp.ne.s32.totalorder %s181, %s182
      %p193 = scmp.eq.s32.totalorder %s21, 0
      %p194 = por %p192, %p193
      %p195 = scmp.ne.s32.totalorder %s181, %s182
      %p196 = scmp.eq.s32.totalorder %s22, 1
      %p197 = por %p195, %p196
      %p199 = scmp.ne.s32.totalorder %s182, %s198
      %p200 = scmp.eq.s32.totalorder %s22, 0
      %p201 = por %p199, %p200
      %p202 = scmp.le.s32.totalorder 1, %s16
      %p203 = scmp.lt.s32.totalorder %s16, 3
      %p204 = pnand %p202, %p203
      %p205 = pneg %p204
      // Predicated region
      $region9: #{tpu_custom_call.1} parent=5 // pred_check
        _
      $region10: #{tpu_custom_call.1} parent=5 // pred_check_branch
        %207 = sbr.rel (%p204) target = $region12
      $region11: #{tpu_custom_call.1} parent=5 // pred_region
        %s208 = ssub.s32 %s16, 1
        // Predicated region
        $region13: #{tpu_custom_call.1} parent=11 // pred_check
          %p209 = pneg %p63
        $region14: #{tpu_custom_call.1} parent=11 // pred_check_branch
          %211 = sbr.rel (%p209) target = $region16
        $region15: #{tpu_custom_call.1} parent=11 // pred_region
          _
        $region16: #{tpu_custom_call.1} parent=11 // pred_fallthru
          _
        // Predicated region
        $region17: #{tpu_custom_call.1} parent=11 // pred_check
          %p212 = pneg %p84
        $region18: #{tpu_custom_call.1} parent=11 // pred_check_branch
          %214 = sbr.rel (%p212) target = $region20
        $region19: #{tpu_custom_call.1} parent=11 // pred_region
          _
        $region20: #{tpu_custom_call.1} parent=11 // pred_fallthru
          _
        // Predicated region
        $region21: #{tpu_custom_call.1} parent=11 // pred_check
          %p215 = pneg %p105
        $region22: #{tpu_custom_call.1} parent=11 // pred_check_branch
          %217 = sbr.rel (%p215) target = $region24
        $region23: #{tpu_custom_call.1} parent=11 // pred_region
          _
        $region24: #{tpu_custom_call.1} parent=11 // pred_fallthru
          _
        // Predicated region
        $region25: #{tpu_custom_call.1} parent=11 // pred_check
          %p218 = pneg %p126
        $region26: #{tpu_custom_call.1} parent=11 // pred_check_branch
          %220 = sbr.rel (%p218) target = $region28
        $region27: #{tpu_custom_call.1} parent=11 // pred_region
          _
        $region28: #{tpu_custom_call.1} parent=11 // pred_fallthru
          _
        // Predicated region
        $region29: #{tpu_custom_call.1} parent=11 // pred_check
          %p221 = pneg %p147
        $region30: #{tpu_custom_call.1} parent=11 // pred_check_branch
          %223 = sbr.rel (%p221) target = $region32
        $region31: #{tpu_custom_call.1} parent=11 // pred_region
          _
        $region32: #{tpu_custom_call.1} parent=11 // pred_fallthru
          _
        // Predicated region
        $region33: #{tpu_custom_call.1} parent=11 // pred_check
          %p224 = pneg %p168
        $region34: #{tpu_custom_call.1} parent=11 // pred_check_branch
          %226 = sbr.rel (%p224) target = $region36
        $region35: #{tpu_custom_call.1} parent=11 // pred_region
          _
        $region36: #{tpu_custom_call.1} parent=11 // pred_fallthru
          _
      $region12: #{tpu_custom_call.1} parent=5 // pred_fallthru
        _
      %p227 = scmp.lt.s32.totalorder %s16, 2
      // Predicated region
      $region37: #{tpu_custom_call.1} parent=5 // pred_check
        %p228 = pneg %p227
      $region38: #{tpu_custom_call.1} parent=5 // pred_check_branch
        %230 = sbr.rel (%p228) target = $region40
      $region39: #{tpu_custom_call.1} parent=5 // pred_region
        // Predicated region
        $region41: #{tpu_custom_call.1} parent=39 // pred_check
          %p231 = pneg %p36
        $region42: #{tpu_custom_call.1} parent=39 // pred_check_branch
          %233 = sbr.rel (%p231) target = $region44
        $region43: #{tpu_custom_call.1} parent=39 // pred_region
          %p234 = scmp.lt.s32.totalorder %s16, 1
          %s235 = scalar_select %p234, %s16, 1
          %s236 = smul.addr %s235, 32
          %s237 = smul.addr %s236, 4
          %s238 = scalar_lea.vmem %s0, %s237
        $region44: #{tpu_custom_call.1} parent=39 // pred_fallthru
          _
      $region40: #{tpu_custom_call.1} parent=5 // pred_fallthru
        _
      %p239 = scmp.le.s32.totalorder 1, %s16
      %p240 = scmp.lt.s32.totalorder %s16, 3
      %p241 = pnand %p239, %p240
      %p242 = pneg %p241
      // Predicated region
      $region45: #{tpu_custom_call.1} parent=5 // pred_check
        _
      $region46: #{tpu_custom_call.1} parent=5 // pred_check_branch
        %244 = sbr.rel (%p241) target = $region48
      $region47: #{tpu_custom_call.1} parent=5 // pred_region
        %s245 = ssub.s32 %s16, 1
        %p246 = scmp.lt.s32.totalorder %s21, 1
        %s247 = scalar_select %p246, %s21, 1
        %s248 = smul.addr %s247, 32
        %s249 = smul.addr %s248, 4
        %s250 = scalar_lea.vmem %s0, %s249
        %p251 = pneg %p42
        %p252 = pneg %p39
        %p253 = pneg %p63
        %p254 = pneg %p60
        %p255 = pneg %p84
        %p256 = pneg %p81
        %p257 = pneg %p105
        %p258 = pneg %p102
        %p259 = pneg %p126
        %p260 = pneg %p123
        %p261 = pneg %p147
        %p262 = pneg %p144
        %p263 = pneg %p168
        %p264 = pneg %p165
        %p265 = pneg %p194
        %p266 = pneg %p191
        %s267 = sand.u32 %s181, 1
        %s268 = scalar_lea.sflag [#allocation4], %s267
        %s269 = sand.u32 %s181, 1
        %s270 = smul.addr %s269, 128
        %s271 = scalar_lea.vmem [#allocation3], %s270
        %p272 = scmp.lt.s32.totalorder %s21, 1
        %s273 = scalar_select %p272, %s21, 1
        %s274 = smul.addr %s273, 32
        %s275 = smul.addr %s274, 4
        %s276 = scalar_lea.vmem %s0, %s275
        %vm278 = vcmask 1043488
        %279 = vst.msk [vmem:[%s271] sm:$0xf] %vm278, 0
        %280 = vst.msk [vmem:[%s271 + $0x4] sm:$0xf] %vm278, 0
        %281 = vst.msk [vmem:[%s271 + $0x8] sm:$0xf] %vm278, 0
        %282 = vst.msk [vmem:[%s271 + $0xc] sm:$0xf] %vm278, 0
        %283 = vst.msk [vmem:[%s271 + $0x10] sm:$0xf] %vm278, 0
        %284 = vst.msk [vmem:[%s271 + $0x14] sm:$0xf] %vm278, 0
        %285 = vst.msk [vmem:[%s271 + $0x18] sm:$0xf] %vm278, 0
        %286 = vst.msk [vmem:[%s271 + $0x1c] sm:$0xf] %vm278, 0
        %287 = vst.msk [vmem:[%s271 + $0x20] sm:$0xf] %vm278, 0
        %288 = vst.msk [vmem:[%s271 + $0x24] sm:$0xf] %vm278, 0
        %289 = vst.msk [vmem:[%s271 + $0x28] sm:$0xf] %vm278, 0
        %290 = vst.msk [vmem:[%s271 + $0x2c] sm:$0xf] %vm278, 0
        %291 = vst.msk [vmem:[%s271 + $0x30] sm:$0xf] %vm278, 0
        %292 = vst.msk [vmem:[%s271 + $0x34] sm:$0xf] %vm278, 0
        %293 = vst.msk [vmem:[%s271 + $0x38] sm:$0xf] %vm278, 0
        %294 = vst.msk [vmem:[%s271 + $0x3c] sm:$0xf] %vm278, 0
        %295 = vst.msk [vmem:[%s271 + $0x40] sm:$0xf] %vm278, 0
        %296 = vst.msk [vmem:[%s271 + $0x44] sm:$0xf] %vm278, 0
        %297 = vst.msk [vmem:[%s271 + $0x48] sm:$0xf] %vm278, 0
        %298 = vst.msk [vmem:[%s271 + $0x4c] sm:$0xf] %vm278, 0
        %299 = vst.msk [vmem:[%s271 + $0x50] sm:$0xf] %vm278, 0
        %300 = vst.msk [vmem:[%s271 + $0x54] sm:$0xf] %vm278, 0
        %301 = vst.msk [vmem:[%s271 + $0x58] sm:$0xf] %vm278, 0
        %302 = vst.msk [vmem:[%s271 + $0x5c] sm:$0xf] %vm278, 0
        %303 = vst.msk [vmem:[%s271 + $0x60] sm:$0xf] %vm278, 0
        %304 = vst.msk [vmem:[%s271 + $0x64] sm:$0xf] %vm278, 0
        %305 = vst.msk [vmem:[%s271 + $0x68] sm:$0xf] %vm278, 0
        %306 = vst.msk [vmem:[%s271 + $0x6c] sm:$0xf] %vm278, 0
        %307 = vst.msk [vmem:[%s271 + $0x70] sm:$0xf] %vm278, 0
        %308 = vst.msk [vmem:[%s271 + $0x74] sm:$0xf] %vm278, 0
        %309 = vst.msk [vmem:[%s271 + $0x78] sm:$0xf] %vm278, 0
        %310 = vst.msk [vmem:[%s271 + $0x7c] sm:$0xf] %vm278, 0
        %v311 = vld [vmem:[%s276] sm:$0xf]
        %v312 = vld [vmem:[%s276 + $0x4] sm:$0xf]
        %v313 = vld [vmem:[%s276 + $0x8] sm:$0xf]
        %v314 = vld [vmem:[%s276 + $0xc] sm:$0xf]
        %v315 = vld [vmem:[%s276 + $0x10] sm:$0xf]
        %v316 = vld [vmem:[%s276 + $0x14] sm:$0xf]
        %v317 = vld [vmem:[%s276 + $0x18] sm:$0xf]
        %v318 = vld [vmem:[%s276 + $0x1c] sm:$0xf]
        %v319 = vld [vmem:[%s276 + $0x20] sm:$0xf]
        %v320 = vld [vmem:[%s276 + $0x24] sm:$0xf]
        %v321 = vld [vmem:[%s276 + $0x28] sm:$0xf]
        %v322 = vld [vmem:[%s276 + $0x2c] sm:$0xf]
        %v323 = vld [vmem:[%s276 + $0x30] sm:$0xf]
        %v324 = vld [vmem:[%s276 + $0x34] sm:$0xf]
        %v325 = vld [vmem:[%s276 + $0x38] sm:$0xf]
        %v326 = vld [vmem:[%s276 + $0x3c] sm:$0xf]
        %v327 = vld [vmem:[%s276 + $0x40] sm:$0xf]
        %v328 = vld [vmem:[%s276 + $0x44] sm:$0xf]
        %v329 = vld [vmem:[%s276 + $0x48] sm:$0xf]
        %v330 = vld [vmem:[%s276 + $0x4c] sm:$0xf]
        %v331 = vld [vmem:[%s276 + $0x50] sm:$0xf]
        %v332 = vld [vmem:[%s276 + $0x54] sm:$0xf]
        %v333 = vld [vmem:[%s276 + $0x58] sm:$0xf]
        %v334 = vld [vmem:[%s276 + $0x5c] sm:$0xf]
        %v335 = vld [vmem:[%s276 + $0x60] sm:$0xf]
        %v336 = vld [vmem:[%s276 + $0x64] sm:$0xf]
        %v337 = vld [vmem:[%s276 + $0x68] sm:$0xf]
        %v338 = vld [vmem:[%s276 + $0x6c] sm:$0xf]
        %v339 = vld [vmem:[%s276 + $0x70] sm:$0xf]
        %v340 = vld [vmem:[%s276 + $0x74] sm:$0xf]
        %v341 = vld [vmem:[%s276 + $0x78] sm:$0xf]
        %v342 = vld [vmem:[%s276 + $0x7c] sm:$0xf]
        %vm343 = vcmask 27648
        %344 = vst.msk [vmem:[%s271] sm:$0xf] %vm343, %v311
        %345 = vst.msk [vmem:[%s271 + $0x4] sm:$0xf] %vm343, %v312
        %346 = vst.msk [vmem:[%s271 + $0x8] sm:$0xf] %vm343, %v313
        %347 = vst.msk [vmem:[%s271 + $0xc] sm:$0xf] %vm343, %v314
        %348 = vst.msk [vmem:[%s271 + $0x10] sm:$0xf] %vm343, %v315
        %349 = vst.msk [vmem:[%s271 + $0x14] sm:$0xf] %vm343, %v316
        %350 = vst.msk [vmem:[%s271 + $0x18] sm:$0xf] %vm343, %v317
        %351 = vst.msk [vmem:[%s271 + $0x1c] sm:$0xf] %vm343, %v318
        %352 = vst.msk [vmem:[%s271 + $0x20] sm:$0xf] %vm343, %v319
        %353 = vst.msk [vmem:[%s271 + $0x24] sm:$0xf] %vm343, %v320
        %354 = vst.msk [vmem:[%s271 + $0x28] sm:$0xf] %vm343, %v321
        %355 = vst.msk [vmem:[%s271 + $0x2c] sm:$0xf] %vm343, %v322
        %356 = vst.msk [vmem:[%s271 + $0x30] sm:$0xf] %vm343, %v323
        %357 = vst.msk [vmem:[%s271 + $0x34] sm:$0xf] %vm343, %v324
        %358 = vst.msk [vmem:[%s271 + $0x38] sm:$0xf] %vm343, %v325
        %359 = vst.msk [vmem:[%s271 + $0x3c] sm:$0xf] %vm343, %v326
        %360 = vst.msk [vmem:[%s271 + $0x40] sm:$0xf] %vm343, %v327
        %361 = vst.msk [vmem:[%s271 + $0x44] sm:$0xf] %vm343, %v328
        %362 = vst.msk [vmem:[%s271 + $0x48] sm:$0xf] %vm343, %v329
        %363 = vst.msk [vmem:[%s271 + $0x4c] sm:$0xf] %vm343, %v330
        %364 = vst.msk [vmem:[%s271 + $0x50] sm:$0xf] %vm343, %v331
        %365 = vst.msk [vmem:[%s271 + $0x54] sm:$0xf] %vm343, %v332
        %366 = vst.msk [vmem:[%s271 + $0x58] sm:$0xf] %vm343, %v333
        %367 = vst.msk [vmem:[%s271 + $0x5c] sm:$0xf] %vm343, %v334
        %368 = vst.msk [vmem:[%s271 + $0x60] sm:$0xf] %vm343, %v335
        %369 = vst.msk [vmem:[%s271 + $0x64] sm:$0xf] %vm343, %v336
        %370 = vst.msk [vmem:[%s271 + $0x68] sm:$0xf] %vm343, %v337
        %371 = vst.msk [vmem:[%s271 + $0x6c] sm:$0xf] %vm343, %v338
        %372 = vst.msk [vmem:[%s271 + $0x70] sm:$0xf] %vm343, %v339
        %373 = vst.msk [vmem:[%s271 + $0x74] sm:$0xf] %vm343, %v340
        %374 = vst.msk [vmem:[%s271 + $0x78] sm:$0xf] %vm343, %v341
        %375 = vst.msk [vmem:[%s271 + $0x7c] sm:$0xf] %vm343, %v342
        %376 = vst [vmem:[#allocation2] sm:$0xf] 0
        %377 = vst [vmem:[#allocation2 + $0x4] sm:$0xf] 0
        %378 = vst [vmem:[#allocation2 + $0x8] sm:$0xf] 0
        %s379 = scalar_lea.vmem [#allocation2], 204
        %380 = vst [vmem:[%s379] sm:$0xf] 0
        %381 = vst [vmem:[%s379 + $0x4] sm:$0xf] 0
        %382 = vst [vmem:[%s379 + $0x8] sm:$0xf] 0
        %vm383 = vcmask 1040384
        %vm384 = vsmask.f32 256
        %vm385 = vmand %vm383, %vm384
        %v386 = vld [vmem:[#allocation2] sm:$0x1]
        %v387 = vsel %vm385, 0, %v386
        %388 = vst [vmem:[#allocation2] sm:$0x1] %v387
        %v389 = vld [vmem:[#allocation2 + $0xc] sm:$0x1]
        %v390 = vsel %vm385, 0, %v389
        %391 = vst [vmem:[#allocation2 + $0xc] sm:$0x1] %v390
        %v392 = vld [vmem:[#allocation2 + $0x18] sm:$0x1]
        %v393 = vsel %vm385, 0, %v392
        %394 = vst [vmem:[#allocation2 + $0x18] sm:$0x1] %v393
        %v395 = vld [vmem:[#allocation2 + $0x24] sm:$0x1]
        %v396 = vsel %vm385, 0, %v395
        %397 = vst [vmem:[#allocation2 + $0x24] sm:$0x1] %v396
        %v398 = vld [vmem:[#allocation2 + $0x30] sm:$0x1]
        %v399 = vsel %vm385, 0, %v398
        %400 = vst [vmem:[#allocation2 + $0x30] sm:$0x1] %v399
        %v401 = vld [vmem:[#allocation2 + $0x3c] sm:$0x1]
        %v402 = vsel %vm385, 0, %v401
        %403 = vst [vmem:[#allocation2 + $0x3c] sm:$0x1] %v402
        %v404 = vld [vmem:[#allocation2 + $0x48] sm:$0x1]
        %v405 = vsel %vm385, 0, %v404
        %406 = vst [vmem:[#allocation2 + $0x48] sm:$0x1] %v405
        %v407 = vld [vmem:[#allocation2 + $0x54] sm:$0x1]
        %v408 = vsel %vm385, 0, %v407
        %409 = vst [vmem:[#allocation2 + $0x54] sm:$0x1] %v408
        %v410 = vld [vmem:[#allocation2 + $0x60] sm:$0x1]
        %v411 = vsel %vm385, 0, %v410
        %412 = vst [vmem:[#allocation2 + $0x60] sm:$0x1] %v411
        %v413 = vld [vmem:[#allocation2 + $0x6c] sm:$0x1]
        %v414 = vsel %vm385, 0, %v413
        %415 = vst [vmem:[#allocation2 + $0x6c] sm:$0x1] %v414
        %v416 = vld [vmem:[#allocation2 + $0x78] sm:$0x1]
        %v417 = vsel %vm385, 0, %v416
        %418 = vst [vmem:[#allocation2 + $0x78] sm:$0x1] %v417
        %v419 = vld [vmem:[#allocation2 + $0x84] sm:$0x1]
        %v420 = vsel %vm385, 0, %v419
        %421 = vst [vmem:[#allocation2 + $0x84] sm:$0x1] %v420
        %v422 = vld [vmem:[#allocation2 + $0x90] sm:$0x1]
        %v423 = vsel %vm385, 0, %v422
        %424 = vst [vmem:[#allocation2 + $0x90] sm:$0x1] %v423
        %v425 = vld [vmem:[#allocation2 + $0x9c] sm:$0x1]
        %v426 = vsel %vm385, 0, %v425
        %427 = vst [vmem:[#allocation2 + $0x9c] sm:$0x1] %v426
        %v428 = vld [vmem:[#allocation2 + $0xa8] sm:$0x1]
        %v429 = vsel %vm385, 0, %v428
        %430 = vst [vmem:[#allocation2 + $0xa8] sm:$0x1] %v429
        %v431 = vld [vmem:[#allocation2 + $0xb4] sm:$0x1]
        %v432 = vsel %vm385, 0, %v431
        %433 = vst [vmem:[#allocation2 + $0xb4] sm:$0x1] %v432
        %v434 = vld [vmem:[#allocation2 + $0xc0] sm:$0x1]
        %v435 = vsel %vm385, 0, %v434
        %436 = vst [vmem:[#allocation2 + $0xc0] sm:$0x1] %v435
        %v437 = vld [vmem:[#allocation2 + $0xcc] sm:$0x1]
        %v438 = vsel %vm385, 0, %v437
        %439 = vst [vmem:[#allocation2 + $0xcc] sm:$0x1] %v438
        %vm440 = vcmask 1043456
        %vm441 = vsmask.f32 7938
        %vm442 = vmand %vm440, %vm441
        %v443 = vld [vmem:[#allocation2 + $0x8] sm:$0xf]
        %v444 = vsel %vm442, 0, %v443
        %445 = vst [vmem:[#allocation2 + $0x8] sm:$0xf] %v444
        %v446 = vld [vmem:[#allocation2 + $0x14] sm:$0xf]
        %v447 = vsel %vm442, 0, %v446
        %448 = vst [vmem:[#allocation2 + $0x14] sm:$0xf] %v447
        %v449 = vld [vmem:[#allocation2 + $0x20] sm:$0xf]
        %v450 = vsel %vm442, 0, %v449
        %451 = vst [vmem:[#allocation2 + $0x20] sm:$0xf] %v450
        %v452 = vld [vmem:[#allocation2 + $0x2c] sm:$0xf]
        %v453 = vsel %vm442, 0, %v452
        %454 = vst [vmem:[#allocation2 + $0x2c] sm:$0xf] %v453
        %v455 = vld [vmem:[#allocation2 + $0x38] sm:$0xf]
        %v456 = vsel %vm442, 0, %v455
        %457 = vst [vmem:[#allocation2 + $0x38] sm:$0xf] %v456
        %v458 = vld [vmem:[#allocation2 + $0x44] sm:$0xf]
        %v459 = vsel %vm442, 0, %v458
        %460 = vst [vmem:[#allocation2 + $0x44] sm:$0xf] %v459
        %v461 = vld [vmem:[#allocation2 + $0x50] sm:$0xf]
        %v462 = vsel %vm442, 0, %v461
        %463 = vst [vmem:[#allocation2 + $0x50] sm:$0xf] %v462
        %v464 = vld [vmem:[#allocation2 + $0x5c] sm:$0xf]
        %v465 = vsel %vm442, 0, %v464
        %466 = vst [vmem:[#allocation2 + $0x5c] sm:$0xf] %v465
        %v467 = vld [vmem:[#allocation2 + $0x68] sm:$0xf]
        %v468 = vsel %vm442, 0, %v467
        %469 = vst [vmem:[#allocation2 + $0x68] sm:$0xf] %v468
        %v470 = vld [vmem:[#allocation2 + $0x74] sm:$0xf]
        %v471 = vsel %vm442, 0, %v470
        %472 = vst [vmem:[#allocation2 + $0x74] sm:$0xf] %v471
        %v473 = vld [vmem:[#allocation2 + $0x80] sm:$0xf]
        %v474 = vsel %vm442, 0, %v473
        %475 = vst [vmem:[#allocation2 + $0x80] sm:$0xf] %v474
        %v476 = vld [vmem:[#allocation2 + $0x8c] sm:$0xf]
        %v477 = vsel %vm442, 0, %v476
        %478 = vst [vmem:[#allocation2 + $0x8c] sm:$0xf] %v477
        %v479 = vld [vmem:[#allocation2 + $0x98] sm:$0xf]
        %v480 = vsel %vm442, 0, %v479
        %481 = vst [vmem:[#allocation2 + $0x98] sm:$0xf] %v480
        %v482 = vld [vmem:[#allocation2 + $0xa4] sm:$0xf]
        %v483 = vsel %vm442, 0, %v482
        %484 = vst [vmem:[#allocation2 + $0xa4] sm:$0xf] %v483
        %v485 = vld [vmem:[#allocation2 + $0xb0] sm:$0xf]
        %v486 = vsel %vm442, 0, %v485
        %487 = vst [vmem:[#allocation2 + $0xb0] sm:$0xf] %v486
        %v488 = vld [vmem:[#allocation2 + $0xbc] sm:$0xf]
        %v489 = vsel %vm442, 0, %v488
        %490 = vst [vmem:[#allocation2 + $0xbc] sm:$0xf] %v489
        %v491 = vld [vmem:[#allocation2 + $0xc8] sm:$0xf]
        %v492 = vsel %vm442, 0, %v491
        %493 = vst [vmem:[#allocation2 + $0xc8] sm:$0xf] %v492
        %v494 = vld [vmem:[#allocation2 + $0xd4] sm:$0xf]
        %v495 = vsel %vm442, 0, %v494
        %496 = vst [vmem:[#allocation2 + $0xd4] sm:$0xf] %v495
        %v497 = vld [vmem:[%s271] sm:$0xf]
        %v498 = vld [vmem:[%s271 + $0x4] sm:$0xf]
        %v499 = vld [vmem:[%s271 + $0x8] sm:$0xf]
        %v500 = vld [vmem:[%s271 + $0xc] sm:$0xf]
        %v501 = vld [vmem:[%s271 + $0x10] sm:$0xf]
        %v502 = vld [vmem:[%s271 + $0x14] sm:$0xf]
        %v503 = vld [vmem:[%s271 + $0x18] sm:$0xf]
        %v504 = vld [vmem:[%s271 + $0x1c] sm:$0xf]
        %v505 = vld [vmem:[%s271 + $0x20] sm:$0xf]
        %v506 = vld [vmem:[%s271 + $0x24] sm:$0xf]
        %v507 = vld [vmem:[%s271 + $0x28] sm:$0xf]
        %v508 = vld [vmem:[%s271 + $0x2c] sm:$0xf]
        %v509 = vld [vmem:[%s271 + $0x30] sm:$0xf]
        %v510 = vld [vmem:[%s271 + $0x34] sm:$0xf]
        %v511 = vld [vmem:[%s271 + $0x38] sm:$0xf]
        %v512 = vld [vmem:[%s271 + $0x3c] sm:$0xf]
        %v513 = vld [vmem:[%s271 + $0x40] sm:$0xf]
        %v514 = vld [vmem:[%s271 + $0x44] sm:$0xf]
        %v515 = vld [vmem:[%s271 + $0x48] sm:$0xf]
        %v516 = vld [vmem:[%s271 + $0x4c] sm:$0xf]
        %v517 = vld [vmem:[%s271 + $0x50] sm:$0xf]
        %v518 = vld [vmem:[%s271 + $0x54] sm:$0xf]
        %v519 = vld [vmem:[%s271 + $0x58] sm:$0xf]
        %v520 = vld [vmem:[%s271 + $0x5c] sm:$0xf]
        %v521 = vld [vmem:[%s271 + $0x60] sm:$0xf]
        %v522 = vld [vmem:[%s271 + $0x64] sm:$0xf]
        %v523 = vld [vmem:[%s271 + $0x68] sm:$0xf]
        %v524 = vld [vmem:[%s271 + $0x6c] sm:$0xf]
        %v525 = vld [vmem:[%s271 + $0x70] sm:$0xf]
        %v526 = vld [vmem:[%s271 + $0x74] sm:$0xf]
        %v527 = vld [vmem:[%s271 + $0x78] sm:$0xf]
        %v528 = vld [vmem:[%s271 + $0x7c] sm:$0xf]
        %v529 = vld [vmem:[%s1] sm:$0x1]
        %v530 = vunpack.c.l.bf16 %v497
        %v531 = vunpack.c.l.bf16 %v498
        %v532 = vunpack.c.l.bf16 %v499
        %v533 = vunpack.c.l.bf16 %v500
        %v534 = vunpack.c.l.bf16 %v501
        %v535 = vunpack.c.l.bf16 %v502
        %v536 = vunpack.c.l.bf16 %v503
        %v537 = vunpack.c.l.bf16 %v504
        %v538 = vunpack.c.l.bf16 %v505
        %v539 = vunpack.c.l.bf16 %v506
        %v540 = vunpack.c.l.bf16 %v507
        %v541 = vunpack.c.l.bf16 %v508
        %v542 = vunpack.c.l.bf16 %v509
        %v543 = vunpack.c.l.bf16 %v510
        %v544 = vunpack.c.l.bf16 %v511
        %v545 = vunpack.c.l.bf16 %v512
        %v546 = vunpack.c.l.bf16 %v513
        %v547 = vunpack.c.l.bf16 %v514
        %v548 = vunpack.c.l.bf16 %v515
        %v549 = vunpack.c.l.bf16 %v516
        %v550 = vunpack.c.l.bf16 %v517
        %v551 = vunpack.c.l.bf16 %v518
        %v552 = vunpack.c.l.bf16 %v519
        %v553 = vunpack.c.l.bf16 %v520
        %v554 = vunpack.c.l.bf16 %v521
        %v555 = vunpack.c.l.bf16 %v522
        %v556 = vunpack.c.l.bf16 %v523
        %v557 = vunpack.c.l.bf16 %v524
        %v558 = vunpack.c.l.bf16 %v525
        %v559 = vunpack.c.l.bf16 %v526
        %v560 = vunpack.c.l.bf16 %v527
        %v561 = vunpack.c.l.bf16 %v528
        %v563 = vperm.slane %v529, 0
        %v565 = vmul.f32 %v530, %v563
        %v566 = vmul.f32 %v531, %v563
        %v567 = vmul.f32 %v532, %v563
        %v568 = vmul.f32 %v533, %v563
        %v569 = vmul.f32 %v534, %v563
        %v570 = vmul.f32 %v535, %v563
        %v571 = vmul.f32 %v536, %v563
        %v572 = vmul.f32 %v537, %v563
        %v573 = vmul.f32 %v538, %v563
        %v574 = vmul.f32 %v539, %v563
        %v575 = vmul.f32 %v540, %v563
        %v576 = vmul.f32 %v541, %v563
        %v577 = vmul.f32 %v542, %v563
        %v578 = vmul.f32 %v543, %v563
        %v579 = vmul.f32 %v544, %v563
        %v580 = vmul.f32 %v545, %v563
        %v581 = vmul.f32 %v546, %v563
        %v582 = vmul.f32 %v547, %v563
        %v583 = vmul.f32 %v548, %v563
        %v584 = vmul.f32 %v549, %v563
        %v585 = vmul.f32 %v550, %v563
        %v586 = vmul.f32 %v551, %v563
        %v587 = vmul.f32 %v552, %v563
        %v588 = vmul.f32 %v553, %v563
        %v589 = vmul.f32 %v554, %v563
        %v590 = vmul.f32 %v555, %v563
        %v591 = vmul.f32 %v556, %v563
        %v592 = vmul.f32 %v557, %v563
        %v593 = vmul.f32 %v558, %v563
        %v594 = vmul.f32 %v559, %v563
        %v595 = vmul.f32 %v560, %v563
        %v596 = vmul.f32 %v561, %v563
        %v597 = vld [vmem:[%s2] sm:$0x1]
        %v599 = vperm.slane %v597, 0
        %v601 = vadd.f32 %v565, %v599
        %v602 = vadd.f32 %v566, %v599
        %v603 = vadd.f32 %v567, %v599
        %v604 = vadd.f32 %v568, %v599
        %v605 = vadd.f32 %v569, %v599
        %v606 = vadd.f32 %v570, %v599
        %v607 = vadd.f32 %v571, %v599
        %v608 = vadd.f32 %v572, %v599
        %v609 = vadd.f32 %v573, %v599
        %v610 = vadd.f32 %v574, %v599
        %v611 = vadd.f32 %v575, %v599
        %v612 = vadd.f32 %v576, %v599
        %v613 = vadd.f32 %v577, %v599
        %v614 = vadd.f32 %v578, %v599
        %v615 = vadd.f32 %v579, %v599
        %v616 = vadd.f32 %v580, %v599
        %v617 = vadd.f32 %v581, %v599
        %v618 = vadd.f32 %v582, %v599
        %v619 = vadd.f32 %v583, %v599
        %v620 = vadd.f32 %v584, %v599
        %v621 = vadd.f32 %v585, %v599
        %v622 = vadd.f32 %v586, %v599
        %v623 = vadd.f32 %v587, %v599
        %v624 = vadd.f32 %v588, %v599
        %v625 = vadd.f32 %v589, %v599
        %v626 = vadd.f32 %v590, %v599
        %v627 = vadd.f32 %v591, %v599
        %v628 = vadd.f32 %v592, %v599
        %v629 = vadd.f32 %v593, %v599
        %v630 = vadd.f32 %v594, %v599
        %v631 = vadd.f32 %v595, %v599
        %v632 = vadd.f32 %v596, %v599
        %v633 = vmax.f32 %v601, 0.0
        %v634 = vmax.f32 %v602, 0.0
        %v635 = vmax.f32 %v603, 0.0
        %v636 = vmax.f32 %v604, 0.0
        %v637 = vmax.f32 %v605, 0.0
        %v638 = vmax.f32 %v606, 0.0
        %v639 = vmax.f32 %v607, 0.0
        %v640 = vmax.f32 %v608, 0.0
        %v641 = vmax.f32 %v609, 0.0
        %v642 = vmax.f32 %v610, 0.0
        %v643 = vmax.f32 %v611, 0.0
        %v644 = vmax.f32 %v612, 0.0
        %v645 = vmax.f32 %v613, 0.0
        %v646 = vmax.f32 %v614, 0.0
        %v647 = vmax.f32 %v615, 0.0
        %v648 = vmax.f32 %v616, 0.0
        %v649 = vmax.f32 %v617, 0.0
        %v650 = vmax.f32 %v618, 0.0
        %v651 = vmax.f32 %v619, 0.0
        %v652 = vmax.f32 %v620, 0.0
        %v653 = vmax.f32 %v621, 0.0
        %v654 = vmax.f32 %v622, 0.0
        %v655 = vmax.f32 %v623, 0.0
        %v656 = vmax.f32 %v624, 0.0
        %v657 = vmax.f32 %v625, 0.0
        %v658 = vmax.f32 %v626, 0.0
        %v659 = vmax.f32 %v627, 0.0
        %v660 = vmax.f32 %v628, 0.0
        %v661 = vmax.f32 %v629, 0.0
        %v662 = vmax.f32 %v630, 0.0
        %v663 = vmax.f32 %v631, 0.0
        %v664 = vmax.f32 %v632, 0.0
        %v665 = vpack.c.bf16 %v633, %v633
        %v666 = vpack.c.bf16 %v634, %v634
        %v667 = vpack.c.bf16 %v635, %v635
        %v668 = vpack.c.bf16 %v636, %v636
        %v669 = vpack.c.bf16 %v637, %v637
        %v670 = vpack.c.bf16 %v638, %v638
        %v671 = vpack.c.bf16 %v639, %v639
        %v672 = vpack.c.bf16 %v640, %v640
        %v673 = vpack.c.bf16 %v641, %v641
        %v674 = vpack.c.bf16 %v642, %v642
        %v675 = vpack.c.bf16 %v643, %v643
        %v676 = vpack.c.bf16 %v644, %v644
        %v677 = vpack.c.bf16 %v645, %v645
        %v678 = vpack.c.bf16 %v646, %v646
        %v679 = vpack.c.bf16 %v647, %v647
        %v680 = vpack.c.bf16 %v648, %v648
        %v681 = vpack.c.bf16 %v649, %v649
        %v682 = vpack.c.bf16 %v650, %v650
        %v683 = vpack.c.bf16 %v651, %v651
        %v684 = vpack.c.bf16 %v652, %v652
        %v685 = vpack.c.bf16 %v653, %v653
        %v686 = vpack.c.bf16 %v654, %v654
        %v687 = vpack.c.bf16 %v655, %v655
        %v688 = vpack.c.bf16 %v656, %v656
        %v689 = vpack.c.bf16 %v657, %v657
        %v690 = vpack.c.bf16 %v658, %v658
        %v691 = vpack.c.bf16 %v659, %v659
        %v692 = vpack.c.bf16 %v660, %v660
        %v693 = vpack.c.bf16 %v661, %v661
        %v694 = vpack.c.bf16 %v662, %v662
        %v695 = vpack.c.bf16 %v663, %v663
        %v696 = vpack.c.bf16 %v664, %v664
        %v697 = vld [vmem:[%s3] sm:$0xf]
        %v698 = vld [vmem:[%s3 + $0x4] sm:$0xf]
        %v699 = vld [vmem:[%s3 + $0x8] sm:$0xf]
        %v700 = vld [vmem:[%s3 + $0xc] sm:$0xf]
        %v701 = vld [vmem:[%s3 + $0x10] sm:$0xf]
        %v702 = vld [vmem:[%s3 + $0x14] sm:$0xf]
        %v703 = vld [vmem:[%s3 + $0x18] sm:$0xf]
        %v704 = vld [vmem:[%s3 + $0x1c] sm:$0xf]
        %v705 = vld [vmem:[%s3 + $0x20] sm:$0xf]
        %v706 = vld [vmem:[%s3 + $0x24] sm:$0xf]
        %v707 = vld [vmem:[%s3 + $0x28] sm:$0xf]
        %v708 = vld [vmem:[%s3 + $0x2c] sm:$0xf]
        %v709 = vld [vmem:[%s3 + $0x30] sm:$0xf]
        %v710 = vld [vmem:[%s3 + $0x34] sm:$0xf]
        %v711 = vld [vmem:[%s3 + $0x38] sm:$0xf]
        %v712 = vld [vmem:[%s3 + $0x3c] sm:$0xf]
        %v745 = vunpack.c.l.b16 %v665
        %v746 = vunpack.c.l.b16 %v666
        %v747 = vunpack.c.l.b16 %v667
        %v748 = vunpack.c.l.b16 %v668
        %v749 = vunpack.c.l.b16 %v669
        %v750 = vunpack.c.l.b16 %v670
        %v751 = vunpack.c.l.b16 %v671
        %v752 = vunpack.c.l.b16 %v672
        %v753 = vunpack.c.l.b16 %v673
        %v754 = vunpack.c.l.b16 %v674
        %v755 = vunpack.c.l.b16 %v675
        %v756 = vunpack.c.l.b16 %v676
        %v757 = vunpack.c.l.b16 %v677
        %v758 = vunpack.c.l.b16 %v678
        %v759 = vunpack.c.l.b16 %v679
        %v760 = vunpack.c.l.b16 %v680
        %v761 = vunpack.c.l.b16 %v681
        %v762 = vunpack.c.l.b16 %v682
        %v763 = vunpack.c.l.b16 %v683
        %v764 = vunpack.c.l.b16 %v684
        %v765 = vunpack.c.l.b16 %v685
        %v766 = vunpack.c.l.b16 %v686
        %v767 = vunpack.c.l.b16 %v687
        %v768 = vunpack.c.l.b16 %v688
        %v769 = vunpack.c.l.b16 %v689
        %v770 = vunpack.c.l.b16 %v690
        %v771 = vunpack.c.l.b16 %v691
        %v772 = vunpack.c.l.b16 %v692
        %v773 = vunpack.c.l.b16 %v693
        %v774 = vunpack.c.l.b16 %v694
        %v775 = vunpack.c.l.b16 %v695
        %v776 = vunpack.c.l.b16 %v696
        %v777 = vpack.c.b16 %v746, %v745
        %v778 = vpack.c.b16 %v748, %v747
        %v779 = vpack.c.b16 %v750, %v749
        %v780 = vpack.c.b16 %v752, %v751
        %v781 = vpack.c.b16 %v754, %v753
        %v782 = vpack.c.b16 %v756, %v755
        %v783 = vpack.c.b16 %v758, %v757
        %v784 = vpack.c.b16 %v760, %v759
        %v785 = vpack.c.b16 %v762, %v761
        %v786 = vpack.c.b16 %v764, %v763
        %v787 = vpack.c.b16 %v766, %v765
        %v788 = vpack.c.b16 %v768, %v767
        %v789 = vpack.c.b16 %v770, %v769
        %v790 = vpack.c.b16 %v772, %v771
        %v791 = vpack.c.b16 %v774, %v773
        %v792 = vpack.c.b16 %v776, %v775
        %v825 = vunpack.c.l.b16 %v697
        %v826 = vunpack.c.l.b16 %v698
        %v827 = vunpack.c.l.b16 %v699
        %v828 = vunpack.c.l.b16 %v700
        %v829 = vunpack.c.l.b16 %v701
        %v830 = vunpack.c.l.b16 %v702
        %v831 = vunpack.c.l.b16 %v703
        %v832 = vunpack.c.l.b16 %v704
        %v833 = vunpack.c.l.b16 %v705
        %v834 = vunpack.c.l.b16 %v706
        %v835 = vunpack.c.l.b16 %v707
        %v836 = vunpack.c.l.b16 %v708
        %v837 = vunpack.c.l.b16 %v709
        %v838 = vunpack.c.l.b16 %v710
        %v839 = vunpack.c.l.b16 %v711
        %v840 = vunpack.c.l.b16 %v712
        %v841 = vpack.c.b16 %v826, %v825
        %v842 = vpack.c.b16 %v828, %v827
        %v843 = vpack.c.b16 %v830, %v829
        %v844 = vpack.c.b16 %v832, %v831
        %v845 = vpack.c.b16 %v834, %v833
        %v846 = vpack.c.b16 %v836, %v835
        %v847 = vpack.c.b16 %v838, %v837
        %v848 = vpack.c.b16 %v840, %v839
        %857 = vmatpush.bf16.msra.mxu0 %v848
        %858 = vmatpush.bf16.msra.mxu0 %v847
        %859 = vmatpush.bf16.msra.mxu0 %v846
        %860 = vmatpush.bf16.msra.mxu0 %v845
        %861 = vmatpush.bf16.msra.mxu0 %v844
        %862 = vmatpush.bf16.msra.mxu0 %v843
        %863 = vmatpush.bf16.msra.mxu0 %v842
        %864 = vmatpush.bf16.msra.mxu0 %v841
        %865 = vmatmul.bf16.gmra.mxu0 %v777
        %v866 = vpop.f32.mrf.mxu0
        %v867 = vadd.f32 0.0, %v866
        %v868 = vpop.f32.mrf.mxu0
        %v869 = vadd.f32 0.0, %v868
        %870 = vmatmul.bf16.gmra.mxu0 %v778
        %v871 = vpop.f32.mrf.mxu0
        %v872 = vadd.f32 0.0, %v871
        %v873 = vpop.f32.mrf.mxu0
        %v874 = vadd.f32 0.0, %v873
        %875 = vmatmul.bf16.gmra.mxu0 %v779
        %v876 = vpop.f32.mrf.mxu0
        %v877 = vadd.f32 0.0, %v876
        %v878 = vpop.f32.mrf.mxu0
        %v879 = vadd.f32 0.0, %v878
        %880 = vmatmul.bf16.gmra.mxu0 %v780
        %v881 = vpop.f32.mrf.mxu0
        %v882 = vadd.f32 0.0, %v881
        %v883 = vpop.f32.mrf.mxu0
        %v884 = vadd.f32 0.0, %v883
        %885 = vmatmul.bf16.gmra.mxu0 %v781
        %v886 = vpop.f32.mrf.mxu0
        %v887 = vadd.f32 0.0, %v886
        %v888 = vpop.f32.mrf.mxu0
        %v889 = vadd.f32 0.0, %v888
        %890 = vmatmul.bf16.gmra.mxu0 %v782
        %v891 = vpop.f32.mrf.mxu0
        %v892 = vadd.f32 0.0, %v891
        %v893 = vpop.f32.mrf.mxu0
        %v894 = vadd.f32 0.0, %v893
        %895 = vmatmul.bf16.gmra.mxu0 %v783
        %v896 = vpop.f32.mrf.mxu0
        %v897 = vadd.f32 0.0, %v896
        %v898 = vpop.f32.mrf.mxu0
        %v899 = vadd.f32 0.0, %v898
        %900 = vmatmul.bf16.gmra.mxu0 %v784
        %v901 = vpop.f32.mrf.mxu0
        %v902 = vadd.f32 0.0, %v901
        %v903 = vpop.f32.mrf.mxu0
        %v904 = vadd.f32 0.0, %v903
        %905 = vmatmul.bf16.gmra.mxu0 %v785
        %v906 = vpop.f32.mrf.mxu0
        %v907 = vadd.f32 0.0, %v906
        %v908 = vpop.f32.mrf.mxu0
        %v909 = vadd.f32 0.0, %v908
        %910 = vmatmul.bf16.gmra.mxu0 %v786
        %v911 = vpop.f32.mrf.mxu0
        %v912 = vadd.f32 0.0, %v911
        %v913 = vpop.f32.mrf.mxu0
        %v914 = vadd.f32 0.0, %v913
        %915 = vmatmul.bf16.gmra.mxu0 %v787
        %v916 = vpop.f32.mrf.mxu0
        %v917 = vadd.f32 0.0, %v916
        %v918 = vpop.f32.mrf.mxu0
        %v919 = vadd.f32 0.0, %v918
        %920 = vmatmul.bf16.gmra.mxu0 %v788
        %v921 = vpop.f32.mrf.mxu0
        %v922 = vadd.f32 0.0, %v921
        %v923 = vpop.f32.mrf.mxu0
        %v924 = vadd.f32 0.0, %v923
        %925 = vmatmul.bf16.gmra.mxu0 %v789
        %v926 = vpop.f32.mrf.mxu0
        %v927 = vadd.f32 0.0, %v926
        %v928 = vpop.f32.mrf.mxu0
        %v929 = vadd.f32 0.0, %v928
        %930 = vmatmul.bf16.gmra.mxu0 %v790
        %v931 = vpop.f32.mrf.mxu0
        %v932 = vadd.f32 0.0, %v931
        %v933 = vpop.f32.mrf.mxu0
        %v934 = vadd.f32 0.0, %v933
        %935 = vmatmul.bf16.gmra.mxu0 %v791
        %v936 = vpop.f32.mrf.mxu0
        %v937 = vadd.f32 0.0, %v936
        %v938 = vpop.f32.mrf.mxu0
        %v939 = vadd.f32 0.0, %v938
        %940 = vmatmul.bf16.gmra.mxu0 %v792
        %v941 = vpop.f32.mrf.mxu0
        %v942 = vadd.f32 0.0, %v941
        %v943 = vpop.f32.mrf.mxu0
        %v944 = vadd.f32 0.0, %v943
        %945 = vdwg.mxu0
        %v946 = vld [vmem:[%s4] sm:$0x1]
        %v948 = vperm.slane %v946, 0
        %v950 = vmul.f32 %v867, %v948
        %v951 = vmul.f32 %v869, %v948
        %v952 = vmul.f32 %v872, %v948
        %v953 = vmul.f32 %v874, %v948
        %v954 = vmul.f32 %v877, %v948
        %v955 = vmul.f32 %v879, %v948
        %v956 = vmul.f32 %v882, %v948
        %v957 = vmul.f32 %v884, %v948
        %v958 = vmul.f32 %v887, %v948
        %v959 = vmul.f32 %v889, %v948
        %v960 = vmul.f32 %v892, %v948
        %v961 = vmul.f32 %v894, %v948
        %v962 = vmul.f32 %v897, %v948
        %v963 = vmul.f32 %v899, %v948
        %v964 = vmul.f32 %v902, %v948
        %v965 = vmul.f32 %v904, %v948
        %v966 = vmul.f32 %v907, %v948
        %v967 = vmul.f32 %v909, %v948
        %v968 = vmul.f32 %v912, %v948
        %v969 = vmul.f32 %v914, %v948
        %v970 = vmul.f32 %v917, %v948
        %v971 = vmul.f32 %v919, %v948
        %v972 = vmul.f32 %v922, %v948
        %v973 = vmul.f32 %v924, %v948
        %v974 = vmul.f32 %v927, %v948
        %v975 = vmul.f32 %v929, %v948
        %v976 = vmul.f32 %v932, %v948
        %v977 = vmul.f32 %v934, %v948
        %v978 = vmul.f32 %v937, %v948
        %v979 = vmul.f32 %v939, %v948
        %v980 = vmul.f32 %v942, %v948
        %v981 = vmul.f32 %v944, %v948
        %v982 = vld [vmem:[%s5] sm:$0x1]
        %v984 = vperm.slane %v982, 0
        %v986 = vadd.f32 %v950, %v984
        %v987 = vadd.f32 %v951, %v984
        %v988 = vadd.f32 %v952, %v984
        %v989 = vadd.f32 %v953, %v984
        %v990 = vadd.f32 %v954, %v984
        %v991 = vadd.f32 %v955, %v984
        %v992 = vadd.f32 %v956, %v984
        %v993 = vadd.f32 %v957, %v984
        %v994 = vadd.f32 %v958, %v984
        %v995 = vadd.f32 %v959, %v984
        %v996 = vadd.f32 %v960, %v984
        %v997 = vadd.f32 %v961, %v984
        %v998 = vadd.f32 %v962, %v984
        %v999 = vadd.f32 %v963, %v984
        %v1000 = vadd.f32 %v964, %v984
        %v1001 = vadd.f32 %v965, %v984
        %v1002 = vadd.f32 %v966, %v984
        %v1003 = vadd.f32 %v967, %v984
        %v1004 = vadd.f32 %v968, %v984
        %v1005 = vadd.f32 %v969, %v984
        %v1006 = vadd.f32 %v970, %v984
        %v1007 = vadd.f32 %v971, %v984
        %v1008 = vadd.f32 %v972, %v984
        %v1009 = vadd.f32 %v973, %v984
        %v1010 = vadd.f32 %v974, %v984
        %v1011 = vadd.f32 %v975, %v984
        %v1012 = vadd.f32 %v976, %v984
        %v1013 = vadd.f32 %v977, %v984
        %v1014 = vadd.f32 %v978, %v984
        %v1015 = vadd.f32 %v979, %v984
        %v1016 = vadd.f32 %v980, %v984
        %v1017 = vadd.f32 %v981, %v984
        %v1018 = vmax.f32 %v986, 0.0
        %v1019 = vmax.f32 %v987, 0.0
        %v1020 = vmax.f32 %v988, 0.0
        %v1021 = vmax.f32 %v989, 0.0
        %v1022 = vmax.f32 %v990, 0.0
        %v1023 = vmax.f32 %v991, 0.0
        %v1024 = vmax.f32 %v992, 0.0
        %v1025 = vmax.f32 %v993, 0.0
        %v1026 = vmax.f32 %v994, 0.0
        %v1027 = vmax.f32 %v995, 0.0
        %v1028 = vmax.f32 %v996, 0.0
        %v1029 = vmax.f32 %v997, 0.0
        %v1030 = vmax.f32 %v998, 0.0
        %v1031 = vmax.f32 %v999, 0.0
        %v1032 = vmax.f32 %v1000, 0.0
        %v1033 = vmax.f32 %v1001, 0.0
        %v1034 = vmax.f32 %v1002, 0.0
        %v1035 = vmax.f32 %v1003, 0.0
        %v1036 = vmax.f32 %v1004, 0.0
        %v1037 = vmax.f32 %v1005, 0.0
        %v1038 = vmax.f32 %v1006, 0.0
        %v1039 = vmax.f32 %v1007, 0.0
        %v1040 = vmax.f32 %v1008, 0.0
        %v1041 = vmax.f32 %v1009, 0.0
        %v1042 = vmax.f32 %v1010, 0.0
        %v1043 = vmax.f32 %v1011, 0.0
        %v1044 = vmax.f32 %v1012, 0.0
        %v1045 = vmax.f32 %v1013, 0.0
        %v1046 = vmax.f32 %v1014, 0.0
        %v1047 = vmax.f32 %v1015, 0.0
        %v1048 = vmax.f32 %v1016, 0.0
        %v1049 = vmax.f32 %v1017, 0.0
        %v1050 = vpack.c.bf16 %v1018, %v1018
        %v1051 = vpack.c.bf16 %v1019, %v1019
        %v1052 = vpack.c.bf16 %v1020, %v1020
        %v1053 = vpack.c.bf16 %v1021, %v1021
        %v1054 = vpack.c.bf16 %v1022, %v1022
        %v1055 = vpack.c.bf16 %v1023, %v1023
        %v1056 = vpack.c.bf16 %v1024, %v1024
        %v1057 = vpack.c.bf16 %v1025, %v1025
        %v1058 = vpack.c.bf16 %v1026, %v1026
        %v1059 = vpack.c.bf16 %v1027, %v1027
        %v1060 = vpack.c.bf16 %v1028, %v1028
        %v1061 = vpack.c.bf16 %v1029, %v1029
        %v1062 = vpack.c.bf16 %v1030, %v1030
        %v1063 = vpack.c.bf16 %v1031, %v1031
        %v1064 = vpack.c.bf16 %v1032, %v1032
        %v1065 = vpack.c.bf16 %v1033, %v1033
        %v1066 = vpack.c.bf16 %v1034, %v1034
        %v1067 = vpack.c.bf16 %v1035, %v1035
        %v1068 = vpack.c.bf16 %v1036, %v1036
        %v1069 = vpack.c.bf16 %v1037, %v1037
        %v1070 = vpack.c.bf16 %v1038, %v1038
        %v1071 = vpack.c.bf16 %v1039, %v1039
        %v1072 = vpack.c.bf16 %v1040, %v1040
        %v1073 = vpack.c.bf16 %v1041, %v1041
        %v1074 = vpack.c.bf16 %v1042, %v1042
        %v1075 = vpack.c.bf16 %v1043, %v1043
        %v1076 = vpack.c.bf16 %v1044, %v1044
        %v1077 = vpack.c.bf16 %v1045, %v1045
        %v1078 = vpack.c.bf16 %v1046, %v1046
        %v1079 = vpack.c.bf16 %v1047, %v1047
        %v1080 = vpack.c.bf16 %v1048, %v1048
        %v1081 = vpack.c.bf16 %v1049, %v1049
        %vm1082 = vsmask.f32 4368
        %vm1083 = vmor %vm384, %vm1082
        %v1085 = vshrl.u32 %v1050, 16
        %v1087 = vrot.slane %v1085, 7
        %v1088 = vshll.u32 %v1050, 16
        %v1090 = vor.u32 %v1087, %v1088
        %v1091 = vrot.slane %v1087, 4
        %v1093 = vshrl.u32 %v1051, 16
        %v1095 = vrot.slane %v1093, 7
        %v1096 = vshll.u32 %v1051, 16
        %v1098 = vor.u32 %v1095, %v1096
        %v1099 = vsel %vm1083, %v1091, %v1098
        %v1100 = vrot.slane %v1095, 4
        %v1102 = vshrl.u32 %v1052, 16
        %v1104 = vrot.slane %v1102, 7
        %v1105 = vshll.u32 %v1052, 16
        %v1107 = vor.u32 %v1104, %v1105
        %v1108 = vrot.slane %v1104, 4
        %v1110 = vshrl.u32 %v1053, 16
        %v1112 = vrot.slane %v1110, 7
        %v1113 = vshll.u32 %v1053, 16
        %v1115 = vor.u32 %v1112, %v1113
        %v1116 = vsel %vm1083, %v1108, %v1115
        %v1117 = vrot.slane %v1112, 4
        %v1119 = vshrl.u32 %v1054, 16
        %v1121 = vrot.slane %v1119, 7
        %v1122 = vshll.u32 %v1054, 16
        %v1124 = vor.u32 %v1121, %v1122
        %v1125 = vrot.slane %v1121, 4
        %v1127 = vshrl.u32 %v1055, 16
        %v1129 = vrot.slane %v1127, 7
        %v1130 = vshll.u32 %v1055, 16
        %v1132 = vor.u32 %v1129, %v1130
        %v1133 = vsel %vm1083, %v1125, %v1132
        %v1134 = vrot.slane %v1129, 4
        %v1136 = vshrl.u32 %v1056, 16
        %v1138 = vrot.slane %v1136, 7
        %v1139 = vshll.u32 %v1056, 16
        %v1141 = vor.u32 %v1138, %v1139
        %v1142 = vrot.slane %v1138, 4
        %v1144 = vshrl.u32 %v1057, 16
        %v1146 = vrot.slane %v1144, 7
        %v1147 = vshll.u32 %v1057, 16
        %v1149 = vor.u32 %v1146, %v1147
        %v1150 = vsel %vm1083, %v1142, %v1149
        %v1151 = vrot.slane %v1146, 4
        %v1153 = vshrl.u32 %v1058, 16
        %v1155 = vrot.slane %v1153, 7
        %v1156 = vshll.u32 %v1058, 16
        %v1158 = vor.u32 %v1155, %v1156
        %v1159 = vrot.slane %v1155, 4
        %v1161 = vshrl.u32 %v1059, 16
        %v1163 = vrot.slane %v1161, 7
        %v1164 = vshll.u32 %v1059, 16
        %v1166 = vor.u32 %v1163, %v1164
        %v1167 = vsel %vm1083, %v1159, %v1166
        %v1168 = vrot.slane %v1163, 4
        %v1170 = vshrl.u32 %v1060, 16
        %v1172 = vrot.slane %v1170, 7
        %v1173 = vshll.u32 %v1060, 16
        %v1175 = vor.u32 %v1172, %v1173
        %v1176 = vrot.slane %v1172, 4
        %v1178 = vshrl.u32 %v1061, 16
        %v1180 = vrot.slane %v1178, 7
        %v1181 = vshll.u32 %v1061, 16
        %v1183 = vor.u32 %v1180, %v1181
        %v1184 = vsel %vm1083, %v1176, %v1183
        %v1185 = vrot.slane %v1180, 4
        %v1187 = vshrl.u32 %v1062, 16
        %v1189 = vrot.slane %v1187, 7
        %v1190 = vshll.u32 %v1062, 16
        %v1192 = vor.u32 %v1189, %v1190
        %v1193 = vrot.slane %v1189, 4
        %v1195 = vshrl.u32 %v1063, 16
        %v1197 = vrot.slane %v1195, 7
        %v1198 = vshll.u32 %v1063, 16
        %v1200 = vor.u32 %v1197, %v1198
        %v1201 = vsel %vm1083, %v1193, %v1200
        %v1202 = vrot.slane %v1197, 4
        %v1204 = vshrl.u32 %v1064, 16
        %v1206 = vrot.slane %v1204, 7
        %v1207 = vshll.u32 %v1064, 16
        %v1209 = vor.u32 %v1206, %v1207
        %v1210 = vrot.slane %v1206, 4
        %v1212 = vshrl.u32 %v1065, 16
        %v1214 = vrot.slane %v1212, 7
        %v1215 = vshll.u32 %v1065, 16
        %v1217 = vor.u32 %v1214, %v1215
        %v1218 = vsel %vm1083, %v1210, %v1217
        %v1219 = vrot.slane %v1214, 4
        %v1221 = vshrl.u32 %v1066, 16
        %v1223 = vrot.slane %v1221, 7
        %v1224 = vshll.u32 %v1066, 16
        %v1226 = vor.u32 %v1223, %v1224
        %v1227 = vrot.slane %v1223, 4
        %v1229 = vshrl.u32 %v1067, 16
        %v1231 = vrot.slane %v1229, 7
        %v1232 = vshll.u32 %v1067, 16
        %v1234 = vor.u32 %v1231, %v1232
        %v1235 = vsel %vm1083, %v1227, %v1234
        %v1236 = vrot.slane %v1231, 4
        %v1238 = vshrl.u32 %v1068, 16
        %v1240 = vrot.slane %v1238, 7
        %v1241 = vshll.u32 %v1068, 16
        %v1243 = vor.u32 %v1240, %v1241
        %v1244 = vrot.slane %v1240, 4
        %v1246 = vshrl.u32 %v1069, 16
        %v1248 = vrot.slane %v1246, 7
        %v1249 = vshll.u32 %v1069, 16
        %v1251 = vor.u32 %v1248, %v1249
        %v1252 = vsel %vm1083, %v1244, %v1251
        %v1253 = vrot.slane %v1248, 4
        %v1255 = vshrl.u32 %v1070, 16
        %v1257 = vrot.slane %v1255, 7
        %v1258 = vshll.u32 %v1070, 16
        %v1260 = vor.u32 %v1257, %v1258
        %v1261 = vrot.slane %v1257, 4
        %v1263 = vshrl.u32 %v1071, 16
        %v1265 = vrot.slane %v1263, 7
        %v1266 = vshll.u32 %v1071, 16
        %v1268 = vor.u32 %v1265, %v1266
        %v1269 = vsel %vm1083, %v1261, %v1268
        %v1270 = vrot.slane %v1265, 4
        %v1272 = vshrl.u32 %v1072, 16
        %v1274 = vrot.slane %v1272, 7
        %v1275 = vshll.u32 %v1072, 16
        %v1277 = vor.u32 %v1274, %v1275
        %v1278 = vrot.slane %v1274, 4
        %v1280 = vshrl.u32 %v1073, 16
        %v1282 = vrot.slane %v1280, 7
        %v1283 = vshll.u32 %v1073, 16
        %v1285 = vor.u32 %v1282, %v1283
        %v1286 = vsel %vm1083, %v1278, %v1285
        %v1287 = vrot.slane %v1282, 4
        %v1289 = vshrl.u32 %v1074, 16
        %v1291 = vrot.slane %v1289, 7
        %v1292 = vshll.u32 %v1074, 16
        %v1294 = vor.u32 %v1291, %v1292
        %v1295 = vrot.slane %v1291, 4
        %v1297 = vshrl.u32 %v1075, 16
        %v1299 = vrot.slane %v1297, 7
        %v1300 = vshll.u32 %v1075, 16
        %v1302 = vor.u32 %v1299, %v1300
        %v1303 = vsel %vm1083, %v1295, %v1302
        %v1304 = vrot.slane %v1299, 4
        %v1306 = vshrl.u32 %v1076, 16
        %v1308 = vrot.slane %v1306, 7
        %v1309 = vshll.u32 %v1076, 16
        %v1311 = vor.u32 %v1308, %v1309
        %v1312 = vrot.slane %v1308, 4
        %v1314 = vshrl.u32 %v1077, 16
        %v1316 = vrot.slane %v1314, 7
        %v1317 = vshll.u32 %v1077, 16
        %v1319 = vor.u32 %v1316, %v1317
        %v1320 = vsel %vm1083, %v1312, %v1319
        %v1321 = vrot.slane %v1316, 4
        %v1323 = vshrl.u32 %v1078, 16
        %v1325 = vrot.slane %v1323, 7
        %v1326 = vshll.u32 %v1078, 16
        %v1328 = vor.u32 %v1325, %v1326
        %v1329 = vrot.slane %v1325, 4
        %v1331 = vshrl.u32 %v1079, 16
        %v1333 = vrot.slane %v1331, 7
        %v1334 = vshll.u32 %v1079, 16
        %v1336 = vor.u32 %v1333, %v1334
        %v1337 = vsel %vm1083, %v1329, %v1336
        %v1338 = vrot.slane %v1333, 4
        %v1340 = vshrl.u32 %v1080, 16
        %v1342 = vrot.slane %v1340, 7
        %v1343 = vshll.u32 %v1080, 16
        %v1345 = vor.u32 %v1342, %v1343
        %v1346 = vrot.slane %v1342, 4
        %v1348 = vshrl.u32 %v1081, 16
        %v1350 = vrot.slane %v1348, 7
        %v1351 = vshll.u32 %v1081, 16
        %v1353 = vor.u32 %v1350, %v1351
        %v1354 = vsel %vm1083, %v1346, %v1353
        %v1355 = vrot.slane %v1350, 4
        %s1404 = scalar_lea.vmem [#allocation2], 12
        %v1405 = vld [vmem:[%s1404] sm:$0xf]
        %v1406 = vsel %vm442, %v1090, %v1405
        %1407 = vst [vmem:[%s1404] sm:$0xf] %v1406
        %1408 = vst [vmem:[%s1404 + $0x4] sm:$0xf] %v1099
        %v1409 = vld [vmem:[%s1404 + $0x8] sm:$0x1]
        %v1410 = vsel %vm385, %v1100, %v1409
        %1411 = vst [vmem:[%s1404 + $0x8] sm:$0x1] %v1410
        %v1412 = vld [vmem:[%s1404 + $0xc] sm:$0xf]
        %v1413 = vsel %vm442, %v1107, %v1412
        %1414 = vst [vmem:[%s1404 + $0xc] sm:$0xf] %v1413
        %1415 = vst [vmem:[%s1404 + $0x10] sm:$0xf] %v1116
        %v1416 = vld [vmem:[%s1404 + $0x14] sm:$0x1]
        %v1417 = vsel %vm385, %v1117, %v1416
        %1418 = vst [vmem:[%s1404 + $0x14] sm:$0x1] %v1417
        %v1419 = vld [vmem:[%s1404 + $0x18] sm:$0xf]
        %v1420 = vsel %vm442, %v1124, %v1419
        %1421 = vst [vmem:[%s1404 + $0x18] sm:$0xf] %v1420
        %1422 = vst [vmem:[%s1404 + $0x1c] sm:$0xf] %v1133
        %v1423 = vld [vmem:[%s1404 + $0x20] sm:$0x1]
        %v1424 = vsel %vm385, %v1134, %v1423
        %1425 = vst [vmem:[%s1404 + $0x20] sm:$0x1] %v1424
        %v1426 = vld [vmem:[%s1404 + $0x24] sm:$0xf]
        %v1427 = vsel %vm442, %v1141, %v1426
        %1428 = vst [vmem:[%s1404 + $0x24] sm:$0xf] %v1427
        %1429 = vst [vmem:[%s1404 + $0x28] sm:$0xf] %v1150
        %v1430 = vld [vmem:[%s1404 + $0x2c] sm:$0x1]
        %v1431 = vsel %vm385, %v1151, %v1430
        %1432 = vst [vmem:[%s1404 + $0x2c] sm:$0x1] %v1431
        %v1433 = vld [vmem:[%s1404 + $0x30] sm:$0xf]
        %v1434 = vsel %vm442, %v1158, %v1433
        %1435 = vst [vmem:[%s1404 + $0x30] sm:$0xf] %v1434
        %1436 = vst [vmem:[%s1404 + $0x34] sm:$0xf] %v1167
        %v1437 = vld [vmem:[%s1404 + $0x38] sm:$0x1]
        %v1438 = vsel %vm385, %v1168, %v1437
        %1439 = vst [vmem:[%s1404 + $0x38] sm:$0x1] %v1438
        %v1440 = vld [vmem:[%s1404 + $0x3c] sm:$0xf]
        %v1441 = vsel %vm442, %v1175, %v1440
        %1442 = vst [vmem:[%s1404 + $0x3c] sm:$0xf] %v1441
        %1443 = vst [vmem:[%s1404 + $0x40] sm:$0xf] %v1184
        %v1444 = vld [vmem:[%s1404 + $0x44] sm:$0x1]
        %v1445 = vsel %vm385, %v1185, %v1444
        %1446 = vst [vmem:[%s1404 + $0x44] sm:$0x1] %v1445
        %v1447 = vld [vmem:[%s1404 + $0x48] sm:$0xf]
        %v1448 = vsel %vm442, %v1192, %v1447
        %1449 = vst [vmem:[%s1404 + $0x48] sm:$0xf] %v1448
        %1450 = vst [vmem:[%s1404 + $0x4c] sm:$0xf] %v1201
        %v1451 = vld [vmem:[%s1404 + $0x50] sm:$0x1]
        %v1452 = vsel %vm385, %v1202, %v1451
        %1453 = vst [vmem:[%s1404 + $0x50] sm:$0x1] %v1452
        %v1454 = vld [vmem:[%s1404 + $0x54] sm:$0xf]
        %v1455 = vsel %vm442, %v1209, %v1454
        %1456 = vst [vmem:[%s1404 + $0x54] sm:$0xf] %v1455
        %1457 = vst [vmem:[%s1404 + $0x58] sm:$0xf] %v1218
        %v1458 = vld [vmem:[%s1404 + $0x5c] sm:$0x1]
        %v1459 = vsel %vm385, %v1219, %v1458
        %1460 = vst [vmem:[%s1404 + $0x5c] sm:$0x1] %v1459
        %v1461 = vld [vmem:[%s1404 + $0x60] sm:$0xf]
        %v1462 = vsel %vm442, %v1226, %v1461
        %1463 = vst [vmem:[%s1404 + $0x60] sm:$0xf] %v1462
        %1464 = vst [vmem:[%s1404 + $0x64] sm:$0xf] %v1235
        %v1465 = vld [vmem:[%s1404 + $0x68] sm:$0x1]
        %v1466 = vsel %vm385, %v1236, %v1465
        %1467 = vst [vmem:[%s1404 + $0x68] sm:$0x1] %v1466
        %v1468 = vld [vmem:[%s1404 + $0x6c] sm:$0xf]
        %v1469 = vsel %vm442, %v1243, %v1468
        %1470 = vst [vmem:[%s1404 + $0x6c] sm:$0xf] %v1469
        %1471 = vst [vmem:[%s1404 + $0x70] sm:$0xf] %v1252
        %v1472 = vld [vmem:[%s1404 + $0x74] sm:$0x1]
        %v1473 = vsel %vm385, %v1253, %v1472
        %1474 = vst [vmem:[%s1404 + $0x74] sm:$0x1] %v1473
        %v1475 = vld [vmem:[%s1404 + $0x78] sm:$0xf]
        %v1476 = vsel %vm442, %v1260, %v1475
        %1477 = vst [vmem:[%s1404 + $0x78] sm:$0xf] %v1476
        %1478 = vst [vmem:[%s1404 + $0x7c] sm:$0xf] %v1269
        %v1479 = vld [vmem:[%s1404 + $0x80] sm:$0x1]
        %v1480 = vsel %vm385, %v1270, %v1479
        %1481 = vst [vmem:[%s1404 + $0x80] sm:$0x1] %v1480
        %v1482 = vld [vmem:[%s1404 + $0x84] sm:$0xf]
        %v1483 = vsel %vm442, %v1277, %v1482
        %1484 = vst [vmem:[%s1404 + $0x84] sm:$0xf] %v1483
        %1485 = vst [vmem:[%s1404 + $0x88] sm:$0xf] %v1286
        %v1486 = vld [vmem:[%s1404 + $0x8c] sm:$0x1]
        %v1487 = vsel %vm385, %v1287, %v1486
        %1488 = vst [vmem:[%s1404 + $0x8c] sm:$0x1] %v1487
        %v1489 = vld [vmem:[%s1404 + $0x90] sm:$0xf]
        %v1490 = vsel %vm442, %v1294, %v1489
        %1491 = vst [vmem:[%s1404 + $0x90] sm:$0xf] %v1490
        %1492 = vst [vmem:[%s1404 + $0x94] sm:$0xf] %v1303
        %v1493 = vld [vmem:[%s1404 + $0x98] sm:$0x1]
        %v1494 = vsel %vm385, %v1304, %v1493
        %1495 = vst [vmem:[%s1404 + $0x98] sm:$0x1] %v1494
        %v1496 = vld [vmem:[%s1404 + $0x9c] sm:$0xf]
        %v1497 = vsel %vm442, %v1311, %v1496
        %1498 = vst [vmem:[%s1404 + $0x9c] sm:$0xf] %v1497
        %1499 = vst [vmem:[%s1404 + $0xa0] sm:$0xf] %v1320
        %v1500 = vld [vmem:[%s1404 + $0xa4] sm:$0x1]
        %v1501 = vsel %vm385, %v1321, %v1500
        %1502 = vst [vmem:[%s1404 + $0xa4] sm:$0x1] %v1501
        %v1503 = vld [vmem:[%s1404 + $0xa8] sm:$0xf]
        %v1504 = vsel %vm442, %v1328, %v1503
        %1505 = vst [vmem:[%s1404 + $0xa8] sm:$0xf] %v1504
        %1506 = vst [vmem:[%s1404 + $0xac] sm:$0xf] %v1337
        %v1507 = vld [vmem:[%s1404 + $0xb0] sm:$0x1]
        %v1508 = vsel %vm385, %v1338, %v1507
        %1509 = vst [vmem:[%s1404 + $0xb0] sm:$0x1] %v1508
        %v1510 = vld [vmem:[%s1404 + $0xb4] sm:$0xf]
        %v1511 = vsel %vm442, %v1345, %v1510
        %1512 = vst [vmem:[%s1404 + $0xb4] sm:$0xf] %v1511
        %1513 = vst [vmem:[%s1404 + $0xb8] sm:$0xf] %v1354
        %v1514 = vld [vmem:[%s1404 + $0xbc] sm:$0x1]
        %v1515 = vsel %vm385, %v1355, %v1514
        %1516 = vst [vmem:[%s1404 + $0xbc] sm:$0x1] %v1515
        %v1517 = vld [vmem:[#allocation2] sm:$0xf]
        %v1518 = vld [vmem:[#allocation2 + $0x4] sm:$0xf]
        %v1519 = vld [vmem:[#allocation2 + $0x8] sm:$0xf]
        %v1520 = vld [vmem:[#allocation2 + $0xc] sm:$0xf]
        %v1521 = vld [vmem:[#allocation2 + $0x10] sm:$0xf]
        %v1522 = vld [vmem:[#allocation2 + $0x14] sm:$0xf]
        %v1523 = vld [vmem:[#allocation2 + $0x18] sm:$0xf]
        %v1524 = vld [vmem:[#allocation2 + $0x1c] sm:$0xf]
        %v1525 = vld [vmem:[#allocation2 + $0x20] sm:$0xf]
        %v1526 = vld [vmem:[#allocation2 + $0x24] sm:$0xf]
        %v1527 = vld [vmem:[#allocation2 + $0x28] sm:$0xf]
        %v1528 = vld [vmem:[#allocation2 + $0x2c] sm:$0xf]
        %v1529 = vld [vmem:[#allocation2 + $0x30] sm:$0xf]
        %v1530 = vld [vmem:[#allocation2 + $0x34] sm:$0xf]
        %v1531 = vld [vmem:[#allocation2 + $0x38] sm:$0xf]
        %v1532 = vld [vmem:[#allocation2 + $0x3c] sm:$0xf]
        %v1533 = vld [vmem:[#allocation2 + $0x40] sm:$0xf]
        %v1534 = vld [vmem:[#allocation2 + $0x44] sm:$0xf]
        %v1535 = vld [vmem:[#allocation2 + $0x48] sm:$0xf]
        %v1536 = vld [vmem:[#allocation2 + $0x4c] sm:$0xf]
        %v1537 = vld [vmem:[#allocation2 + $0x50] sm:$0xf]
        %v1538 = vld [vmem:[#allocation2 + $0x54] sm:$0xf]
        %v1539 = vld [vmem:[#allocation2 + $0x58] sm:$0xf]
        %v1540 = vld [vmem:[#allocation2 + $0x5c] sm:$0xf]
        %v1541 = vld [vmem:[#allocation2 + $0x60] sm:$0xf]
        %v1542 = vld [vmem:[#allocation2 + $0x64] sm:$0xf]
        %v1543 = vld [vmem:[#allocation2 + $0x68] sm:$0xf]
        %v1544 = vld [vmem:[#allocation2 + $0x6c] sm:$0xf]
        %v1545 = vld [vmem:[#allocation2 + $0x70] sm:$0xf]
        %v1546 = vld [vmem:[#allocation2 + $0x74] sm:$0xf]
        %v1547 = vld [vmem:[#allocation2 + $0x78] sm:$0xf]
        %v1548 = vld [vmem:[#allocation2 + $0x7c] sm:$0xf]
        %v1549 = vld [vmem:[#allocation2 + $0x80] sm:$0xf]
        %v1550 = vld [vmem:[#allocation2 + $0x84] sm:$0xf]
        %v1551 = vld [vmem:[#allocation2 + $0x88] sm:$0xf]
        %v1552 = vld [vmem:[#allocation2 + $0x8c] sm:$0xf]
        %v1553 = vld [vmem:[#allocation2 + $0x90] sm:$0xf]
        %v1554 = vld [vmem:[#allocation2 + $0x94] sm:$0xf]
        %v1555 = vld [vmem:[#allocation2 + $0x98] sm:$0xf]
        %v1556 = vld [vmem:[#allocation2 + $0x9c] sm:$0xf]
        %v1557 = vld [vmem:[#allocation2 + $0xa0] sm:$0xf]
        %v1558 = vld [vmem:[#allocation2 + $0xa4] sm:$0xf]
        %v1559 = vld [vmem:[#allocation2 + $0xa8] sm:$0xf]
        %v1560 = vld [vmem:[#allocation2 + $0xac] sm:$0xf]
        %v1561 = vld [vmem:[#allocation2 + $0xb0] sm:$0xf]
        %v1562 = vld [vmem:[#allocation2 + $0xb4] sm:$0xf]
        %v1563 = vld [vmem:[#allocation2 + $0xb8] sm:$0xf]
        %v1564 = vld [vmem:[#allocation2 + $0xbc] sm:$0xf]
        %v1565 = vld [vmem:[#allocation2 + $0xc0] sm:$0xf]
        %v1566 = vld [vmem:[#allocation2 + $0xc4] sm:$0xf]
        %v1567 = vld [vmem:[#allocation2 + $0xc8] sm:$0xf]
        %v1568 = vld [vmem:[#allocation2 + $0xcc] sm:$0xf]
        %v1569 = vld [vmem:[#allocation2 + $0xd0] sm:$0xf]
        %v1570 = vld [vmem:[#allocation2 + $0xd4] sm:$0xf]
        %v1571 = vld [vmem:[%s6] sm:$0xf]
        %v1572 = vld [vmem:[%s6 + $0x4] sm:$0xf]
        %v1573 = vld [vmem:[%s6 + $0x8] sm:$0xf]
        %v1574 = vld [vmem:[%s6 + $0xc] sm:$0xf]
        %v1575 = vld [vmem:[%s6 + $0x10] sm:$0xf]
        %v1576 = vld [vmem:[%s6 + $0x14] sm:$0xf]
        %v1577 = vld [vmem:[%s6 + $0x18] sm:$0xf]
        %v1578 = vld [vmem:[%s6 + $0x1c] sm:$0xf]
        %v1579 = vld [vmem:[%s6 + $0x20] sm:$0xf]
        %v1580 = vld [vmem:[%s6 + $0x24] sm:$0xf]
        %v1581 = vld [vmem:[%s6 + $0x28] sm:$0xf]
        %v1582 = vld [vmem:[%s6 + $0x2c] sm:$0xf]
        %v1583 = vld [vmem:[%s6 + $0x30] sm:$0xf]
        %v1584 = vld [vmem:[%s6 + $0x34] sm:$0xf]
        %v1585 = vld [vmem:[%s6 + $0x38] sm:$0xf]
        %v1586 = vld [vmem:[%s6 + $0x3c] sm:$0xf]
        %v1641 = vunpack.c.l.b16 %v1517
        %v1642 = vunpack.c.l.b16 %v1518
        %v1643 = vunpack.c.l.b16 %v1519
        %v1644 = vunpack.c.l.b16 %v1520
        %v1645 = vunpack.c.l.b16 %v1521
        %v1646 = vunpack.c.l.b16 %v1522
        %v1647 = vunpack.c.l.b16 %v1523
        %v1648 = vunpack.c.l.b16 %v1524
        %v1649 = vunpack.c.l.b16 %v1525
        %v1650 = vunpack.c.l.b16 %v1526
        %v1651 = vunpack.c.l.b16 %v1527
        %v1652 = vunpack.c.l.b16 %v1528
        %v1653 = vunpack.c.l.b16 %v1529
        %v1654 = vunpack.c.l.b16 %v1530
        %v1655 = vunpack.c.l.b16 %v1531
        %v1656 = vunpack.c.l.b16 %v1532
        %v1657 = vunpack.c.l.b16 %v1533
        %v1658 = vunpack.c.l.b16 %v1534
        %v1659 = vunpack.c.l.b16 %v1535
        %v1660 = vunpack.c.l.b16 %v1536
        %v1661 = vunpack.c.l.b16 %v1537
        %v1662 = vunpack.c.l.b16 %v1538
        %v1663 = vunpack.c.l.b16 %v1539
        %v1664 = vunpack.c.l.b16 %v1540
        %v1665 = vunpack.c.l.b16 %v1541
        %v1666 = vunpack.c.l.b16 %v1542
        %v1667 = vunpack.c.l.b16 %v1543
        %v1668 = vunpack.c.l.b16 %v1544
        %v1669 = vunpack.c.l.b16 %v1545
        %v1670 = vunpack.c.l.b16 %v1546
        %v1671 = vunpack.c.l.b16 %v1547
        %v1672 = vunpack.c.l.b16 %v1548
        %v1673 = vunpack.c.l.b16 %v1549
        %v1674 = vunpack.c.l.b16 %v1550
        %v1675 = vunpack.c.l.b16 %v1551
        %v1676 = vunpack.c.l.b16 %v1552
        %v1677 = vunpack.c.l.b16 %v1553
        %v1678 = vunpack.c.l.b16 %v1554
        %v1679 = vunpack.c.l.b16 %v1555
        %v1680 = vunpack.c.l.b16 %v1556
        %v1681 = vunpack.c.l.b16 %v1557
        %v1682 = vunpack.c.l.b16 %v1558
        %v1683 = vunpack.c.l.b16 %v1559
        %v1684 = vunpack.c.l.b16 %v1560
        %v1685 = vunpack.c.l.b16 %v1561
        %v1686 = vunpack.c.l.b16 %v1562
        %v1687 = vunpack.c.l.b16 %v1563
        %v1688 = vunpack.c.l.b16 %v1564
        %v1689 = vunpack.c.l.b16 %v1565
        %v1690 = vunpack.c.l.b16 %v1566
        %v1691 = vunpack.c.l.b16 %v1567
        %v1692 = vunpack.c.l.b16 %v1568
        %v1693 = vunpack.c.l.b16 %v1569
        %v1694 = vunpack.c.l.b16 %v1570
        %v1695 = vpack.c.b16 %v1642, %v1641
        %v1696 = vpack.c.b16 %v1644, %v1643
        %v1697 = vpack.c.b16 %v1646, %v1645
        %v1698 = vpack.c.b16 %v1648, %v1647
        %v1699 = vpack.c.b16 %v1650, %v1649
        %v1700 = vpack.c.b16 %v1652, %v1651
        %v1701 = vpack.c.b16 %v1654, %v1653
        %v1702 = vpack.c.b16 %v1656, %v1655
        %v1703 = vpack.c.b16 %v1658, %v1657
        %v1704 = vpack.c.b16 %v1660, %v1659
        %v1705 = vpack.c.b16 %v1662, %v1661
        %v1706 = vpack.c.b16 %v1664, %v1663
        %v1707 = vpack.c.b16 %v1666, %v1665
        %v1708 = vpack.c.b16 %v1668, %v1667
        %v1709 = vpack.c.b16 %v1670, %v1669
        %v1710 = vpack.c.b16 %v1672, %v1671
        %v1711 = vpack.c.b16 %v1674, %v1673
        %v1712 = vpack.c.b16 %v1676, %v1675
        %v1713 = vpack.c.b16 %v1678, %v1677
        %v1714 = vpack.c.b16 %v1680, %v1679
        %v1715 = vpack.c.b16 %v1682, %v1681
        %v1716 = vpack.c.b16 %v1684, %v1683
        %v1717 = vpack.c.b16 %v1686, %v1685
        %v1718 = vpack.c.b16 %v1688, %v1687
        %v1719 = vpack.c.b16 %v1690, %v1689
        %v1720 = vpack.c.b16 %v1692, %v1691
        %v1721 = vpack.c.b16 %v1694, %v1693
        %v1765 = vunpack.c.l.b16 %v1571
        %v1766 = vunpack.c.l.b16 %v1572
        %v1767 = vunpack.c.l.b16 %v1573
        %v1768 = vunpack.c.l.b16 %v1574
        %v1769 = vunpack.c.l.b16 %v1575
        %v1770 = vunpack.c.l.b16 %v1576
        %v1771 = vunpack.c.l.b16 %v1577
        %v1772 = vunpack.c.l.b16 %v1578
        %v1773 = vunpack.c.l.b16 %v1579
        %v1774 = vunpack.c.l.b16 %v1580
        %v1775 = vunpack.c.l.b16 %v1581
        %v1776 = vunpack.c.l.b16 %v1582
        %v1777 = vunpack.c.l.b16 %v1583
        %v1778 = vunpack.c.l.b16 %v1584
        %v1779 = vunpack.c.l.b16 %v1585
        %v1780 = vunpack.c.l.b16 %v1586
        %v1781 = vpack.c.b16 %v1766, %v1765
        %v1782 = vpack.c.b16 %v1768, %v1767
        %v1783 = vpack.c.b16 %v1770, %v1769
        %v1784 = vpack.c.b16 %v1772, %v1771
        %v1785 = vpack.c.b16 %v1774, %v1773
        %v1786 = vpack.c.b16 %v1776, %v1775
        %v1787 = vpack.c.b16 %v1778, %v1777
        %v1788 = vpack.c.b16 %v1780, %v1779
        %1797 = vmatpush.bf16.msra.mxu0 %v1788
        %1798 = vmatpush.bf16.msra.mxu0 %v1787
        %1799 = vmatpush.bf16.msra.mxu0 %v1786
        %1800 = vmatpush.bf16.msra.mxu0 %v1785
        %1801 = vmatpush.bf16.msra.mxu0 %v1784
        %1802 = vmatpush.bf16.msra.mxu0 %v1783
        %1803 = vmatpush.bf16.msra.mxu0 %v1782
        %1804 = vmatpush.bf16.msra.mxu0 %v1781
        %1805 = vmatmul.bf16.gmra.mxu0 %v1695
        %v1806 = vpop.f32.mrf.mxu0
        %v1807 = vadd.f32 0.0, %v1806
        %v1808 = vpop.f32.mrf.mxu0
        %v1809 = vadd.f32 0.0, %v1808
        %1810 = vmatmul.bf16.gmra.mxu0 %v1696
        %v1811 = vpop.f32.mrf.mxu0
        %v1812 = vadd.f32 0.0, %v1811
        %v1813 = vpop.f32.mrf.mxu0
        %v1814 = vadd.f32 0.0, %v1813
        %1815 = vmatmul.bf16.gmra.mxu0 %v1697
        %v1816 = vpop.f32.mrf.mxu0
        %v1817 = vadd.f32 0.0, %v1816
        %v1818 = vpop.f32.mrf.mxu0
        %v1819 = vadd.f32 0.0, %v1818
        %1820 = vmatmul.bf16.gmra.mxu0 %v1698
        %v1821 = vpop.f32.mrf.mxu0
        %v1822 = vadd.f32 0.0, %v1821
        %v1823 = vpop.f32.mrf.mxu0
        %v1824 = vadd.f32 0.0, %v1823
        %1825 = vmatmul.bf16.gmra.mxu0 %v1699
        %v1826 = vpop.f32.mrf.mxu0
        %v1827 = vadd.f32 0.0, %v1826
        %v1828 = vpop.f32.mrf.mxu0
        %v1829 = vadd.f32 0.0, %v1828
        %1830 = vmatmul.bf16.gmra.mxu0 %v1700
        %v1831 = vpop.f32.mrf.mxu0
        %v1832 = vadd.f32 0.0, %v1831
        %v1833 = vpop.f32.mrf.mxu0
        %v1834 = vadd.f32 0.0, %v1833
        %1835 = vmatmul.bf16.gmra.mxu0 %v1701
        %v1836 = vpop.f32.mrf.mxu0
        %v1837 = vadd.f32 0.0, %v1836
        %v1838 = vpop.f32.mrf.mxu0
        %v1839 = vadd.f32 0.0, %v1838
        %1840 = vmatmul.bf16.gmra.mxu0 %v1702
        %v1841 = vpop.f32.mrf.mxu0
        %v1842 = vadd.f32 0.0, %v1841
        %v1843 = vpop.f32.mrf.mxu0
        %v1844 = vadd.f32 0.0, %v1843
        %1845 = vmatmul.bf16.gmra.mxu0 %v1703
        %v1846 = vpop.f32.mrf.mxu0
        %v1847 = vadd.f32 0.0, %v1846
        %v1848 = vpop.f32.mrf.mxu0
        %v1849 = vadd.f32 0.0, %v1848
        %1850 = vmatmul.bf16.gmra.mxu0 %v1704
        %v1851 = vpop.f32.mrf.mxu0
        %v1852 = vadd.f32 0.0, %v1851
        %v1853 = vpop.f32.mrf.mxu0
        %v1854 = vadd.f32 0.0, %v1853
        %1855 = vmatmul.bf16.gmra.mxu0 %v1705
        %v1856 = vpop.f32.mrf.mxu0
        %v1857 = vadd.f32 0.0, %v1856
        %v1858 = vpop.f32.mrf.mxu0
        %v1859 = vadd.f32 0.0, %v1858
        %1860 = vmatmul.bf16.gmra.mxu0 %v1706
        %v1861 = vpop.f32.mrf.mxu0
        %v1862 = vadd.f32 0.0, %v1861
        %v1863 = vpop.f32.mrf.mxu0
        %v1864 = vadd.f32 0.0, %v1863
        %1865 = vmatmul.bf16.gmra.mxu0 %v1707
        %v1866 = vpop.f32.mrf.mxu0
        %v1867 = vadd.f32 0.0, %v1866
        %v1868 = vpop.f32.mrf.mxu0
        %v1869 = vadd.f32 0.0, %v1868
        %1870 = vmatmul.bf16.gmra.mxu0 %v1708
        %v1871 = vpop.f32.mrf.mxu0
        %v1872 = vadd.f32 0.0, %v1871
        %v1873 = vpop.f32.mrf.mxu0
        %v1874 = vadd.f32 0.0, %v1873
        %1875 = vmatmul.bf16.gmra.mxu0 %v1709
        %v1876 = vpop.f32.mrf.mxu0
        %v1877 = vadd.f32 0.0, %v1876
        %v1878 = vpop.f32.mrf.mxu0
        %v1879 = vadd.f32 0.0, %v1878
        %1880 = vmatmul.bf16.gmra.mxu0 %v1710
        %v1881 = vpop.f32.mrf.mxu0
        %v1882 = vadd.f32 0.0, %v1881
        %v1883 = vpop.f32.mrf.mxu0
        %v1884 = vadd.f32 0.0, %v1883
        %1885 = vmatmul.bf16.gmra.mxu0 %v1711
        %v1886 = vpop.f32.mrf.mxu0
        %v1887 = vadd.f32 0.0, %v1886
        %v1888 = vpop.f32.mrf.mxu0
        %v1889 = vadd.f32 0.0, %v1888
        %1890 = vmatmul.bf16.gmra.mxu0 %v1712
        %v1891 = vpop.f32.mrf.mxu0
        %v1892 = vadd.f32 0.0, %v1891
        %v1893 = vpop.f32.mrf.mxu0
        %v1894 = vadd.f32 0.0, %v1893
        %1895 = vmatmul.bf16.gmra.mxu0 %v1713
        %v1896 = vpop.f32.mrf.mxu0
        %v1897 = vadd.f32 0.0, %v1896
        %v1898 = vpop.f32.mrf.mxu0
        %v1899 = vadd.f32 0.0, %v1898
        %1900 = vmatmul.bf16.gmra.mxu0 %v1714
        %v1901 = vpop.f32.mrf.mxu0
        %v1902 = vadd.f32 0.0, %v1901
        %v1903 = vpop.f32.mrf.mxu0
        %v1904 = vadd.f32 0.0, %v1903
        %1905 = vmatmul.bf16.gmra.mxu0 %v1715
        %v1906 = vpop.f32.mrf.mxu0
        %v1907 = vadd.f32 0.0, %v1906
        %v1908 = vpop.f32.mrf.mxu0
        %v1909 = vadd.f32 0.0, %v1908
        %1910 = vmatmul.bf16.gmra.mxu0 %v1716
        %v1911 = vpop.f32.mrf.mxu0
        %v1912 = vadd.f32 0.0, %v1911
        %v1913 = vpop.f32.mrf.mxu0
        %v1914 = vadd.f32 0.0, %v1913
        %1915 = vmatmul.bf16.gmra.mxu0 %v1717
        %v1916 = vpop.f32.mrf.mxu0
        %v1917 = vadd.f32 0.0, %v1916
        %v1918 = vpop.f32.mrf.mxu0
        %v1919 = vadd.f32 0.0, %v1918
        %1920 = vmatmul.bf16.gmra.mxu0 %v1718
        %v1921 = vpop.f32.mrf.mxu0
        %v1922 = vadd.f32 0.0, %v1921
        %v1923 = vpop.f32.mrf.mxu0
        %v1924 = vadd.f32 0.0, %v1923
        %1925 = vmatmul.bf16.gmra.mxu0 %v1719
        %v1926 = vpop.f32.mrf.mxu0
        %v1927 = vadd.f32 0.0, %v1926
        %v1928 = vpop.f32.mrf.mxu0
        %v1929 = vadd.f32 0.0, %v1928
        %1930 = vmatmul.bf16.gmra.mxu0 %v1720
        %v1931 = vpop.f32.mrf.mxu0
        %v1932 = vadd.f32 0.0, %v1931
        %v1933 = vpop.f32.mrf.mxu0
        %v1934 = vadd.f32 0.0, %v1933
        %1935 = vmatmul.bf16.gmra.mxu0 %v1721
        %v1936 = vpop.f32.mrf.mxu0
        %v1937 = vadd.f32 0.0, %v1936
        %v1938 = vpop.f32.mrf.mxu0
        %v1939 = vadd.f32 0.0, %v1938
        %1940 = vdwg.mxu0
        %vm1989 = vcmask 1046528
        %v1990 = vrot.slane %v1807, 1
        %v1991 = vrot.slane %v1809, 1
        %v1992 = vsel %vm1989, %v1990, %v1991
        %v1993 = vrot.slane %v1812, 1
        %v1994 = vsel %vm1989, %v1991, %v1993
        %v1995 = vrot.slane %v1814, 1
        %v1996 = vrot.slane %v1817, 1
        %v1997 = vsel %vm1989, %v1995, %v1996
        %v1998 = vrot.slane %v1819, 1
        %v1999 = vsel %vm1989, %v1996, %v1998
        %v2000 = vrot.slane %v1822, 1
        %v2001 = vrot.slane %v1824, 1
        %v2002 = vsel %vm1989, %v2000, %v2001
        %v2003 = vrot.slane %v1827, 1
        %v2004 = vsel %vm1989, %v2001, %v2003
        %v2005 = vrot.slane %v1829, 1
        %v2006 = vrot.slane %v1832, 1
        %v2007 = vsel %vm1989, %v2005, %v2006
        %v2008 = vrot.slane %v1834, 1
        %v2009 = vsel %vm1989, %v2006, %v2008
        %v2010 = vrot.slane %v1837, 1
        %v2011 = vrot.slane %v1839, 1
        %v2012 = vsel %vm1989, %v2010, %v2011
        %v2013 = vrot.slane %v1842, 1
        %v2014 = vsel %vm1989, %v2011, %v2013
        %v2015 = vrot.slane %v1844, 1
        %v2016 = vrot.slane %v1847, 1
        %v2017 = vsel %vm1989, %v2015, %v2016
        %v2018 = vrot.slane %v1849, 1
        %v2019 = vsel %vm1989, %v2016, %v2018
        %v2020 = vrot.slane %v1852, 1
        %v2021 = vrot.slane %v1854, 1
        %v2022 = vsel %vm1989, %v2020, %v2021
        %v2023 = vrot.slane %v1857, 1
        %v2024 = vsel %vm1989, %v2021, %v2023
        %v2025 = vrot.slane %v1859, 1
        %v2026 = vrot.slane %v1862, 1
        %v2027 = vsel %vm1989, %v2025, %v2026
        %v2028 = vrot.slane %v1864, 1
        %v2029 = vsel %vm1989, %v2026, %v2028
        %v2030 = vrot.slane %v1867, 1
        %v2031 = vrot.slane %v1869, 1
        %v2032 = vsel %vm1989, %v2030, %v2031
        %v2033 = vrot.slane %v1872, 1
        %v2034 = vsel %vm1989, %v2031, %v2033
        %v2035 = vrot.slane %v1874, 1
        %v2036 = vrot.slane %v1877, 1
        %v2037 = vsel %vm1989, %v2035, %v2036
        %v2038 = vrot.slane %v1879, 1
        %v2039 = vsel %vm1989, %v2036, %v2038
        %v2040 = vrot.slane %v1882, 1
        %v2041 = vrot.slane %v1884, 1
        %v2042 = vsel %vm1989, %v2040, %v2041
        %v2043 = vrot.slane %v1887, 1
        %v2044 = vsel %vm1989, %v2041, %v2043
        %v2045 = vrot.slane %v1889, 1
        %v2046 = vrot.slane %v1892, 1
        %v2047 = vsel %vm1989, %v2045, %v2046
        %v2048 = vrot.slane %v1894, 1
        %v2049 = vsel %vm1989, %v2046, %v2048
        %v2050 = vrot.slane %v1897, 1
        %v2051 = vrot.slane %v1899, 1
        %v2052 = vsel %vm1989, %v2050, %v2051
        %v2053 = vrot.slane %v1902, 1
        %v2054 = vsel %vm1989, %v2051, %v2053
        %v2055 = vrot.slane %v1904, 1
        %v2056 = vrot.slane %v1907, 1
        %v2057 = vsel %vm1989, %v2055, %v2056
        %v2058 = vrot.slane %v1909, 1
        %v2059 = vsel %vm1989, %v2056, %v2058
        %v2060 = vrot.slane %v1912, 1
        %v2061 = vrot.slane %v1914, 1
        %v2062 = vsel %vm1989, %v2060, %v2061
        %v2063 = vrot.slane %v1917, 1
        %v2064 = vsel %vm1989, %v2061, %v2063
        %v2065 = vrot.slane %v1919, 1
        %v2066 = vrot.slane %v1922, 1
        %v2067 = vsel %vm1989, %v2065, %v2066
        %v2068 = vrot.slane %v1924, 1
        %v2069 = vsel %vm1989, %v2066, %v2068
        %2070 = vrot.lane.b32.xlu0 %v1992, 124
        %v2071 = vpop.permute.xlu0 %2070
        %2072 = vrot.lane.b32.xlu0 %v1994, 124
        %v2073 = vpop.permute.xlu0 %2072
        %2074 = vrot.lane.b32.xlu0 %v1997, 124
        %v2075 = vpop.permute.xlu0 %2074
        %2076 = vrot.lane.b32.xlu0 %v1999, 124
        %v2077 = vpop.permute.xlu0 %2076
        %2078 = vrot.lane.b32.xlu0 %v2002, 124
        %v2079 = vpop.permute.xlu0 %2078
        %2080 = vrot.lane.b32.xlu0 %v2004, 124
        %v2081 = vpop.permute.xlu0 %2080
        %2082 = vrot.lane.b32.xlu0 %v2007, 124
        %v2083 = vpop.permute.xlu0 %2082
        %2084 = vrot.lane.b32.xlu0 %v2009, 124
        %v2085 = vpop.permute.xlu0 %2084
        %2086 = vrot.lane.b32.xlu0 %v2012, 124
        %v2087 = vpop.permute.xlu0 %2086
        %2088 = vrot.lane.b32.xlu0 %v2014, 124
        %v2089 = vpop.permute.xlu0 %2088
        %2090 = vrot.lane.b32.xlu0 %v2017, 124
        %v2091 = vpop.permute.xlu0 %2090
        %2092 = vrot.lane.b32.xlu0 %v2019, 124
        %v2093 = vpop.permute.xlu0 %2092
        %2094 = vrot.lane.b32.xlu0 %v2022, 124
        %v2095 = vpop.permute.xlu0 %2094
        %2096 = vrot.lane.b32.xlu0 %v2024, 124
        %v2097 = vpop.permute.xlu0 %2096
        %2098 = vrot.lane.b32.xlu0 %v2027, 124
        %v2099 = vpop.permute.xlu0 %2098
        %2100 = vrot.lane.b32.xlu0 %v2029, 124
        %v2101 = vpop.permute.xlu0 %2100
        %2102 = vrot.lane.b32.xlu0 %v2032, 124
        %v2103 = vpop.permute.xlu0 %2102
        %2104 = vrot.lane.b32.xlu0 %v2034, 124
        %v2105 = vpop.permute.xlu0 %2104
        %2106 = vrot.lane.b32.xlu0 %v2037, 124
        %v2107 = vpop.permute.xlu0 %2106
        %2108 = vrot.lane.b32.xlu0 %v2039, 124
        %v2109 = vpop.permute.xlu0 %2108
        %2110 = vrot.lane.b32.xlu0 %v2042, 124
        %v2111 = vpop.permute.xlu0 %2110
        %2112 = vrot.lane.b32.xlu0 %v2044, 124
        %v2113 = vpop.permute.xlu0 %2112
        %2114 = vrot.lane.b32.xlu0 %v2047, 124
        %v2115 = vpop.permute.xlu0 %2114
        %2116 = vrot.lane.b32.xlu0 %v2049, 124
        %v2117 = vpop.permute.xlu0 %2116
        %2118 = vrot.lane.b32.xlu0 %v2052, 124
        %v2119 = vpop.permute.xlu0 %2118
        %2120 = vrot.lane.b32.xlu0 %v2054, 124
        %v2121 = vpop.permute.xlu0 %2120
        %2122 = vrot.lane.b32.xlu0 %v2057, 124
        %v2123 = vpop.permute.xlu0 %2122
        %2124 = vrot.lane.b32.xlu0 %v2059, 124
        %v2125 = vpop.permute.xlu0 %2124
        %2126 = vrot.lane.b32.xlu0 %v2062, 124
        %v2127 = vpop.permute.xlu0 %2126
        %2128 = vrot.lane.b32.xlu0 %v2064, 124
        %v2129 = vpop.permute.xlu0 %2128
        %2130 = vrot.lane.b32.xlu0 %v2067, 124
        %v2131 = vpop.permute.xlu0 %2130
        %2132 = vrot.lane.b32.xlu0 %v2069, 124
        %v2133 = vpop.permute.xlu0 %2132
        %v2166 = vadd.f32 %v1807, %v2071
        %v2167 = vadd.f32 %v1809, %v2073
        %v2168 = vadd.f32 %v1814, %v2075
        %v2169 = vadd.f32 %v1817, %v2077
        %v2170 = vadd.f32 %v1822, %v2079
        %v2171 = vadd.f32 %v1824, %v2081
        %v2172 = vadd.f32 %v1829, %v2083
        %v2173 = vadd.f32 %v1832, %v2085
        %v2174 = vadd.f32 %v1837, %v2087
        %v2175 = vadd.f32 %v1839, %v2089
        %v2176 = vadd.f32 %v1844, %v2091
        %v2177 = vadd.f32 %v1847, %v2093
        %v2178 = vadd.f32 %v1852, %v2095
        %v2179 = vadd.f32 %v1854, %v2097
        %v2180 = vadd.f32 %v1859, %v2099
        %v2181 = vadd.f32 %v1862, %v2101
        %v2182 = vadd.f32 %v1867, %v2103
        %v2183 = vadd.f32 %v1869, %v2105
        %v2184 = vadd.f32 %v1874, %v2107
        %v2185 = vadd.f32 %v1877, %v2109
        %v2186 = vadd.f32 %v1882, %v2111
        %v2187 = vadd.f32 %v1884, %v2113
        %v2188 = vadd.f32 %v1889, %v2115
        %v2189 = vadd.f32 %v1892, %v2117
        %v2190 = vadd.f32 %v1897, %v2119
        %v2191 = vadd.f32 %v1899, %v2121
        %v2192 = vadd.f32 %v1904, %v2123
        %v2193 = vadd.f32 %v1907, %v2125
        %v2194 = vadd.f32 %v1912, %v2127
        %v2195 = vadd.f32 %v1914, %v2129
        %v2196 = vadd.f32 %v1919, %v2131
        %v2197 = vadd.f32 %v1922, %v2133
        %vm2198 = vcmask 1045504
        %v2199 = vrot.slane %v1807, 2
        %v2200 = vrot.slane %v1809, 2
        %v2201 = vsel %vm2198, %v2199, %v2200
        %v2202 = vrot.slane %v1812, 2
        %v2203 = vsel %vm2198, %v2200, %v2202
        %v2204 = vrot.slane %v1814, 2
        %v2205 = vrot.slane %v1817, 2
        %v2206 = vsel %vm2198, %v2204, %v2205
        %v2207 = vrot.slane %v1819, 2
        %v2208 = vsel %vm2198, %v2205, %v2207
        %v2209 = vrot.slane %v1822, 2
        %v2210 = vrot.slane %v1824, 2
        %v2211 = vsel %vm2198, %v2209, %v2210
        %v2212 = vrot.slane %v1827, 2
        %v2213 = vsel %vm2198, %v2210, %v2212
        %v2214 = vrot.slane %v1829, 2
        %v2215 = vrot.slane %v1832, 2
        %v2216 = vsel %vm2198, %v2214, %v2215
        %v2217 = vrot.slane %v1834, 2
        %v2218 = vsel %vm2198, %v2215, %v2217
        %v2219 = vrot.slane %v1837, 2
        %v2220 = vrot.slane %v1839, 2
        %v2221 = vsel %vm2198, %v2219, %v2220
        %v2222 = vrot.slane %v1842, 2
        %v2223 = vsel %vm2198, %v2220, %v2222
        %v2224 = vrot.slane %v1844, 2
        %v2225 = vrot.slane %v1847, 2
        %v2226 = vsel %vm2198, %v2224, %v2225
        %v2227 = vrot.slane %v1849, 2
        %v2228 = vsel %vm2198, %v2225, %v2227
        %v2229 = vrot.slane %v1852, 2
        %v2230 = vrot.slane %v1854, 2
        %v2231 = vsel %vm2198, %v2229, %v2230
        %v2232 = vrot.slane %v1857, 2
        %v2233 = vsel %vm2198, %v2230, %v2232
        %v2234 = vrot.slane %v1859, 2
        %v2235 = vrot.slane %v1862, 2
        %v2236 = vsel %vm2198, %v2234, %v2235
        %v2237 = vrot.slane %v1864, 2
        %v2238 = vsel %vm2198, %v2235, %v2237
        %v2239 = vrot.slane %v1867, 2
        %v2240 = vrot.slane %v1869, 2
        %v2241 = vsel %vm2198, %v2239, %v2240
        %v2242 = vrot.slane %v1872, 2
        %v2243 = vsel %vm2198, %v2240, %v2242
        %v2244 = vrot.slane %v1874, 2
        %v2245 = vrot.slane %v1877, 2
        %v2246 = vsel %vm2198, %v2244, %v2245
        %v2247 = vrot.slane %v1879, 2
        %v2248 = vsel %vm2198, %v2245, %v2247
        %v2249 = vrot.slane %v1882, 2
        %v2250 = vrot.slane %v1884, 2
        %v2251 = vsel %vm2198, %v2249, %v2250
        %v2252 = vrot.slane %v1887, 2
        %v2253 = vsel %vm2198, %v2250, %v2252
        %v2254 = vrot.slane %v1889, 2
        %v2255 = vrot.slane %v1892, 2
        %v2256 = vsel %vm2198, %v2254, %v2255
        %v2257 = vrot.slane %v1894, 2
        %v2258 = vsel %vm2198, %v2255, %v2257
        %v2259 = vrot.slane %v1897, 2
        %v2260 = vrot.slane %v1899, 2
        %v2261 = vsel %vm2198, %v2259, %v2260
        %v2262 = vrot.slane %v1902, 2
        %v2263 = vsel %vm2198, %v2260, %v2262
        %v2264 = vrot.slane %v1904, 2
        %v2265 = vrot.slane %v1907, 2
        %v2266 = vsel %vm2198, %v2264, %v2265
        %v2267 = vrot.slane %v1909, 2
        %v2268 = vsel %vm2198, %v2265, %v2267
        %v2269 = vrot.slane %v1912, 2
        %v2270 = vrot.slane %v1914, 2
        %v2271 = vsel %vm2198, %v2269, %v2270
        %v2272 = vrot.slane %v1917, 2
        %v2273 = vsel %vm2198, %v2270, %v2272
        %v2274 = vrot.slane %v1919, 2
        %v2275 = vrot.slane %v1922, 2
        %v2276 = vsel %vm2198, %v2274, %v2275
        %v2277 = vrot.slane %v1924, 2
        %v2278 = vsel %vm2198, %v2275, %v2277
        %2279 = vrot.lane.b32.xlu0 %v2201, 120
        %v2280 = vpop.permute.xlu0 %2279
        %2281 = vrot.lane.b32.xlu0 %v2203, 120
        %v2282 = vpop.permute.xlu0 %2281
        %2283 = vrot.lane.b32.xlu0 %v2206, 120
        %v2284 = vpop.permute.xlu0 %2283
        %2285 = vrot.lane.b32.xlu0 %v2208, 120
        %v2286 = vpop.permute.xlu0 %2285
        %2287 = vrot.lane.b32.xlu0 %v2211, 120
        %v2288 = vpop.permute.xlu0 %2287
        %2289 = vrot.lane.b32.xlu0 %v2213, 120
        %v2290 = vpop.permute.xlu0 %2289
        %2291 = vrot.lane.b32.xlu0 %v2216, 120
        %v2292 = vpop.permute.xlu0 %2291
        %2293 = vrot.lane.b32.xlu0 %v2218, 120
        %v2294 = vpop.permute.xlu0 %2293
        %2295 = vrot.lane.b32.xlu0 %v2221, 120
        %v2296 = vpop.permute.xlu0 %2295
        %2297 = vrot.lane.b32.xlu0 %v2223, 120
        %v2298 = vpop.permute.xlu0 %2297
        %2299 = vrot.lane.b32.xlu0 %v2226, 120
        %v2300 = vpop.permute.xlu0 %2299
        %2301 = vrot.lane.b32.xlu0 %v2228, 120
        %v2302 = vpop.permute.xlu0 %2301
        %2303 = vrot.lane.b32.xlu0 %v2231, 120
        %v2304 = vpop.permute.xlu0 %2303
        %2305 = vrot.lane.b32.xlu0 %v2233, 120
        %v2306 = vpop.permute.xlu0 %2305
        %2307 = vrot.lane.b32.xlu0 %v2236, 120
        %v2308 = vpop.permute.xlu0 %2307
        %2309 = vrot.lane.b32.xlu0 %v2238, 120
        %v2310 = vpop.permute.xlu0 %2309
        %2311 = vrot.lane.b32.xlu0 %v2241, 120
        %v2312 = vpop.permute.xlu0 %2311
        %2313 = vrot.lane.b32.xlu0 %v2243, 120
        %v2314 = vpop.permute.xlu0 %2313
        %2315 = vrot.lane.b32.xlu0 %v2246, 120
        %v2316 = vpop.permute.xlu0 %2315
        %2317 = vrot.lane.b32.xlu0 %v2248, 120
        %v2318 = vpop.permute.xlu0 %2317
        %2319 = vrot.lane.b32.xlu0 %v2251, 120
        %v2320 = vpop.permute.xlu0 %2319
        %2321 = vrot.lane.b32.xlu0 %v2253, 120
        %v2322 = vpop.permute.xlu0 %2321
        %2323 = vrot.lane.b32.xlu0 %v2256, 120
        %v2324 = vpop.permute.xlu0 %2323
        %2325 = vrot.lane.b32.xlu0 %v2258, 120
        %v2326 = vpop.permute.xlu0 %2325
        %2327 = vrot.lane.b32.xlu0 %v2261, 120
        %v2328 = vpop.permute.xlu0 %2327
        %2329 = vrot.lane.b32.xlu0 %v2263, 120
        %v2330 = vpop.permute.xlu0 %2329
        %2331 = vrot.lane.b32.xlu0 %v2266, 120
        %v2332 = vpop.permute.xlu0 %2331
        %2333 = vrot.lane.b32.xlu0 %v2268, 120
        %v2334 = vpop.permute.xlu0 %2333
        %2335 = vrot.lane.b32.xlu0 %v2271, 120
        %v2336 = vpop.permute.xlu0 %2335
        %2337 = vrot.lane.b32.xlu0 %v2273, 120
        %v2338 = vpop.permute.xlu0 %2337
        %2339 = vrot.lane.b32.xlu0 %v2276, 120
        %v2340 = vpop.permute.xlu0 %2339
        %2341 = vrot.lane.b32.xlu0 %v2278, 120
        %v2342 = vpop.permute.xlu0 %2341
        %v2375 = vadd.f32 %v2166, %v2280
        %v2376 = vadd.f32 %v2167, %v2282
        %v2377 = vadd.f32 %v2168, %v2284
        %v2378 = vadd.f32 %v2169, %v2286
        %v2379 = vadd.f32 %v2170, %v2288
        %v2380 = vadd.f32 %v2171, %v2290
        %v2381 = vadd.f32 %v2172, %v2292
        %v2382 = vadd.f32 %v2173, %v2294
        %v2383 = vadd.f32 %v2174, %v2296
        %v2384 = vadd.f32 %v2175, %v2298
        %v2385 = vadd.f32 %v2176, %v2300
        %v2386 = vadd.f32 %v2177, %v2302
        %v2387 = vadd.f32 %v2178, %v2304
        %v2388 = vadd.f32 %v2179, %v2306
        %v2389 = vadd.f32 %v2180, %v2308
        %v2390 = vadd.f32 %v2181, %v2310
        %v2391 = vadd.f32 %v2182, %v2312
        %v2392 = vadd.f32 %v2183, %v2314
        %v2393 = vadd.f32 %v2184, %v2316
        %v2394 = vadd.f32 %v2185, %v2318
        %v2395 = vadd.f32 %v2186, %v2320
        %v2396 = vadd.f32 %v2187, %v2322
        %v2397 = vadd.f32 %v2188, %v2324
        %v2398 = vadd.f32 %v2189, %v2326
        %v2399 = vadd.f32 %v2190, %v2328
        %v2400 = vadd.f32 %v2191, %v2330
        %v2401 = vadd.f32 %v2192, %v2332
        %v2402 = vadd.f32 %v2193, %v2334
        %v2403 = vadd.f32 %v2194, %v2336
        %v2404 = vadd.f32 %v2195, %v2338
        %v2405 = vadd.f32 %v2196, %v2340
        %v2406 = vadd.f32 %v2197, %v2342
        %2409 = vrot.lane.b32.xlu0 %v1814, 116
        %v2410 = vpop.permute.xlu0 %2409
        %2411 = vrot.lane.b32.xlu0 %v1817, 116
        %v2412 = vpop.permute.xlu0 %2411
        %2413 = vrot.lane.b32.xlu0 %v1822, 116
        %v2414 = vpop.permute.xlu0 %2413
        %2415 = vrot.lane.b32.xlu0 %v1824, 116
        %v2416 = vpop.permute.xlu0 %2415
        %2417 = vrot.lane.b32.xlu0 %v1829, 116
        %v2418 = vpop.permute.xlu0 %2417
        %2419 = vrot.lane.b32.xlu0 %v1832, 116
        %v2420 = vpop.permute.xlu0 %2419
        %2421 = vrot.lane.b32.xlu0 %v1837, 116
        %v2422 = vpop.permute.xlu0 %2421
        %2423 = vrot.lane.b32.xlu0 %v1839, 116
        %v2424 = vpop.permute.xlu0 %2423
        %2425 = vrot.lane.b32.xlu0 %v1844, 116
        %v2426 = vpop.permute.xlu0 %2425
        %2427 = vrot.lane.b32.xlu0 %v1847, 116
        %v2428 = vpop.permute.xlu0 %2427
        %2429 = vrot.lane.b32.xlu0 %v1852, 116
        %v2430 = vpop.permute.xlu0 %2429
        %2431 = vrot.lane.b32.xlu0 %v1854, 116
        %v2432 = vpop.permute.xlu0 %2431
        %2433 = vrot.lane.b32.xlu0 %v1859, 116
        %v2434 = vpop.permute.xlu0 %2433
        %2435 = vrot.lane.b32.xlu0 %v1862, 116
        %v2436 = vpop.permute.xlu0 %2435
        %2437 = vrot.lane.b32.xlu0 %v1867, 116
        %v2438 = vpop.permute.xlu0 %2437
        %2439 = vrot.lane.b32.xlu0 %v1869, 116
        %v2440 = vpop.permute.xlu0 %2439
        %2441 = vrot.lane.b32.xlu0 %v1874, 116
        %v2442 = vpop.permute.xlu0 %2441
        %2443 = vrot.lane.b32.xlu0 %v1877, 116
        %v2444 = vpop.permute.xlu0 %2443
        %2445 = vrot.lane.b32.xlu0 %v1882, 116
        %v2446 = vpop.permute.xlu0 %2445
        %2447 = vrot.lane.b32.xlu0 %v1884, 116
        %v2448 = vpop.permute.xlu0 %2447
        %2449 = vrot.lane.b32.xlu0 %v1889, 116
        %v2450 = vpop.permute.xlu0 %2449
        %2451 = vrot.lane.b32.xlu0 %v1892, 116
        %v2452 = vpop.permute.xlu0 %2451
        %2453 = vrot.lane.b32.xlu0 %v1897, 116
        %v2454 = vpop.permute.xlu0 %2453
        %2455 = vrot.lane.b32.xlu0 %v1899, 116
        %v2456 = vpop.permute.xlu0 %2455
        %2457 = vrot.lane.b32.xlu0 %v1904, 116
        %v2458 = vpop.permute.xlu0 %2457
        %2459 = vrot.lane.b32.xlu0 %v1907, 116
        %v2460 = vpop.permute.xlu0 %2459
        %2461 = vrot.lane.b32.xlu0 %v1912, 116
        %v2462 = vpop.permute.xlu0 %2461
        %2463 = vrot.lane.b32.xlu0 %v1914, 116
        %v2464 = vpop.permute.xlu0 %2463
        %2465 = vrot.lane.b32.xlu0 %v1919, 116
        %v2466 = vpop.permute.xlu0 %2465
        %2467 = vrot.lane.b32.xlu0 %v1922, 116
        %v2468 = vpop.permute.xlu0 %2467
        %2469 = vrot.lane.b32.xlu0 %v1927, 116
        %v2470 = vpop.permute.xlu0 %2469
        %2471 = vrot.lane.b32.xlu0 %v1929, 116
        %v2472 = vpop.permute.xlu0 %2471
        %v2505 = vadd.f32 %v2375, %v2410
        %v2506 = vadd.f32 %v2376, %v2412
        %v2507 = vadd.f32 %v2377, %v2414
        %v2508 = vadd.f32 %v2378, %v2416
        %v2509 = vadd.f32 %v2379, %v2418
        %v2510 = vadd.f32 %v2380, %v2420
        %v2511 = vadd.f32 %v2381, %v2422
        %v2512 = vadd.f32 %v2382, %v2424
        %v2513 = vadd.f32 %v2383, %v2426
        %v2514 = vadd.f32 %v2384, %v2428
        %v2515 = vadd.f32 %v2385, %v2430
        %v2516 = vadd.f32 %v2386, %v2432
        %v2517 = vadd.f32 %v2387, %v2434
        %v2518 = vadd.f32 %v2388, %v2436
        %v2519 = vadd.f32 %v2389, %v2438
        %v2520 = vadd.f32 %v2390, %v2440
        %v2521 = vadd.f32 %v2391, %v2442
        %v2522 = vadd.f32 %v2392, %v2444
        %v2523 = vadd.f32 %v2393, %v2446
        %v2524 = vadd.f32 %v2394, %v2448
        %v2525 = vadd.f32 %v2395, %v2450
        %v2526 = vadd.f32 %v2396, %v2452
        %v2527 = vadd.f32 %v2397, %v2454
        %v2528 = vadd.f32 %v2398, %v2456
        %v2529 = vadd.f32 %v2399, %v2458
        %v2530 = vadd.f32 %v2400, %v2460
        %v2531 = vadd.f32 %v2401, %v2462
        %v2532 = vadd.f32 %v2402, %v2464
        %v2533 = vadd.f32 %v2403, %v2466
        %v2534 = vadd.f32 %v2404, %v2468
        %v2535 = vadd.f32 %v2405, %v2470
        %v2536 = vadd.f32 %v2406, %v2472
        %v2538 = vrot.slane %v1927, 1
        %v2539 = vrot.slane %v1929, 1
        %v2540 = vsel %vm1989, %v2538, %v2539
        %v2541 = vrot.slane %v1932, 1
        %v2542 = vsel %vm1989, %v2539, %v2541
        %2543 = vrot.lane.b32.xlu0 %v1997, 112
        %v2544 = vpop.permute.xlu0 %2543
        %2545 = vrot.lane.b32.xlu0 %v1999, 112
        %v2546 = vpop.permute.xlu0 %2545
        %2547 = vrot.lane.b32.xlu0 %v2002, 112
        %v2548 = vpop.permute.xlu0 %2547
        %2549 = vrot.lane.b32.xlu0 %v2004, 112
        %v2550 = vpop.permute.xlu0 %2549
        %2551 = vrot.lane.b32.xlu0 %v2007, 112
        %v2552 = vpop.permute.xlu0 %2551
        %2553 = vrot.lane.b32.xlu0 %v2009, 112
        %v2554 = vpop.permute.xlu0 %2553
        %2555 = vrot.lane.b32.xlu0 %v2012, 112
        %v2556 = vpop.permute.xlu0 %2555
        %2557 = vrot.lane.b32.xlu0 %v2014, 112
        %v2558 = vpop.permute.xlu0 %2557
        %2559 = vrot.lane.b32.xlu0 %v2017, 112
        %v2560 = vpop.permute.xlu0 %2559
        %2561 = vrot.lane.b32.xlu0 %v2019, 112
        %v2562 = vpop.permute.xlu0 %2561
        %2563 = vrot.lane.b32.xlu0 %v2022, 112
        %v2564 = vpop.permute.xlu0 %2563
        %2565 = vrot.lane.b32.xlu0 %v2024, 112
        %v2566 = vpop.permute.xlu0 %2565
        %2567 = vrot.lane.b32.xlu0 %v2027, 112
        %v2568 = vpop.permute.xlu0 %2567
        %2569 = vrot.lane.b32.xlu0 %v2029, 112
        %v2570 = vpop.permute.xlu0 %2569
        %2571 = vrot.lane.b32.xlu0 %v2032, 112
        %v2572 = vpop.permute.xlu0 %2571
        %2573 = vrot.lane.b32.xlu0 %v2034, 112
        %v2574 = vpop.permute.xlu0 %2573
        %2575 = vrot.lane.b32.xlu0 %v2037, 112
        %v2576 = vpop.permute.xlu0 %2575
        %2577 = vrot.lane.b32.xlu0 %v2039, 112
        %v2578 = vpop.permute.xlu0 %2577
        %2579 = vrot.lane.b32.xlu0 %v2042, 112
        %v2580 = vpop.permute.xlu0 %2579
        %2581 = vrot.lane.b32.xlu0 %v2044, 112
        %v2582 = vpop.permute.xlu0 %2581
        %2583 = vrot.lane.b32.xlu0 %v2047, 112
        %v2584 = vpop.permute.xlu0 %2583
        %2585 = vrot.lane.b32.xlu0 %v2049, 112
        %v2586 = vpop.permute.xlu0 %2585
        %2587 = vrot.lane.b32.xlu0 %v2052, 112
        %v2588 = vpop.permute.xlu0 %2587
        %2589 = vrot.lane.b32.xlu0 %v2054, 112
        %v2590 = vpop.permute.xlu0 %2589
        %2591 = vrot.lane.b32.xlu0 %v2057, 112
        %v2592 = vpop.permute.xlu0 %2591
        %2593 = vrot.lane.b32.xlu0 %v2059, 112
        %v2594 = vpop.permute.xlu0 %2593
        %2595 = vrot.lane.b32.xlu0 %v2062, 112
        %v2596 = vpop.permute.xlu0 %2595
        %2597 = vrot.lane.b32.xlu0 %v2064, 112
        %v2598 = vpop.permute.xlu0 %2597
        %2599 = vrot.lane.b32.xlu0 %v2067, 112
        %v2600 = vpop.permute.xlu0 %2599
        %2601 = vrot.lane.b32.xlu0 %v2069, 112
        %v2602 = vpop.permute.xlu0 %2601
        %2603 = vrot.lane.b32.xlu0 %v2540, 112
        %v2604 = vpop.permute.xlu0 %2603
        %2605 = vrot.lane.b32.xlu0 %v2542, 112
        %v2606 = vpop.permute.xlu0 %2605
        %v2639 = vadd.f32 %v2505, %v2544
        %v2640 = vadd.f32 %v2506, %v2546
        %v2641 = vadd.f32 %v2507, %v2548
        %v2642 = vadd.f32 %v2508, %v2550
        %v2643 = vadd.f32 %v2509, %v2552
        %v2644 = vadd.f32 %v2510, %v2554
        %v2645 = vadd.f32 %v2511, %v2556
        %v2646 = vadd.f32 %v2512, %v2558
        %v2647 = vadd.f32 %v2513, %v2560
        %v2648 = vadd.f32 %v2514, %v2562
        %v2649 = vadd.f32 %v2515, %v2564
        %v2650 = vadd.f32 %v2516, %v2566
        %v2651 = vadd.f32 %v2517, %v2568
        %v2652 = vadd.f32 %v2518, %v2570
        %v2653 = vadd.f32 %v2519, %v2572
        %v2654 = vadd.f32 %v2520, %v2574
        %v2655 = vadd.f32 %v2521, %v2576
        %v2656 = vadd.f32 %v2522, %v2578
        %v2657 = vadd.f32 %v2523, %v2580
        %v2658 = vadd.f32 %v2524, %v2582
        %v2659 = vadd.f32 %v2525, %v2584
        %v2660 = vadd.f32 %v2526, %v2586
        %v2661 = vadd.f32 %v2527, %v2588
        %v2662 = vadd.f32 %v2528, %v2590
        %v2663 = vadd.f32 %v2529, %v2592
        %v2664 = vadd.f32 %v2530, %v2594
        %v2665 = vadd.f32 %v2531, %v2596
        %v2666 = vadd.f32 %v2532, %v2598
        %v2667 = vadd.f32 %v2533, %v2600
        %v2668 = vadd.f32 %v2534, %v2602
        %v2669 = vadd.f32 %v2535, %v2604
        %v2670 = vadd.f32 %v2536, %v2606
        %v2671 = vrot.slane %v1927, 2
        %v2672 = vrot.slane %v1929, 2
        %v2673 = vsel %vm2198, %v2671, %v2672
        %v2674 = vrot.slane %v1932, 2
        %v2675 = vsel %vm2198, %v2672, %v2674
        %2676 = vrot.lane.b32.xlu0 %v2206, 108
        %v2677 = vpop.permute.xlu0 %2676
        %2678 = vrot.lane.b32.xlu0 %v2208, 108
        %v2679 = vpop.permute.xlu0 %2678
        %2680 = vrot.lane.b32.xlu0 %v2211, 108
        %v2681 = vpop.permute.xlu0 %2680
        %2682 = vrot.lane.b32.xlu0 %v2213, 108
        %v2683 = vpop.permute.xlu0 %2682
        %2684 = vrot.lane.b32.xlu0 %v2216, 108
        %v2685 = vpop.permute.xlu0 %2684
        %2686 = vrot.lane.b32.xlu0 %v2218, 108
        %v2687 = vpop.permute.xlu0 %2686
        %2688 = vrot.lane.b32.xlu0 %v2221, 108
        %v2689 = vpop.permute.xlu0 %2688
        %2690 = vrot.lane.b32.xlu0 %v2223, 108
        %v2691 = vpop.permute.xlu0 %2690
        %2692 = vrot.lane.b32.xlu0 %v2226, 108
        %v2693 = vpop.permute.xlu0 %2692
        %2694 = vrot.lane.b32.xlu0 %v2228, 108
        %v2695 = vpop.permute.xlu0 %2694
        %2696 = vrot.lane.b32.xlu0 %v2231, 108
        %v2697 = vpop.permute.xlu0 %2696
        %2698 = vrot.lane.b32.xlu0 %v2233, 108
        %v2699 = vpop.permute.xlu0 %2698
        %2700 = vrot.lane.b32.xlu0 %v2236, 108
        %v2701 = vpop.permute.xlu0 %2700
        %2702 = vrot.lane.b32.xlu0 %v2238, 108
        %v2703 = vpop.permute.xlu0 %2702
        %2704 = vrot.lane.b32.xlu0 %v2241, 108
        %v2705 = vpop.permute.xlu0 %2704
        %2706 = vrot.lane.b32.xlu0 %v2243, 108
        %v2707 = vpop.permute.xlu0 %2706
        %2708 = vrot.lane.b32.xlu0 %v2246, 108
        %v2709 = vpop.permute.xlu0 %2708
        %2710 = vrot.lane.b32.xlu0 %v2248, 108
        %v2711 = vpop.permute.xlu0 %2710
        %2712 = vrot.lane.b32.xlu0 %v2251, 108
        %v2713 = vpop.permute.xlu0 %2712
        %2714 = vrot.lane.b32.xlu0 %v2253, 108
        %v2715 = vpop.permute.xlu0 %2714
        %2716 = vrot.lane.b32.xlu0 %v2256, 108
        %v2717 = vpop.permute.xlu0 %2716
        %2718 = vrot.lane.b32.xlu0 %v2258, 108
        %v2719 = vpop.permute.xlu0 %2718
        %2720 = vrot.lane.b32.xlu0 %v2261, 108
        %v2721 = vpop.permute.xlu0 %2720
        %2722 = vrot.lane.b32.xlu0 %v2263, 108
        %v2723 = vpop.permute.xlu0 %2722
        %2724 = vrot.lane.b32.xlu0 %v2266, 108
        %v2725 = vpop.permute.xlu0 %2724
        %2726 = vrot.lane.b32.xlu0 %v2268, 108
        %v2727 = vpop.permute.xlu0 %2726
        %2728 = vrot.lane.b32.xlu0 %v2271, 108
        %v2729 = vpop.permute.xlu0 %2728
        %2730 = vrot.lane.b32.xlu0 %v2273, 108
        %v2731 = vpop.permute.xlu0 %2730
        %2732 = vrot.lane.b32.xlu0 %v2276, 108
        %v2733 = vpop.permute.xlu0 %2732
        %2734 = vrot.lane.b32.xlu0 %v2278, 108
        %v2735 = vpop.permute.xlu0 %2734
        %2736 = vrot.lane.b32.xlu0 %v2673, 108
        %v2737 = vpop.permute.xlu0 %2736
        %2738 = vrot.lane.b32.xlu0 %v2675, 108
        %v2739 = vpop.permute.xlu0 %2738
        %v2772 = vadd.f32 %v2639, %v2677
        %v2773 = vadd.f32 %v2640, %v2679
        %v2774 = vadd.f32 %v2641, %v2681
        %v2775 = vadd.f32 %v2642, %v2683
        %v2776 = vadd.f32 %v2643, %v2685
        %v2777 = vadd.f32 %v2644, %v2687
        %v2778 = vadd.f32 %v2645, %v2689
        %v2779 = vadd.f32 %v2646, %v2691
        %v2780 = vadd.f32 %v2647, %v2693
        %v2781 = vadd.f32 %v2648, %v2695
        %v2782 = vadd.f32 %v2649, %v2697
        %v2783 = vadd.f32 %v2650, %v2699
        %v2784 = vadd.f32 %v2651, %v2701
        %v2785 = vadd.f32 %v2652, %v2703
        %v2786 = vadd.f32 %v2653, %v2705
        %v2787 = vadd.f32 %v2654, %v2707
        %v2788 = vadd.f32 %v2655, %v2709
        %v2789 = vadd.f32 %v2656, %v2711
        %v2790 = vadd.f32 %v2657, %v2713
        %v2791 = vadd.f32 %v2658, %v2715
        %v2792 = vadd.f32 %v2659, %v2717
        %v2793 = vadd.f32 %v2660, %v2719
        %v2794 = vadd.f32 %v2661, %v2721
        %v2795 = vadd.f32 %v2662, %v2723
        %v2796 = vadd.f32 %v2663, %v2725
        %v2797 = vadd.f32 %v2664, %v2727
        %v2798 = vadd.f32 %v2665, %v2729
        %v2799 = vadd.f32 %v2666, %v2731
        %v2800 = vadd.f32 %v2667, %v2733
        %v2801 = vadd.f32 %v2668, %v2735
        %v2802 = vadd.f32 %v2669, %v2737
        %v2803 = vadd.f32 %v2670, %v2739
        %2806 = vrot.lane.b32.xlu0 %v1822, 104
        %v2807 = vpop.permute.xlu0 %2806
        %2808 = vrot.lane.b32.xlu0 %v1824, 104
        %v2809 = vpop.permute.xlu0 %2808
        %2810 = vrot.lane.b32.xlu0 %v1829, 104
        %v2811 = vpop.permute.xlu0 %2810
        %2812 = vrot.lane.b32.xlu0 %v1832, 104
        %v2813 = vpop.permute.xlu0 %2812
        %2814 = vrot.lane.b32.xlu0 %v1837, 104
        %v2815 = vpop.permute.xlu0 %2814
        %2816 = vrot.lane.b32.xlu0 %v1839, 104
        %v2817 = vpop.permute.xlu0 %2816
        %2818 = vrot.lane.b32.xlu0 %v1844, 104
        %v2819 = vpop.permute.xlu0 %2818
        %2820 = vrot.lane.b32.xlu0 %v1847, 104
        %v2821 = vpop.permute.xlu0 %2820
        %2822 = vrot.lane.b32.xlu0 %v1852, 104
        %v2823 = vpop.permute.xlu0 %2822
        %2824 = vrot.lane.b32.xlu0 %v1854, 104
        %v2825 = vpop.permute.xlu0 %2824
        %2826 = vrot.lane.b32.xlu0 %v1859, 104
        %v2827 = vpop.permute.xlu0 %2826
        %2828 = vrot.lane.b32.xlu0 %v1862, 104
        %v2829 = vpop.permute.xlu0 %2828
        %2830 = vrot.lane.b32.xlu0 %v1867, 104
        %v2831 = vpop.permute.xlu0 %2830
        %2832 = vrot.lane.b32.xlu0 %v1869, 104
        %v2833 = vpop.permute.xlu0 %2832
        %2834 = vrot.lane.b32.xlu0 %v1874, 104
        %v2835 = vpop.permute.xlu0 %2834
        %2836 = vrot.lane.b32.xlu0 %v1877, 104
        %v2837 = vpop.permute.xlu0 %2836
        %2838 = vrot.lane.b32.xlu0 %v1882, 104
        %v2839 = vpop.permute.xlu0 %2838
        %2840 = vrot.lane.b32.xlu0 %v1884, 104
        %v2841 = vpop.permute.xlu0 %2840
        %2842 = vrot.lane.b32.xlu0 %v1889, 104
        %v2843 = vpop.permute.xlu0 %2842
        %2844 = vrot.lane.b32.xlu0 %v1892, 104
        %v2845 = vpop.permute.xlu0 %2844
        %2846 = vrot.lane.b32.xlu0 %v1897, 104
        %v2847 = vpop.permute.xlu0 %2846
        %2848 = vrot.lane.b32.xlu0 %v1899, 104
        %v2849 = vpop.permute.xlu0 %2848
        %2850 = vrot.lane.b32.xlu0 %v1904, 104
        %v2851 = vpop.permute.xlu0 %2850
        %2852 = vrot.lane.b32.xlu0 %v1907, 104
        %v2853 = vpop.permute.xlu0 %2852
        %2854 = vrot.lane.b32.xlu0 %v1912, 104
        %v2855 = vpop.permute.xlu0 %2854
        %2856 = vrot.lane.b32.xlu0 %v1914, 104
        %v2857 = vpop.permute.xlu0 %2856
        %2858 = vrot.lane.b32.xlu0 %v1919, 104
        %v2859 = vpop.permute.xlu0 %2858
        %2860 = vrot.lane.b32.xlu0 %v1922, 104
        %v2861 = vpop.permute.xlu0 %2860
        %2862 = vrot.lane.b32.xlu0 %v1927, 104
        %v2863 = vpop.permute.xlu0 %2862
        %2864 = vrot.lane.b32.xlu0 %v1929, 104
        %v2865 = vpop.permute.xlu0 %2864
        %2866 = vrot.lane.b32.xlu0 %v1934, 104
        %v2867 = vpop.permute.xlu0 %2866
        %2868 = vrot.lane.b32.xlu0 %v1937, 104
        %v2869 = vpop.permute.xlu0 %2868
        %v2902 = vadd.f32 %v2772, %v2807
        %v2903 = vadd.f32 %v2773, %v2809
        %v2904 = vadd.f32 %v2774, %v2811
        %v2905 = vadd.f32 %v2775, %v2813
        %v2906 = vadd.f32 %v2776, %v2815
        %v2907 = vadd.f32 %v2777, %v2817
        %v2908 = vadd.f32 %v2778, %v2819
        %v2909 = vadd.f32 %v2779, %v2821
        %v2910 = vadd.f32 %v2780, %v2823
        %v2911 = vadd.f32 %v2781, %v2825
        %v2912 = vadd.f32 %v2782, %v2827
        %v2913 = vadd.f32 %v2783, %v2829
        %v2914 = vadd.f32 %v2784, %v2831
        %v2915 = vadd.f32 %v2785, %v2833
        %v2916 = vadd.f32 %v2786, %v2835
        %v2917 = vadd.f32 %v2787, %v2837
        %v2918 = vadd.f32 %v2788, %v2839
        %v2919 = vadd.f32 %v2789, %v2841
        %v2920 = vadd.f32 %v2790, %v2843
        %v2921 = vadd.f32 %v2791, %v2845
        %v2922 = vadd.f32 %v2792, %v2847
        %v2923 = vadd.f32 %v2793, %v2849
        %v2924 = vadd.f32 %v2794, %v2851
        %v2925 = vadd.f32 %v2795, %v2853
        %v2926 = vadd.f32 %v2796, %v2855
        %v2927 = vadd.f32 %v2797, %v2857
        %v2928 = vadd.f32 %v2798, %v2859
        %v2929 = vadd.f32 %v2799, %v2861
        %v2930 = vadd.f32 %v2800, %v2863
        %v2931 = vadd.f32 %v2801, %v2865
        %v2932 = vadd.f32 %v2802, %v2867
        %v2933 = vadd.f32 %v2803, %v2869
        %v2935 = vrot.slane %v1934, 1
        %v2936 = vrot.slane %v1937, 1
        %v2937 = vsel %vm1989, %v2935, %v2936
        %v2938 = vrot.slane %v1939, 1
        %v2939 = vsel %vm1989, %v2936, %v2938
        %2940 = vrot.lane.b32.xlu0 %v2002, 100
        %v2941 = vpop.permute.xlu0 %2940
        %2942 = vrot.lane.b32.xlu0 %v2004, 100
        %v2943 = vpop.permute.xlu0 %2942
        %2944 = vrot.lane.b32.xlu0 %v2007, 100
        %v2945 = vpop.permute.xlu0 %2944
        %2946 = vrot.lane.b32.xlu0 %v2009, 100
        %v2947 = vpop.permute.xlu0 %2946
        %2948 = vrot.lane.b32.xlu0 %v2012, 100
        %v2949 = vpop.permute.xlu0 %2948
        %2950 = vrot.lane.b32.xlu0 %v2014, 100
        %v2951 = vpop.permute.xlu0 %2950
        %2952 = vrot.lane.b32.xlu0 %v2017, 100
        %v2953 = vpop.permute.xlu0 %2952
        %2954 = vrot.lane.b32.xlu0 %v2019, 100
        %v2955 = vpop.permute.xlu0 %2954
        %2956 = vrot.lane.b32.xlu0 %v2022, 100
        %v2957 = vpop.permute.xlu0 %2956
        %2958 = vrot.lane.b32.xlu0 %v2024, 100
        %v2959 = vpop.permute.xlu0 %2958
        %2960 = vrot.lane.b32.xlu0 %v2027, 100
        %v2961 = vpop.permute.xlu0 %2960
        %2962 = vrot.lane.b32.xlu0 %v2029, 100
        %v2963 = vpop.permute.xlu0 %2962
        %2964 = vrot.lane.b32.xlu0 %v2032, 100
        %v2965 = vpop.permute.xlu0 %2964
        %2966 = vrot.lane.b32.xlu0 %v2034, 100
        %v2967 = vpop.permute.xlu0 %2966
        %2968 = vrot.lane.b32.xlu0 %v2037, 100
        %v2969 = vpop.permute.xlu0 %2968
        %2970 = vrot.lane.b32.xlu0 %v2039, 100
        %v2971 = vpop.permute.xlu0 %2970
        %2972 = vrot.lane.b32.xlu0 %v2042, 100
        %v2973 = vpop.permute.xlu0 %2972
        %2974 = vrot.lane.b32.xlu0 %v2044, 100
        %v2975 = vpop.permute.xlu0 %2974
        %2976 = vrot.lane.b32.xlu0 %v2047, 100
        %v2977 = vpop.permute.xlu0 %2976
        %2978 = vrot.lane.b32.xlu0 %v2049, 100
        %v2979 = vpop.permute.xlu0 %2978
        %2980 = vrot.lane.b32.xlu0 %v2052, 100
        %v2981 = vpop.permute.xlu0 %2980
        %2982 = vrot.lane.b32.xlu0 %v2054, 100
        %v2983 = vpop.permute.xlu0 %2982
        %2984 = vrot.lane.b32.xlu0 %v2057, 100
        %v2985 = vpop.permute.xlu0 %2984
        %2986 = vrot.lane.b32.xlu0 %v2059, 100
        %v2987 = vpop.permute.xlu0 %2986
        %2988 = vrot.lane.b32.xlu0 %v2062, 100
        %v2989 = vpop.permute.xlu0 %2988
        %2990 = vrot.lane.b32.xlu0 %v2064, 100
        %v2991 = vpop.permute.xlu0 %2990
        %2992 = vrot.lane.b32.xlu0 %v2067, 100
        %v2993 = vpop.permute.xlu0 %2992
        %2994 = vrot.lane.b32.xlu0 %v2069, 100
        %v2995 = vpop.permute.xlu0 %2994
        %2996 = vrot.lane.b32.xlu0 %v2540, 100
        %v2997 = vpop.permute.xlu0 %2996
        %2998 = vrot.lane.b32.xlu0 %v2542, 100
        %v2999 = vpop.permute.xlu0 %2998
        %3000 = vrot.lane.b32.xlu0 %v2937, 100
        %v3001 = vpop.permute.xlu0 %3000
        %3002 = vrot.lane.b32.xlu0 %v2939, 100
        %v3003 = vpop.permute.xlu0 %3002
        %v3036 = vadd.f32 %v2902, %v2941
        %v3037 = vadd.f32 %v2903, %v2943
        %v3038 = vadd.f32 %v2904, %v2945
        %v3039 = vadd.f32 %v2905, %v2947
        %v3040 = vadd.f32 %v2906, %v2949
        %v3041 = vadd.f32 %v2907, %v2951
        %v3042 = vadd.f32 %v2908, %v2953
        %v3043 = vadd.f32 %v2909, %v2955
        %v3044 = vadd.f32 %v2910, %v2957
        %v3045 = vadd.f32 %v2911, %v2959
        %v3046 = vadd.f32 %v2912, %v2961
        %v3047 = vadd.f32 %v2913, %v2963
        %v3048 = vadd.f32 %v2914, %v2965
        %v3049 = vadd.f32 %v2915, %v2967
        %v3050 = vadd.f32 %v2916, %v2969
        %v3051 = vadd.f32 %v2917, %v2971
        %v3052 = vadd.f32 %v2918, %v2973
        %v3053 = vadd.f32 %v2919, %v2975
        %v3054 = vadd.f32 %v2920, %v2977
        %v3055 = vadd.f32 %v2921, %v2979
        %v3056 = vadd.f32 %v2922, %v2981
        %v3057 = vadd.f32 %v2923, %v2983
        %v3058 = vadd.f32 %v2924, %v2985
        %v3059 = vadd.f32 %v2925, %v2987
        %v3060 = vadd.f32 %v2926, %v2989
        %v3061 = vadd.f32 %v2927, %v2991
        %v3062 = vadd.f32 %v2928, %v2993
        %v3063 = vadd.f32 %v2929, %v2995
        %v3064 = vadd.f32 %v2930, %v2997
        %v3065 = vadd.f32 %v2931, %v2999
        %v3066 = vadd.f32 %v2932, %v3001
        %v3067 = vadd.f32 %v2933, %v3003
        %v3068 = vrot.slane %v1934, 2
        %v3069 = vrot.slane %v1937, 2
        %v3070 = vsel %vm2198, %v3068, %v3069
        %v3071 = vrot.slane %v1939, 2
        %v3072 = vsel %vm2198, %v3069, %v3071
        %3073 = vrot.lane.b32.xlu0 %v2211, 96
        %v3074 = vpop.permute.xlu0 %3073
        %3075 = vrot.lane.b32.xlu0 %v2213, 96
        %v3076 = vpop.permute.xlu0 %3075
        %3077 = vrot.lane.b32.xlu0 %v2216, 96
        %v3078 = vpop.permute.xlu0 %3077
        %3079 = vrot.lane.b32.xlu0 %v2218, 96
        %v3080 = vpop.permute.xlu0 %3079
        %3081 = vrot.lane.b32.xlu0 %v2221, 96
        %v3082 = vpop.permute.xlu0 %3081
        %3083 = vrot.lane.b32.xlu0 %v2223, 96
        %v3084 = vpop.permute.xlu0 %3083
        %3085 = vrot.lane.b32.xlu0 %v2226, 96
        %v3086 = vpop.permute.xlu0 %3085
        %3087 = vrot.lane.b32.xlu0 %v2228, 96
        %v3088 = vpop.permute.xlu0 %3087
        %3089 = vrot.lane.b32.xlu0 %v2231, 96
        %v3090 = vpop.permute.xlu0 %3089
        %3091 = vrot.lane.b32.xlu0 %v2233, 96
        %v3092 = vpop.permute.xlu0 %3091
        %3093 = vrot.lane.b32.xlu0 %v2236, 96
        %v3094 = vpop.permute.xlu0 %3093
        %3095 = vrot.lane.b32.xlu0 %v2238, 96
        %v3096 = vpop.permute.xlu0 %3095
        %3097 = vrot.lane.b32.xlu0 %v2241, 96
        %v3098 = vpop.permute.xlu0 %3097
        %3099 = vrot.lane.b32.xlu0 %v2243, 96
        %v3100 = vpop.permute.xlu0 %3099
        %3101 = vrot.lane.b32.xlu0 %v2246, 96
        %v3102 = vpop.permute.xlu0 %3101
        %3103 = vrot.lane.b32.xlu0 %v2248, 96
        %v3104 = vpop.permute.xlu0 %3103
        %3105 = vrot.lane.b32.xlu0 %v2251, 96
        %v3106 = vpop.permute.xlu0 %3105
        %3107 = vrot.lane.b32.xlu0 %v2253, 96
        %v3108 = vpop.permute.xlu0 %3107
        %3109 = vrot.lane.b32.xlu0 %v2256, 96
        %v3110 = vpop.permute.xlu0 %3109
        %3111 = vrot.lane.b32.xlu0 %v2258, 96
        %v3112 = vpop.permute.xlu0 %3111
        %3113 = vrot.lane.b32.xlu0 %v2261, 96
        %v3114 = vpop.permute.xlu0 %3113
        %3115 = vrot.lane.b32.xlu0 %v2263, 96
        %v3116 = vpop.permute.xlu0 %3115
        %3117 = vrot.lane.b32.xlu0 %v2266, 96
        %v3118 = vpop.permute.xlu0 %3117
        %3119 = vrot.lane.b32.xlu0 %v2268, 96
        %v3120 = vpop.permute.xlu0 %3119
        %3121 = vrot.lane.b32.xlu0 %v2271, 96
        %v3122 = vpop.permute.xlu0 %3121
        %3123 = vrot.lane.b32.xlu0 %v2273, 96
        %v3124 = vpop.permute.xlu0 %3123
        %3125 = vrot.lane.b32.xlu0 %v2276, 96
        %v3126 = vpop.permute.xlu0 %3125
        %3127 = vrot.lane.b32.xlu0 %v2278, 96
        %v3128 = vpop.permute.xlu0 %3127
        %3129 = vrot.lane.b32.xlu0 %v2673, 96
        %v3130 = vpop.permute.xlu0 %3129
        %3131 = vrot.lane.b32.xlu0 %v2675, 96
        %v3132 = vpop.permute.xlu0 %3131
        %3133 = vrot.lane.b32.xlu0 %v3070, 96
        %v3134 = vpop.permute.xlu0 %3133
        %3135 = vrot.lane.b32.xlu0 %v3072, 96
        %v3136 = vpop.permute.xlu0 %3135
        %v3169 = vadd.f32 %v3036, %v3074
        %v3170 = vadd.f32 %v3037, %v3076
        %v3171 = vadd.f32 %v3038, %v3078
        %v3172 = vadd.f32 %v3039, %v3080
        %v3173 = vadd.f32 %v3040, %v3082
        %v3174 = vadd.f32 %v3041, %v3084
        %v3175 = vadd.f32 %v3042, %v3086
        %v3176 = vadd.f32 %v3043, %v3088
        %v3177 = vadd.f32 %v3044, %v3090
        %v3178 = vadd.f32 %v3045, %v3092
        %v3179 = vadd.f32 %v3046, %v3094
        %v3180 = vadd.f32 %v3047, %v3096
        %v3181 = vadd.f32 %v3048, %v3098
        %v3182 = vadd.f32 %v3049, %v3100
        %v3183 = vadd.f32 %v3050, %v3102
        %v3184 = vadd.f32 %v3051, %v3104
        %v3185 = vadd.f32 %v3052, %v3106
        %v3186 = vadd.f32 %v3053, %v3108
        %v3187 = vadd.f32 %v3054, %v3110
        %v3188 = vadd.f32 %v3055, %v3112
        %v3189 = vadd.f32 %v3056, %v3114
        %v3190 = vadd.f32 %v3057, %v3116
        %v3191 = vadd.f32 %v3058, %v3118
        %v3192 = vadd.f32 %v3059, %v3120
        %v3193 = vadd.f32 %v3060, %v3122
        %v3194 = vadd.f32 %v3061, %v3124
        %v3195 = vadd.f32 %v3062, %v3126
        %v3196 = vadd.f32 %v3063, %v3128
        %v3197 = vadd.f32 %v3064, %v3130
        %v3198 = vadd.f32 %v3065, %v3132
        %v3199 = vadd.f32 %v3066, %v3134
        %v3200 = vadd.f32 %v3067, %v3136
        %v3201 = vpack.c.bf16 %v3169, %v3169
        %v3202 = vpack.c.bf16 %v3170, %v3170
        %v3203 = vpack.c.bf16 %v3171, %v3171
        %v3204 = vpack.c.bf16 %v3172, %v3172
        %v3205 = vpack.c.bf16 %v3173, %v3173
        %v3206 = vpack.c.bf16 %v3174, %v3174
        %v3207 = vpack.c.bf16 %v3175, %v3175
        %v3208 = vpack.c.bf16 %v3176, %v3176
        %v3209 = vpack.c.bf16 %v3177, %v3177
        %v3210 = vpack.c.bf16 %v3178, %v3178
        %v3211 = vpack.c.bf16 %v3179, %v3179
        %v3212 = vpack.c.bf16 %v3180, %v3180
        %v3213 = vpack.c.bf16 %v3181, %v3181
        %v3214 = vpack.c.bf16 %v3182, %v3182
        %v3215 = vpack.c.bf16 %v3183, %v3183
        %v3216 = vpack.c.bf16 %v3184, %v3184
        %v3217 = vpack.c.bf16 %v3185, %v3185
        %v3218 = vpack.c.bf16 %v3186, %v3186
        %v3219 = vpack.c.bf16 %v3187, %v3187
        %v3220 = vpack.c.bf16 %v3188, %v3188
        %v3221 = vpack.c.bf16 %v3189, %v3189
        %v3222 = vpack.c.bf16 %v3190, %v3190
        %v3223 = vpack.c.bf16 %v3191, %v3191
        %v3224 = vpack.c.bf16 %v3192, %v3192
        %v3225 = vpack.c.bf16 %v3193, %v3193
        %v3226 = vpack.c.bf16 %v3194, %v3194
        %v3227 = vpack.c.bf16 %v3195, %v3195
        %v3228 = vpack.c.bf16 %v3196, %v3196
        %v3229 = vpack.c.bf16 %v3197, %v3197
        %v3230 = vpack.c.bf16 %v3198, %v3198
        %v3231 = vpack.c.bf16 %v3199, %v3199
        %v3232 = vpack.c.bf16 %v3200, %v3200
        %3265 = vrot.lane.b32.xlu0 %v3201, 4
        %v3266 = vpop.permute.xlu0 %3265
        %3267 = vrot.lane.b32.xlu0 %v3202, 4
        %v3268 = vpop.permute.xlu0 %3267
        %3269 = vrot.lane.b32.xlu0 %v3203, 4
        %v3270 = vpop.permute.xlu0 %3269
        %3271 = vrot.lane.b32.xlu0 %v3204, 4
        %v3272 = vpop.permute.xlu0 %3271
        %3273 = vrot.lane.b32.xlu0 %v3205, 4
        %v3274 = vpop.permute.xlu0 %3273
        %3275 = vrot.lane.b32.xlu0 %v3206, 4
        %v3276 = vpop.permute.xlu0 %3275
        %3277 = vrot.lane.b32.xlu0 %v3207, 4
        %v3278 = vpop.permute.xlu0 %3277
        %3279 = vrot.lane.b32.xlu0 %v3208, 4
        %v3280 = vpop.permute.xlu0 %3279
        %3281 = vrot.lane.b32.xlu0 %v3209, 4
        %v3282 = vpop.permute.xlu0 %3281
        %3283 = vrot.lane.b32.xlu0 %v3210, 4
        %v3284 = vpop.permute.xlu0 %3283
        %3285 = vrot.lane.b32.xlu0 %v3211, 4
        %v3286 = vpop.permute.xlu0 %3285
        %3287 = vrot.lane.b32.xlu0 %v3212, 4
        %v3288 = vpop.permute.xlu0 %3287
        %3289 = vrot.lane.b32.xlu0 %v3213, 4
        %v3290 = vpop.permute.xlu0 %3289
        %3291 = vrot.lane.b32.xlu0 %v3214, 4
        %v3292 = vpop.permute.xlu0 %3291
        %3293 = vrot.lane.b32.xlu0 %v3215, 4
        %v3294 = vpop.permute.xlu0 %3293
        %3295 = vrot.lane.b32.xlu0 %v3216, 4
        %v3296 = vpop.permute.xlu0 %3295
        %3297 = vrot.lane.b32.xlu0 %v3217, 4
        %v3298 = vpop.permute.xlu0 %3297
        %3299 = vrot.lane.b32.xlu0 %v3218, 4
        %v3300 = vpop.permute.xlu0 %3299
        %3301 = vrot.lane.b32.xlu0 %v3219, 4
        %v3302 = vpop.permute.xlu0 %3301
        %3303 = vrot.lane.b32.xlu0 %v3220, 4
        %v3304 = vpop.permute.xlu0 %3303
        %3305 = vrot.lane.b32.xlu0 %v3221, 4
        %v3306 = vpop.permute.xlu0 %3305
        %3307 = vrot.lane.b32.xlu0 %v3222, 4
        %v3308 = vpop.permute.xlu0 %3307
        %3309 = vrot.lane.b32.xlu0 %v3223, 4
        %v3310 = vpop.permute.xlu0 %3309
        %3311 = vrot.lane.b32.xlu0 %v3224, 4
        %v3312 = vpop.permute.xlu0 %3311
        %3313 = vrot.lane.b32.xlu0 %v3225, 4
        %v3314 = vpop.permute.xlu0 %3313
        %3315 = vrot.lane.b32.xlu0 %v3226, 4
        %v3316 = vpop.permute.xlu0 %3315
        %3317 = vrot.lane.b32.xlu0 %v3227, 4
        %v3318 = vpop.permute.xlu0 %3317
        %3319 = vrot.lane.b32.xlu0 %v3228, 4
        %v3320 = vpop.permute.xlu0 %3319
        %3321 = vrot.lane.b32.xlu0 %v3229, 4
        %v3322 = vpop.permute.xlu0 %3321
        %3323 = vrot.lane.b32.xlu0 %v3230, 4
        %v3324 = vpop.permute.xlu0 %3323
        %3325 = vrot.lane.b32.xlu0 %v3231, 4
        %v3326 = vpop.permute.xlu0 %3325
        %3327 = vrot.lane.b32.xlu0 %v3232, 4
        %v3328 = vpop.permute.xlu0 %3327
        %vm3361 = vcmask 60448
        %3362 = vst.msk [vmem:[%s271] sm:$0xf] %vm3361, %v3266
        %3363 = vst.msk [vmem:[%s271 + $0x4] sm:$0xf] %vm3361, %v3268
        %3364 = vst.msk [vmem:[%s271 + $0x8] sm:$0xf] %vm3361, %v3270
        %3365 = vst.msk [vmem:[%s271 + $0xc] sm:$0xf] %vm3361, %v3272
        %3366 = vst.msk [vmem:[%s271 + $0x10] sm:$0xf] %vm3361, %v3274
        %3367 = vst.msk [vmem:[%s271 + $0x14] sm:$0xf] %vm3361, %v3276
        %3368 = vst.msk [vmem:[%s271 + $0x18] sm:$0xf] %vm3361, %v3278
        %3369 = vst.msk [vmem:[%s271 + $0x1c] sm:$0xf] %vm3361, %v3280
        %3370 = vst.msk [vmem:[%s271 + $0x20] sm:$0xf] %vm3361, %v3282
        %3371 = vst.msk [vmem:[%s271 + $0x24] sm:$0xf] %vm3361, %v3284
        %3372 = vst.msk [vmem:[%s271 + $0x28] sm:$0xf] %vm3361, %v3286
        %3373 = vst.msk [vmem:[%s271 + $0x2c] sm:$0xf] %vm3361, %v3288
        %3374 = vst.msk [vmem:[%s271 + $0x30] sm:$0xf] %vm3361, %v3290
        %3375 = vst.msk [vmem:[%s271 + $0x34] sm:$0xf] %vm3361, %v3292
        %3376 = vst.msk [vmem:[%s271 + $0x38] sm:$0xf] %vm3361, %v3294
        %3377 = vst.msk [vmem:[%s271 + $0x3c] sm:$0xf] %vm3361, %v3296
        %3378 = vst.msk [vmem:[%s271 + $0x40] sm:$0xf] %vm3361, %v3298
        %3379 = vst.msk [vmem:[%s271 + $0x44] sm:$0xf] %vm3361, %v3300
        %3380 = vst.msk [vmem:[%s271 + $0x48] sm:$0xf] %vm3361, %v3302
        %3381 = vst.msk [vmem:[%s271 + $0x4c] sm:$0xf] %vm3361, %v3304
        %3382 = vst.msk [vmem:[%s271 + $0x50] sm:$0xf] %vm3361, %v3306
        %3383 = vst.msk [vmem:[%s271 + $0x54] sm:$0xf] %vm3361, %v3308
        %3384 = vst.msk [vmem:[%s271 + $0x58] sm:$0xf] %vm3361, %v3310
        %3385 = vst.msk [vmem:[%s271 + $0x5c] sm:$0xf] %vm3361, %v3312
        %3386 = vst.msk [vmem:[%s271 + $0x60] sm:$0xf] %vm3361, %v3314
        %3387 = vst.msk [vmem:[%s271 + $0x64] sm:$0xf] %vm3361, %v3316
        %3388 = vst.msk [vmem:[%s271 + $0x68] sm:$0xf] %vm3361, %v3318
        %3389 = vst.msk [vmem:[%s271 + $0x6c] sm:$0xf] %vm3361, %v3320
        %3390 = vst.msk [vmem:[%s271 + $0x70] sm:$0xf] %vm3361, %v3322
        %3391 = vst.msk [vmem:[%s271 + $0x74] sm:$0xf] %vm3361, %v3324
        %3392 = vst.msk [vmem:[%s271 + $0x78] sm:$0xf] %vm3361, %v3326
        %3393 = vst.msk [vmem:[%s271 + $0x7c] sm:$0xf] %vm3361, %v3328
        %v3394 = vld [vmem:[%s271] sm:$0xf]
        %v3395 = vld [vmem:[%s271 + $0x4] sm:$0xf]
        %v3396 = vld [vmem:[%s271 + $0x8] sm:$0xf]
        %v3397 = vld [vmem:[%s271 + $0xc] sm:$0xf]
        %v3398 = vld [vmem:[%s271 + $0x10] sm:$0xf]
        %v3399 = vld [vmem:[%s271 + $0x14] sm:$0xf]
        %v3400 = vld [vmem:[%s271 + $0x18] sm:$0xf]
        %v3401 = vld [vmem:[%s271 + $0x1c] sm:$0xf]
        %v3402 = vld [vmem:[%s271 + $0x20] sm:$0xf]
        %v3403 = vld [vmem:[%s271 + $0x24] sm:$0xf]
        %v3404 = vld [vmem:[%s271 + $0x28] sm:$0xf]
        %v3405 = vld [vmem:[%s271 + $0x2c] sm:$0xf]
        %v3406 = vld [vmem:[%s271 + $0x30] sm:$0xf]
        %v3407 = vld [vmem:[%s271 + $0x34] sm:$0xf]
        %v3408 = vld [vmem:[%s271 + $0x38] sm:$0xf]
        %v3409 = vld [vmem:[%s271 + $0x3c] sm:$0xf]
        %v3410 = vld [vmem:[%s271 + $0x40] sm:$0xf]
        %v3411 = vld [vmem:[%s271 + $0x44] sm:$0xf]
        %v3412 = vld [vmem:[%s271 + $0x48] sm:$0xf]
        %v3413 = vld [vmem:[%s271 + $0x4c] sm:$0xf]
        %v3414 = vld [vmem:[%s271 + $0x50] sm:$0xf]
        %v3415 = vld [vmem:[%s271 + $0x54] sm:$0xf]
        %v3416 = vld [vmem:[%s271 + $0x58] sm:$0xf]
        %v3417 = vld [vmem:[%s271 + $0x5c] sm:$0xf]
        %v3418 = vld [vmem:[%s271 + $0x60] sm:$0xf]
        %v3419 = vld [vmem:[%s271 + $0x64] sm:$0xf]
        %v3420 = vld [vmem:[%s271 + $0x68] sm:$0xf]
        %v3421 = vld [vmem:[%s271 + $0x6c] sm:$0xf]
        %v3422 = vld [vmem:[%s271 + $0x70] sm:$0xf]
        %v3423 = vld [vmem:[%s271 + $0x74] sm:$0xf]
        %v3424 = vld [vmem:[%s271 + $0x78] sm:$0xf]
        %v3425 = vld [vmem:[%s271 + $0x7c] sm:$0xf]
        %s3426 = scalar_lea.vmem %s1, 1
        %v3427 = vld [vmem:[%s3426] sm:$0x1]
        %v3428 = vunpack.c.l.bf16 %v3394
        %v3429 = vunpack.c.l.bf16 %v3395
        %v3430 = vunpack.c.l.bf16 %v3396
        %v3431 = vunpack.c.l.bf16 %v3397
        %v3432 = vunpack.c.l.bf16 %v3398
        %v3433 = vunpack.c.l.bf16 %v3399
        %v3434 = vunpack.c.l.bf16 %v3400
        %v3435 = vunpack.c.l.bf16 %v3401
        %v3436 = vunpack.c.l.bf16 %v3402
        %v3437 = vunpack.c.l.bf16 %v3403
        %v3438 = vunpack.c.l.bf16 %v3404
        %v3439 = vunpack.c.l.bf16 %v3405
        %v3440 = vunpack.c.l.bf16 %v3406
        %v3441 = vunpack.c.l.bf16 %v3407
        %v3442 = vunpack.c.l.bf16 %v3408
        %v3443 = vunpack.c.l.bf16 %v3409
        %v3444 = vunpack.c.l.bf16 %v3410
        %v3445 = vunpack.c.l.bf16 %v3411
        %v3446 = vunpack.c.l.bf16 %v3412
        %v3447 = vunpack.c.l.bf16 %v3413
        %v3448 = vunpack.c.l.bf16 %v3414
        %v3449 = vunpack.c.l.bf16 %v3415
        %v3450 = vunpack.c.l.bf16 %v3416
        %v3451 = vunpack.c.l.bf16 %v3417
        %v3452 = vunpack.c.l.bf16 %v3418
        %v3453 = vunpack.c.l.bf16 %v3419
        %v3454 = vunpack.c.l.bf16 %v3420
        %v3455 = vunpack.c.l.bf16 %v3421
        %v3456 = vunpack.c.l.bf16 %v3422
        %v3457 = vunpack.c.l.bf16 %v3423
        %v3458 = vunpack.c.l.bf16 %v3424
        %v3459 = vunpack.c.l.bf16 %v3425
        %v3461 = vperm.slane %v3427, 0
        %v3463 = vmul.f32 %v3428, %v3461
        %v3464 = vmul.f32 %v3429, %v3461
        %v3465 = vmul.f32 %v3430, %v3461
        %v3466 = vmul.f32 %v3431, %v3461
        %v3467 = vmul.f32 %v3432, %v3461
        %v3468 = vmul.f32 %v3433, %v3461
        %v3469 = vmul.f32 %v3434, %v3461
        %v3470 = vmul.f32 %v3435, %v3461
        %v3471 = vmul.f32 %v3436, %v3461
        %v3472 = vmul.f32 %v3437, %v3461
        %v3473 = vmul.f32 %v3438, %v3461
        %v3474 = vmul.f32 %v3439, %v3461
        %v3475 = vmul.f32 %v3440, %v3461
        %v3476 = vmul.f32 %v3441, %v3461
        %v3477 = vmul.f32 %v3442, %v3461
        %v3478 = vmul.f32 %v3443, %v3461
        %v3479 = vmul.f32 %v3444, %v3461
        %v3480 = vmul.f32 %v3445, %v3461
        %v3481 = vmul.f32 %v3446, %v3461
        %v3482 = vmul.f32 %v3447, %v3461
        %v3483 = vmul.f32 %v3448, %v3461
        %v3484 = vmul.f32 %v3449, %v3461
        %v3485 = vmul.f32 %v3450, %v3461
        %v3486 = vmul.f32 %v3451, %v3461
        %v3487 = vmul.f32 %v3452, %v3461
        %v3488 = vmul.f32 %v3453, %v3461
        %v3489 = vmul.f32 %v3454, %v3461
        %v3490 = vmul.f32 %v3455, %v3461
        %v3491 = vmul.f32 %v3456, %v3461
        %v3492 = vmul.f32 %v3457, %v3461
        %v3493 = vmul.f32 %v3458, %v3461
        %v3494 = vmul.f32 %v3459, %v3461
        %s3495 = scalar_lea.vmem %s2, 1
        %v3496 = vld [vmem:[%s3495] sm:$0x1]
        %v3498 = vperm.slane %v3496, 0
        %v3500 = vadd.f32 %v3463, %v3498
        %v3501 = vadd.f32 %v3464, %v3498
        %v3502 = vadd.f32 %v3465, %v3498
        %v3503 = vadd.f32 %v3466, %v3498
        %v3504 = vadd.f32 %v3467, %v3498
        %v3505 = vadd.f32 %v3468, %v3498
        %v3506 = vadd.f32 %v3469, %v3498
        %v3507 = vadd.f32 %v3470, %v3498
        %v3508 = vadd.f32 %v3471, %v3498
        %v3509 = vadd.f32 %v3472, %v3498
        %v3510 = vadd.f32 %v3473, %v3498
        %v3511 = vadd.f32 %v3474, %v3498
        %v3512 = vadd.f32 %v3475, %v3498
        %v3513 = vadd.f32 %v3476, %v3498
        %v3514 = vadd.f32 %v3477, %v3498
        %v3515 = vadd.f32 %v3478, %v3498
        %v3516 = vadd.f32 %v3479, %v3498
        %v3517 = vadd.f32 %v3480, %v3498
        %v3518 = vadd.f32 %v3481, %v3498
        %v3519 = vadd.f32 %v3482, %v3498
        %v3520 = vadd.f32 %v3483, %v3498
        %v3521 = vadd.f32 %v3484, %v3498
        %v3522 = vadd.f32 %v3485, %v3498
        %v3523 = vadd.f32 %v3486, %v3498
        %v3524 = vadd.f32 %v3487, %v3498
        %v3525 = vadd.f32 %v3488, %v3498
        %v3526 = vadd.f32 %v3489, %v3498
        %v3527 = vadd.f32 %v3490, %v3498
        %v3528 = vadd.f32 %v3491, %v3498
        %v3529 = vadd.f32 %v3492, %v3498
        %v3530 = vadd.f32 %v3493, %v3498
        %v3531 = vadd.f32 %v3494, %v3498
        %v3532 = vmax.f32 %v3500, 0.0
        %v3533 = vmax.f32 %v3501, 0.0
        %v3534 = vmax.f32 %v3502, 0.0
        %v3535 = vmax.f32 %v3503, 0.0
        %v3536 = vmax.f32 %v3504, 0.0
        %v3537 = vmax.f32 %v3505, 0.0
        %v3538 = vmax.f32 %v3506, 0.0
        %v3539 = vmax.f32 %v3507, 0.0
        %v3540 = vmax.f32 %v3508, 0.0
        %v3541 = vmax.f32 %v3509, 0.0
        %v3542 = vmax.f32 %v3510, 0.0
        %v3543 = vmax.f32 %v3511, 0.0
        %v3544 = vmax.f32 %v3512, 0.0
        %v3545 = vmax.f32 %v3513, 0.0
        %v3546 = vmax.f32 %v3514, 0.0
        %v3547 = vmax.f32 %v3515, 0.0
        %v3548 = vmax.f32 %v3516, 0.0
        %v3549 = vmax.f32 %v3517, 0.0
        %v3550 = vmax.f32 %v3518, 0.0
        %v3551 = vmax.f32 %v3519, 0.0
        %v3552 = vmax.f32 %v3520, 0.0
        %v3553 = vmax.f32 %v3521, 0.0
        %v3554 = vmax.f32 %v3522, 0.0
        %v3555 = vmax.f32 %v3523, 0.0
        %v3556 = vmax.f32 %v3524, 0.0
        %v3557 = vmax.f32 %v3525, 0.0
        %v3558 = vmax.f32 %v3526, 0.0
        %v3559 = vmax.f32 %v3527, 0.0
        %v3560 = vmax.f32 %v3528, 0.0
        %v3561 = vmax.f32 %v3529, 0.0
        %v3562 = vmax.f32 %v3530, 0.0
        %v3563 = vmax.f32 %v3531, 0.0
        %v3564 = vpack.c.bf16 %v3532, %v3532
        %v3565 = vpack.c.bf16 %v3533, %v3533
        %v3566 = vpack.c.bf16 %v3534, %v3534
        %v3567 = vpack.c.bf16 %v3535, %v3535
        %v3568 = vpack.c.bf16 %v3536, %v3536
        %v3569 = vpack.c.bf16 %v3537, %v3537
        %v3570 = vpack.c.bf16 %v3538, %v3538
        %v3571 = vpack.c.bf16 %v3539, %v3539
        %v3572 = vpack.c.bf16 %v3540, %v3540
        %v3573 = vpack.c.bf16 %v3541, %v3541
        %v3574 = vpack.c.bf16 %v3542, %v3542
        %v3575 = vpack.c.bf16 %v3543, %v3543
        %v3576 = vpack.c.bf16 %v3544, %v3544
        %v3577 = vpack.c.bf16 %v3545, %v3545
        %v3578 = vpack.c.bf16 %v3546, %v3546
        %v3579 = vpack.c.bf16 %v3547, %v3547
        %v3580 = vpack.c.bf16 %v3548, %v3548
        %v3581 = vpack.c.bf16 %v3549, %v3549
        %v3582 = vpack.c.bf16 %v3550, %v3550
        %v3583 = vpack.c.bf16 %v3551, %v3551
        %v3584 = vpack.c.bf16 %v3552, %v3552
        %v3585 = vpack.c.bf16 %v3553, %v3553
        %v3586 = vpack.c.bf16 %v3554, %v3554
        %v3587 = vpack.c.bf16 %v3555, %v3555
        %v3588 = vpack.c.bf16 %v3556, %v3556
        %v3589 = vpack.c.bf16 %v3557, %v3557
        %v3590 = vpack.c.bf16 %v3558, %v3558
        %v3591 = vpack.c.bf16 %v3559, %v3559
        %v3592 = vpack.c.bf16 %v3560, %v3560
        %v3593 = vpack.c.bf16 %v3561, %v3561
        %v3594 = vpack.c.bf16 %v3562, %v3562
        %v3595 = vpack.c.bf16 %v3563, %v3563
        %s3596 = scalar_lea.vmem %s3, 64
        %v3597 = vld [vmem:[%s3596] sm:$0xf]
        %v3598 = vld [vmem:[%s3596 + $0x4] sm:$0xf]
        %v3599 = vld [vmem:[%s3596 + $0x8] sm:$0xf]
        %v3600 = vld [vmem:[%s3596 + $0xc] sm:$0xf]
        %v3601 = vld [vmem:[%s3596 + $0x10] sm:$0xf]
        %v3602 = vld [vmem:[%s3596 + $0x14] sm:$0xf]
        %v3603 = vld [vmem:[%s3596 + $0x18] sm:$0xf]
        %v3604 = vld [vmem:[%s3596 + $0x1c] sm:$0xf]
        %v3605 = vld [vmem:[%s3596 + $0x20] sm:$0xf]
        %v3606 = vld [vmem:[%s3596 + $0x24] sm:$0xf]
        %v3607 = vld [vmem:[%s3596 + $0x28] sm:$0xf]
        %v3608 = vld [vmem:[%s3596 + $0x2c] sm:$0xf]
        %v3609 = vld [vmem:[%s3596 + $0x30] sm:$0xf]
        %v3610 = vld [vmem:[%s3596 + $0x34] sm:$0xf]
        %v3611 = vld [vmem:[%s3596 + $0x38] sm:$0xf]
        %v3612 = vld [vmem:[%s3596 + $0x3c] sm:$0xf]
        %v3645 = vunpack.c.l.b16 %v3564
        %v3646 = vunpack.c.l.b16 %v3565
        %v3647 = vunpack.c.l.b16 %v3566
        %v3648 = vunpack.c.l.b16 %v3567
        %v3649 = vunpack.c.l.b16 %v3568
        %v3650 = vunpack.c.l.b16 %v3569
        %v3651 = vunpack.c.l.b16 %v3570
        %v3652 = vunpack.c.l.b16 %v3571
        %v3653 = vunpack.c.l.b16 %v3572
        %v3654 = vunpack.c.l.b16 %v3573
        %v3655 = vunpack.c.l.b16 %v3574
        %v3656 = vunpack.c.l.b16 %v3575
        %v3657 = vunpack.c.l.b16 %v3576
        %v3658 = vunpack.c.l.b16 %v3577
        %v3659 = vunpack.c.l.b16 %v3578
        %v3660 = vunpack.c.l.b16 %v3579
        %v3661 = vunpack.c.l.b16 %v3580
        %v3662 = vunpack.c.l.b16 %v3581
        %v3663 = vunpack.c.l.b16 %v3582
        %v3664 = vunpack.c.l.b16 %v3583
        %v3665 = vunpack.c.l.b16 %v3584
        %v3666 = vunpack.c.l.b16 %v3585
        %v3667 = vunpack.c.l.b16 %v3586
        %v3668 = vunpack.c.l.b16 %v3587
        %v3669 = vunpack.c.l.b16 %v3588
        %v3670 = vunpack.c.l.b16 %v3589
        %v3671 = vunpack.c.l.b16 %v3590
        %v3672 = vunpack.c.l.b16 %v3591
        %v3673 = vunpack.c.l.b16 %v3592
        %v3674 = vunpack.c.l.b16 %v3593
        %v3675 = vunpack.c.l.b16 %v3594
        %v3676 = vunpack.c.l.b16 %v3595
        %v3677 = vpack.c.b16 %v3646, %v3645
        %v3678 = vpack.c.b16 %v3648, %v3647
        %v3679 = vpack.c.b16 %v3650, %v3649
        %v3680 = vpack.c.b16 %v3652, %v3651
        %v3681 = vpack.c.b16 %v3654, %v3653
        %v3682 = vpack.c.b16 %v3656, %v3655
        %v3683 = vpack.c.b16 %v3658, %v3657
        %v3684 = vpack.c.b16 %v3660, %v3659
        %v3685 = vpack.c.b16 %v3662, %v3661
        %v3686 = vpack.c.b16 %v3664, %v3663
        %v3687 = vpack.c.b16 %v3666, %v3665
        %v3688 = vpack.c.b16 %v3668, %v3667
        %v3689 = vpack.c.b16 %v3670, %v3669
        %v3690 = vpack.c.b16 %v3672, %v3671
        %v3691 = vpack.c.b16 %v3674, %v3673
        %v3692 = vpack.c.b16 %v3676, %v3675
        %v3725 = vunpack.c.l.b16 %v3597
        %v3726 = vunpack.c.l.b16 %v3598
        %v3727 = vunpack.c.l.b16 %v3599
        %v3728 = vunpack.c.l.b16 %v3600
        %v3729 = vunpack.c.l.b16 %v3601
        %v3730 = vunpack.c.l.b16 %v3602
        %v3731 = vunpack.c.l.b16 %v3603
        %v3732 = vunpack.c.l.b16 %v3604
        %v3733 = vunpack.c.l.b16 %v3605
        %v3734 = vunpack.c.l.b16 %v3606
        %v3735 = vunpack.c.l.b16 %v3607
        %v3736 = vunpack.c.l.b16 %v3608
        %v3737 = vunpack.c.l.b16 %v3609
        %v3738 = vunpack.c.l.b16 %v3610
        %v3739 = vunpack.c.l.b16 %v3611
        %v3740 = vunpack.c.l.b16 %v3612
        %v3741 = vpack.c.b16 %v3726, %v3725
        %v3742 = vpack.c.b16 %v3728, %v3727
        %v3743 = vpack.c.b16 %v3730, %v3729
        %v3744 = vpack.c.b16 %v3732, %v3731
        %v3745 = vpack.c.b16 %v3734, %v3733
        %v3746 = vpack.c.b16 %v3736, %v3735
        %v3747 = vpack.c.b16 %v3738, %v3737
        %v3748 = vpack.c.b16 %v3740, %v3739
        %3757 = vmatpush.bf16.msra.mxu0 %v3748
        %3758 = vmatpush.bf16.msra.mxu0 %v3747
        %3759 = vmatpush.bf16.msra.mxu0 %v3746
        %3760 = vmatpush.bf16.msra.mxu0 %v3745
        %3761 = vmatpush.bf16.msra.mxu0 %v3744
        %3762 = vmatpush.bf16.msra.mxu0 %v3743
        %3763 = vmatpush.bf16.msra.mxu0 %v3742
        %3764 = vmatpush.bf16.msra.mxu0 %v3741
        %3765 = vmatmul.bf16.gmra.mxu0 %v3677
        %v3766 = vpop.f32.mrf.mxu0
        %v3767 = vadd.f32 0.0, %v3766
        %v3768 = vpop.f32.mrf.mxu0
        %v3769 = vadd.f32 0.0, %v3768
        %3770 = vmatmul.bf16.gmra.mxu0 %v3678
        %v3771 = vpop.f32.mrf.mxu0
        %v3772 = vadd.f32 0.0, %v3771
        %v3773 = vpop.f32.mrf.mxu0
        %v3774 = vadd.f32 0.0, %v3773
        %3775 = vmatmul.bf16.gmra.mxu0 %v3679
        %v3776 = vpop.f32.mrf.mxu0
        %v3777 = vadd.f32 0.0, %v3776
        %v3778 = vpop.f32.mrf.mxu0
        %v3779 = vadd.f32 0.0, %v3778
        %3780 = vmatmul.bf16.gmra.mxu0 %v3680
        %v3781 = vpop.f32.mrf.mxu0
        %v3782 = vadd.f32 0.0, %v3781
        %v3783 = vpop.f32.mrf.mxu0
        %v3784 = vadd.f32 0.0, %v3783
        %3785 = vmatmul.bf16.gmra.mxu0 %v3681
        %v3786 = vpop.f32.mrf.mxu0
        %v3787 = vadd.f32 0.0, %v3786
        %v3788 = vpop.f32.mrf.mxu0
        %v3789 = vadd.f32 0.0, %v3788
        %3790 = vmatmul.bf16.gmra.mxu0 %v3682
        %v3791 = vpop.f32.mrf.mxu0
        %v3792 = vadd.f32 0.0, %v3791
        %v3793 = vpop.f32.mrf.mxu0
        %v3794 = vadd.f32 0.0, %v3793
        %3795 = vmatmul.bf16.gmra.mxu0 %v3683
        %v3796 = vpop.f32.mrf.mxu0
        %v3797 = vadd.f32 0.0, %v3796
        %v3798 = vpop.f32.mrf.mxu0
        %v3799 = vadd.f32 0.0, %v3798
        %3800 = vmatmul.bf16.gmra.mxu0 %v3684
        %v3801 = vpop.f32.mrf.mxu0
        %v3802 = vadd.f32 0.0, %v3801
        %v3803 = vpop.f32.mrf.mxu0
        %v3804 = vadd.f32 0.0, %v3803
        %3805 = vmatmul.bf16.gmra.mxu0 %v3685
        %v3806 = vpop.f32.mrf.mxu0
        %v3807 = vadd.f32 0.0, %v3806
        %v3808 = vpop.f32.mrf.mxu0
        %v3809 = vadd.f32 0.0, %v3808
        %3810 = vmatmul.bf16.gmra.mxu0 %v3686
        %v3811 = vpop.f32.mrf.mxu0
        %v3812 = vadd.f32 0.0, %v3811
        %v3813 = vpop.f32.mrf.mxu0
        %v3814 = vadd.f32 0.0, %v3813
        %3815 = vmatmul.bf16.gmra.mxu0 %v3687
        %v3816 = vpop.f32.mrf.mxu0
        %v3817 = vadd.f32 0.0, %v3816
        %v3818 = vpop.f32.mrf.mxu0
        %v3819 = vadd.f32 0.0, %v3818
        %3820 = vmatmul.bf16.gmra.mxu0 %v3688
        %v3821 = vpop.f32.mrf.mxu0
        %v3822 = vadd.f32 0.0, %v3821
        %v3823 = vpop.f32.mrf.mxu0
        %v3824 = vadd.f32 0.0, %v3823
        %3825 = vmatmul.bf16.gmra.mxu0 %v3689
        %v3826 = vpop.f32.mrf.mxu0
        %v3827 = vadd.f32 0.0, %v3826
        %v3828 = vpop.f32.mrf.mxu0
        %v3829 = vadd.f32 0.0, %v3828
        %3830 = vmatmul.bf16.gmra.mxu0 %v3690
        %v3831 = vpop.f32.mrf.mxu0
        %v3832 = vadd.f32 0.0, %v3831
        %v3833 = vpop.f32.mrf.mxu0
        %v3834 = vadd.f32 0.0, %v3833
        %3835 = vmatmul.bf16.gmra.mxu0 %v3691
        %v3836 = vpop.f32.mrf.mxu0
        %v3837 = vadd.f32 0.0, %v3836
        %v3838 = vpop.f32.mrf.mxu0
        %v3839 = vadd.f32 0.0, %v3838
        %3840 = vmatmul.bf16.gmra.mxu0 %v3692
        %v3841 = vpop.f32.mrf.mxu0
        %v3842 = vadd.f32 0.0, %v3841
        %v3843 = vpop.f32.mrf.mxu0
        %v3844 = vadd.f32 0.0, %v3843
        %3845 = vdwg.mxu0
        %s3846 = scalar_lea.vmem %s4, 1
        %v3847 = vld [vmem:[%s3846] sm:$0x1]
        %v3849 = vperm.slane %v3847, 0
        %v3851 = vmul.f32 %v3767, %v3849
        %v3852 = vmul.f32 %v3769, %v3849
        %v3853 = vmul.f32 %v3772, %v3849
        %v3854 = vmul.f32 %v3774, %v3849
        %v3855 = vmul.f32 %v3777, %v3849
        %v3856 = vmul.f32 %v3779, %v3849
        %v3857 = vmul.f32 %v3782, %v3849
        %v3858 = vmul.f32 %v3784, %v3849
        %v3859 = vmul.f32 %v3787, %v3849
        %v3860 = vmul.f32 %v3789, %v3849
        %v3861 = vmul.f32 %v3792, %v3849
        %v3862 = vmul.f32 %v3794, %v3849
        %v3863 = vmul.f32 %v3797, %v3849
        %v3864 = vmul.f32 %v3799, %v3849
        %v3865 = vmul.f32 %v3802, %v3849
        %v3866 = vmul.f32 %v3804, %v3849
        %v3867 = vmul.f32 %v3807, %v3849
        %v3868 = vmul.f32 %v3809, %v3849
        %v3869 = vmul.f32 %v3812, %v3849
        %v3870 = vmul.f32 %v3814, %v3849
        %v3871 = vmul.f32 %v3817, %v3849
        %v3872 = vmul.f32 %v3819, %v3849
        %v3873 = vmul.f32 %v3822, %v3849
        %v3874 = vmul.f32 %v3824, %v3849
        %v3875 = vmul.f32 %v3827, %v3849
        %v3876 = vmul.f32 %v3829, %v3849
        %v3877 = vmul.f32 %v3832, %v3849
        %v3878 = vmul.f32 %v3834, %v3849
        %v3879 = vmul.f32 %v3837, %v3849
        %v3880 = vmul.f32 %v3839, %v3849
        %v3881 = vmul.f32 %v3842, %v3849
        %v3882 = vmul.f32 %v3844, %v3849
        %s3883 = scalar_lea.vmem %s5, 1
        %v3884 = vld [vmem:[%s3883] sm:$0x1]
        %v3886 = vperm.slane %v3884, 0
        %v3888 = vadd.f32 %v3851, %v3886
        %v3889 = vadd.f32 %v3852, %v3886
        %v3890 = vadd.f32 %v3853, %v3886
        %v3891 = vadd.f32 %v3854, %v3886
        %v3892 = vadd.f32 %v3855, %v3886
        %v3893 = vadd.f32 %v3856, %v3886
        %v3894 = vadd.f32 %v3857, %v3886
        %v3895 = vadd.f32 %v3858, %v3886
        %v3896 = vadd.f32 %v3859, %v3886
        %v3897 = vadd.f32 %v3860, %v3886
        %v3898 = vadd.f32 %v3861, %v3886
        %v3899 = vadd.f32 %v3862, %v3886
        %v3900 = vadd.f32 %v3863, %v3886
        %v3901 = vadd.f32 %v3864, %v3886
        %v3902 = vadd.f32 %v3865, %v3886
        %v3903 = vadd.f32 %v3866, %v3886
        %v3904 = vadd.f32 %v3867, %v3886
        %v3905 = vadd.f32 %v3868, %v3886
        %v3906 = vadd.f32 %v3869, %v3886
        %v3907 = vadd.f32 %v3870, %v3886
        %v3908 = vadd.f32 %v3871, %v3886
        %v3909 = vadd.f32 %v3872, %v3886
        %v3910 = vadd.f32 %v3873, %v3886
        %v3911 = vadd.f32 %v3874, %v3886
        %v3912 = vadd.f32 %v3875, %v3886
        %v3913 = vadd.f32 %v3876, %v3886
        %v3914 = vadd.f32 %v3877, %v3886
        %v3915 = vadd.f32 %v3878, %v3886
        %v3916 = vadd.f32 %v3879, %v3886
        %v3917 = vadd.f32 %v3880, %v3886
        %v3918 = vadd.f32 %v3881, %v3886
        %v3919 = vadd.f32 %v3882, %v3886
        %v3920 = vmax.f32 %v3888, 0.0
        %v3921 = vmax.f32 %v3889, 0.0
        %v3922 = vmax.f32 %v3890, 0.0
        %v3923 = vmax.f32 %v3891, 0.0
        %v3924 = vmax.f32 %v3892, 0.0
        %v3925 = vmax.f32 %v3893, 0.0
        %v3926 = vmax.f32 %v3894, 0.0
        %v3927 = vmax.f32 %v3895, 0.0
        %v3928 = vmax.f32 %v3896, 0.0
        %v3929 = vmax.f32 %v3897, 0.0
        %v3930 = vmax.f32 %v3898, 0.0
        %v3931 = vmax.f32 %v3899, 0.0
        %v3932 = vmax.f32 %v3900, 0.0
        %v3933 = vmax.f32 %v3901, 0.0
        %v3934 = vmax.f32 %v3902, 0.0
        %v3935 = vmax.f32 %v3903, 0.0
        %v3936 = vmax.f32 %v3904, 0.0
        %v3937 = vmax.f32 %v3905, 0.0
        %v3938 = vmax.f32 %v3906, 0.0
        %v3939 = vmax.f32 %v3907, 0.0
        %v3940 = vmax.f32 %v3908, 0.0
        %v3941 = vmax.f32 %v3909, 0.0
        %v3942 = vmax.f32 %v3910, 0.0
        %v3943 = vmax.f32 %v3911, 0.0
        %v3944 = vmax.f32 %v3912, 0.0
        %v3945 = vmax.f32 %v3913, 0.0
        %v3946 = vmax.f32 %v3914, 0.0
        %v3947 = vmax.f32 %v3915, 0.0
        %v3948 = vmax.f32 %v3916, 0.0
        %v3949 = vmax.f32 %v3917, 0.0
        %v3950 = vmax.f32 %v3918, 0.0
        %v3951 = vmax.f32 %v3919, 0.0
        %v3952 = vpack.c.bf16 %v3920, %v3920
        %v3953 = vpack.c.bf16 %v3921, %v3921
        %v3954 = vpack.c.bf16 %v3922, %v3922
        %v3955 = vpack.c.bf16 %v3923, %v3923
        %v3956 = vpack.c.bf16 %v3924, %v3924
        %v3957 = vpack.c.bf16 %v3925, %v3925
        %v3958 = vpack.c.bf16 %v3926, %v3926
        %v3959 = vpack.c.bf16 %v3927, %v3927
        %v3960 = vpack.c.bf16 %v3928, %v3928
        %v3961 = vpack.c.bf16 %v3929, %v3929
        %v3962 = vpack.c.bf16 %v3930, %v3930
        %v3963 = vpack.c.bf16 %v3931, %v3931
        %v3964 = vpack.c.bf16 %v3932, %v3932
        %v3965 = vpack.c.bf16 %v3933, %v3933
        %v3966 = vpack.c.bf16 %v3934, %v3934
        %v3967 = vpack.c.bf16 %v3935, %v3935
        %v3968 = vpack.c.bf16 %v3936, %v3936
        %v3969 = vpack.c.bf16 %v3937, %v3937
        %v3970 = vpack.c.bf16 %v3938, %v3938
        %v3971 = vpack.c.bf16 %v3939, %v3939
        %v3972 = vpack.c.bf16 %v3940, %v3940
        %v3973 = vpack.c.bf16 %v3941, %v3941
        %v3974 = vpack.c.bf16 %v3942, %v3942
        %v3975 = vpack.c.bf16 %v3943, %v3943
        %v3976 = vpack.c.bf16 %v3944, %v3944
        %v3977 = vpack.c.bf16 %v3945, %v3945
        %v3978 = vpack.c.bf16 %v3946, %v3946
        %v3979 = vpack.c.bf16 %v3947, %v3947
        %v3980 = vpack.c.bf16 %v3948, %v3948
        %v3981 = vpack.c.bf16 %v3949, %v3949
        %v3982 = vpack.c.bf16 %v3950, %v3950
        %v3983 = vpack.c.bf16 %v3951, %v3951
        %v3985 = vshrl.u32 %v3952, 16
        %v3987 = vrot.slane %v3985, 7
        %v3988 = vshll.u32 %v3952, 16
        %v3990 = vor.u32 %v3987, %v3988
        %v3991 = vrot.slane %v3987, 4
        %v3993 = vshrl.u32 %v3953, 16
        %v3995 = vrot.slane %v3993, 7
        %v3996 = vshll.u32 %v3953, 16
        %v3998 = vor.u32 %v3995, %v3996
        %v3999 = vsel %vm1083, %v3991, %v3998
        %v4000 = vrot.slane %v3995, 4
        %v4002 = vshrl.u32 %v3954, 16
        %v4004 = vrot.slane %v4002, 7
        %v4005 = vshll.u32 %v3954, 16
        %v4007 = vor.u32 %v4004, %v4005
        %v4008 = vrot.slane %v4004, 4
        %v4010 = vshrl.u32 %v3955, 16
        %v4012 = vrot.slane %v4010, 7
        %v4013 = vshll.u32 %v3955, 16
        %v4015 = vor.u32 %v4012, %v4013
        %v4016 = vsel %vm1083, %v4008, %v4015
        %v4017 = vrot.slane %v4012, 4
        %v4019 = vshrl.u32 %v3956, 16
        %v4021 = vrot.slane %v4019, 7
        %v4022 = vshll.u32 %v3956, 16
        %v4024 = vor.u32 %v4021, %v4022
        %v4025 = vrot.slane %v4021, 4
        %v4027 = vshrl.u32 %v3957, 16
        %v4029 = vrot.slane %v4027, 7
        %v4030 = vshll.u32 %v3957, 16
        %v4032 = vor.u32 %v4029, %v4030
        %v4033 = vsel %vm1083, %v4025, %v4032
        %v4034 = vrot.slane %v4029, 4
        %v4036 = vshrl.u32 %v3958, 16
        %v4038 = vrot.slane %v4036, 7
        %v4039 = vshll.u32 %v3958, 16
        %v4041 = vor.u32 %v4038, %v4039
        %v4042 = vrot.slane %v4038, 4
        %v4044 = vshrl.u32 %v3959, 16
        %v4046 = vrot.slane %v4044, 7
        %v4047 = vshll.u32 %v3959, 16
        %v4049 = vor.u32 %v4046, %v4047
        %v4050 = vsel %vm1083, %v4042, %v4049
        %v4051 = vrot.slane %v4046, 4
        %v4053 = vshrl.u32 %v3960, 16
        %v4055 = vrot.slane %v4053, 7
        %v4056 = vshll.u32 %v3960, 16
        %v4058 = vor.u32 %v4055, %v4056
        %v4059 = vrot.slane %v4055, 4
        %v4061 = vshrl.u32 %v3961, 16
        %v4063 = vrot.slane %v4061, 7
        %v4064 = vshll.u32 %v3961, 16
        %v4066 = vor.u32 %v4063, %v4064
        %v4067 = vsel %vm1083, %v4059, %v4066
        %v4068 = vrot.slane %v4063, 4
        %v4070 = vshrl.u32 %v3962, 16
        %v4072 = vrot.slane %v4070, 7
        %v4073 = vshll.u32 %v3962, 16
        %v4075 = vor.u32 %v4072, %v4073
        %v4076 = vrot.slane %v4072, 4
        %v4078 = vshrl.u32 %v3963, 16
        %v4080 = vrot.slane %v4078, 7
        %v4081 = vshll.u32 %v3963, 16
        %v4083 = vor.u32 %v4080, %v4081
        %v4084 = vsel %vm1083, %v4076, %v4083
        %v4085 = vrot.slane %v4080, 4
        %v4087 = vshrl.u32 %v3964, 16
        %v4089 = vrot.slane %v4087, 7
        %v4090 = vshll.u32 %v3964, 16
        %v4092 = vor.u32 %v4089, %v4090
        %v4093 = vrot.slane %v4089, 4
        %v4095 = vshrl.u32 %v3965, 16
        %v4097 = vrot.slane %v4095, 7
        %v4098 = vshll.u32 %v3965, 16
        %v4100 = vor.u32 %v4097, %v4098
        %v4101 = vsel %vm1083, %v4093, %v4100
        %v4102 = vrot.slane %v4097, 4
        %v4104 = vshrl.u32 %v3966, 16
        %v4106 = vrot.slane %v4104, 7
        %v4107 = vshll.u32 %v3966, 16
        %v4109 = vor.u32 %v4106, %v4107
        %v4110 = vrot.slane %v4106, 4
        %v4112 = vshrl.u32 %v3967, 16
        %v4114 = vrot.slane %v4112, 7
        %v4115 = vshll.u32 %v3967, 16
        %v4117 = vor.u32 %v4114, %v4115
        %v4118 = vsel %vm1083, %v4110, %v4117
        %v4119 = vrot.slane %v4114, 4
        %v4121 = vshrl.u32 %v3968, 16
        %v4123 = vrot.slane %v4121, 7
        %v4124 = vshll.u32 %v3968, 16
        %v4126 = vor.u32 %v4123, %v4124
        %v4127 = vrot.slane %v4123, 4
        %v4129 = vshrl.u32 %v3969, 16
        %v4131 = vrot.slane %v4129, 7
        %v4132 = vshll.u32 %v3969, 16
        %v4134 = vor.u32 %v4131, %v4132
        %v4135 = vsel %vm1083, %v4127, %v4134
        %v4136 = vrot.slane %v4131, 4
        %v4138 = vshrl.u32 %v3970, 16
        %v4140 = vrot.slane %v4138, 7
        %v4141 = vshll.u32 %v3970, 16
        %v4143 = vor.u32 %v4140, %v4141
        %v4144 = vrot.slane %v4140, 4
        %v4146 = vshrl.u32 %v3971, 16
        %v4148 = vrot.slane %v4146, 7
        %v4149 = vshll.u32 %v3971, 16
        %v4151 = vor.u32 %v4148, %v4149
        %v4152 = vsel %vm1083, %v4144, %v4151
        %v4153 = vrot.slane %v4148, 4
        %v4155 = vshrl.u32 %v3972, 16
        %v4157 = vrot.slane %v4155, 7
        %v4158 = vshll.u32 %v3972, 16
        %v4160 = vor.u32 %v4157, %v4158
        %v4161 = vrot.slane %v4157, 4
        %v4163 = vshrl.u32 %v3973, 16
        %v4165 = vrot.slane %v4163, 7
        %v4166 = vshll.u32 %v3973, 16
        %v4168 = vor.u32 %v4165, %v4166
        %v4169 = vsel %vm1083, %v4161, %v4168
        %v4170 = vrot.slane %v4165, 4
        %v4172 = vshrl.u32 %v3974, 16
        %v4174 = vrot.slane %v4172, 7
        %v4175 = vshll.u32 %v3974, 16
        %v4177 = vor.u32 %v4174, %v4175
        %v4178 = vrot.slane %v4174, 4
        %v4180 = vshrl.u32 %v3975, 16
        %v4182 = vrot.slane %v4180, 7
        %v4183 = vshll.u32 %v3975, 16
        %v4185 = vor.u32 %v4182, %v4183
        %v4186 = vsel %vm1083, %v4178, %v4185
        %v4187 = vrot.slane %v4182, 4
        %v4189 = vshrl.u32 %v3976, 16
        %v4191 = vrot.slane %v4189, 7
        %v4192 = vshll.u32 %v3976, 16
        %v4194 = vor.u32 %v4191, %v4192
        %v4195 = vrot.slane %v4191, 4
        %v4197 = vshrl.u32 %v3977, 16
        %v4199 = vrot.slane %v4197, 7
        %v4200 = vshll.u32 %v3977, 16
        %v4202 = vor.u32 %v4199, %v4200
        %v4203 = vsel %vm1083, %v4195, %v4202
        %v4204 = vrot.slane %v4199, 4
        %v4206 = vshrl.u32 %v3978, 16
        %v4208 = vrot.slane %v4206, 7
        %v4209 = vshll.u32 %v3978, 16
        %v4211 = vor.u32 %v4208, %v4209
        %v4212 = vrot.slane %v4208, 4
        %v4214 = vshrl.u32 %v3979, 16
        %v4216 = vrot.slane %v4214, 7
        %v4217 = vshll.u32 %v3979, 16
        %v4219 = vor.u32 %v4216, %v4217
        %v4220 = vsel %vm1083, %v4212, %v4219
        %v4221 = vrot.slane %v4216, 4
        %v4223 = vshrl.u32 %v3980, 16
        %v4225 = vrot.slane %v4223, 7
        %v4226 = vshll.u32 %v3980, 16
        %v4228 = vor.u32 %v4225, %v4226
        %v4229 = vrot.slane %v4225, 4
        %v4231 = vshrl.u32 %v3981, 16
        %v4233 = vrot.slane %v4231, 7
        %v4234 = vshll.u32 %v3981, 16
        %v4236 = vor.u32 %v4233, %v4234
        %v4237 = vsel %vm1083, %v4229, %v4236
        %v4238 = vrot.slane %v4233, 4
        %v4240 = vshrl.u32 %v3982, 16
        %v4242 = vrot.slane %v4240, 7
        %v4243 = vshll.u32 %v3982, 16
        %v4245 = vor.u32 %v4242, %v4243
        %v4246 = vrot.slane %v4242, 4
        %v4248 = vshrl.u32 %v3983, 16
        %v4250 = vrot.slane %v4248, 7
        %v4251 = vshll.u32 %v3983, 16
        %v4253 = vor.u32 %v4250, %v4251
        %v4254 = vsel %vm1083, %v4246, %v4253
        %v4255 = vrot.slane %v4250, 4
        %v4304 = vld [vmem:[%s1404] sm:$0xf]
        %v4305 = vsel %vm442, %v3990, %v4304
        %4306 = vst [vmem:[%s1404] sm:$0xf] %v4305
        %4307 = vst [vmem:[%s1404 + $0x4] sm:$0xf] %v3999
        %v4308 = vld [vmem:[%s1404 + $0x8] sm:$0x1]
        %v4309 = vsel %vm385, %v4000, %v4308
        %4310 = vst [vmem:[%s1404 + $0x8] sm:$0x1] %v4309
        %v4311 = vld [vmem:[%s1404 + $0xc] sm:$0xf]
        %v4312 = vsel %vm442, %v4007, %v4311
        %4313 = vst [vmem:[%s1404 + $0xc] sm:$0xf] %v4312
        %4314 = vst [vmem:[%s1404 + $0x10] sm:$0xf] %v4016
        %v4315 = vld [vmem:[%s1404 + $0x14] sm:$0x1]
        %v4316 = vsel %vm385, %v4017, %v4315
        %4317 = vst [vmem:[%s1404 + $0x14] sm:$0x1] %v4316
        %v4318 = vld [vmem:[%s1404 + $0x18] sm:$0xf]
        %v4319 = vsel %vm442, %v4024, %v4318
        %4320 = vst [vmem:[%s1404 + $0x18] sm:$0xf] %v4319
        %4321 = vst [vmem:[%s1404 + $0x1c] sm:$0xf] %v4033
        %v4322 = vld [vmem:[%s1404 + $0x20] sm:$0x1]
        %v4323 = vsel %vm385, %v4034, %v4322
        %4324 = vst [vmem:[%s1404 + $0x20] sm:$0x1] %v4323
        %v4325 = vld [vmem:[%s1404 + $0x24] sm:$0xf]
        %v4326 = vsel %vm442, %v4041, %v4325
        %4327 = vst [vmem:[%s1404 + $0x24] sm:$0xf] %v4326
        %4328 = vst [vmem:[%s1404 + $0x28] sm:$0xf] %v4050
        %v4329 = vld [vmem:[%s1404 + $0x2c] sm:$0x1]
        %v4330 = vsel %vm385, %v4051, %v4329
        %4331 = vst [vmem:[%s1404 + $0x2c] sm:$0x1] %v4330
        %v4332 = vld [vmem:[%s1404 + $0x30] sm:$0xf]
        %v4333 = vsel %vm442, %v4058, %v4332
        %4334 = vst [vmem:[%s1404 + $0x30] sm:$0xf] %v4333
        %4335 = vst [vmem:[%s1404 + $0x34] sm:$0xf] %v4067
        %v4336 = vld [vmem:[%s1404 + $0x38] sm:$0x1]
        %v4337 = vsel %vm385, %v4068, %v4336
        %4338 = vst [vmem:[%s1404 + $0x38] sm:$0x1] %v4337
        %v4339 = vld [vmem:[%s1404 + $0x3c] sm:$0xf]
        %v4340 = vsel %vm442, %v4075, %v4339
        %4341 = vst [vmem:[%s1404 + $0x3c] sm:$0xf] %v4340
        %4342 = vst [vmem:[%s1404 + $0x40] sm:$0xf] %v4084
        %v4343 = vld [vmem:[%s1404 + $0x44] sm:$0x1]
        %v4344 = vsel %vm385, %v4085, %v4343
        %4345 = vst [vmem:[%s1404 + $0x44] sm:$0x1] %v4344
        %v4346 = vld [vmem:[%s1404 + $0x48] sm:$0xf]
        %v4347 = vsel %vm442, %v4092, %v4346
        %4348 = vst [vmem:[%s1404 + $0x48] sm:$0xf] %v4347
        %4349 = vst [vmem:[%s1404 + $0x4c] sm:$0xf] %v4101
        %v4350 = vld [vmem:[%s1404 + $0x50] sm:$0x1]
        %v4351 = vsel %vm385, %v4102, %v4350
        %4352 = vst [vmem:[%s1404 + $0x50] sm:$0x1] %v4351
        %v4353 = vld [vmem:[%s1404 + $0x54] sm:$0xf]
        %v4354 = vsel %vm442, %v4109, %v4353
        %4355 = vst [vmem:[%s1404 + $0x54] sm:$0xf] %v4354
        %4356 = vst [vmem:[%s1404 + $0x58] sm:$0xf] %v4118
        %v4357 = vld [vmem:[%s1404 + $0x5c] sm:$0x1]
        %v4358 = vsel %vm385, %v4119, %v4357
        %4359 = vst [vmem:[%s1404 + $0x5c] sm:$0x1] %v4358
        %v4360 = vld [vmem:[%s1404 + $0x60] sm:$0xf]
        %v4361 = vsel %vm442, %v4126, %v4360
        %4362 = vst [vmem:[%s1404 + $0x60] sm:$0xf] %v4361
        %4363 = vst [vmem:[%s1404 + $0x64] sm:$0xf] %v4135
        %v4364 = vld [vmem:[%s1404 + $0x68] sm:$0x1]
        %v4365 = vsel %vm385, %v4136, %v4364
        %4366 = vst [vmem:[%s1404 + $0x68] sm:$0x1] %v4365
        %v4367 = vld [vmem:[%s1404 + $0x6c] sm:$0xf]
        %v4368 = vsel %vm442, %v4143, %v4367
        %4369 = vst [vmem:[%s1404 + $0x6c] sm:$0xf] %v4368
        %4370 = vst [vmem:[%s1404 + $0x70] sm:$0xf] %v4152
        %v4371 = vld [vmem:[%s1404 + $0x74] sm:$0x1]
        %v4372 = vsel %vm385, %v4153, %v4371
        %4373 = vst [vmem:[%s1404 + $0x74] sm:$0x1] %v4372
        %v4374 = vld [vmem:[%s1404 + $0x78] sm:$0xf]
        %v4375 = vsel %vm442, %v4160, %v4374
        %4376 = vst [vmem:[%s1404 + $0x78] sm:$0xf] %v4375
        %4377 = vst [vmem:[%s1404 + $0x7c] sm:$0xf] %v4169
        %v4378 = vld [vmem:[%s1404 + $0x80] sm:$0x1]
        %v4379 = vsel %vm385, %v4170, %v4378
        %4380 = vst [vmem:[%s1404 + $0x80] sm:$0x1] %v4379
        %v4381 = vld [vmem:[%s1404 + $0x84] sm:$0xf]
        %v4382 = vsel %vm442, %v4177, %v4381
        %4383 = vst [vmem:[%s1404 + $0x84] sm:$0xf] %v4382
        %4384 = vst [vmem:[%s1404 + $0x88] sm:$0xf] %v4186
        %v4385 = vld [vmem:[%s1404 + $0x8c] sm:$0x1]
        %v4386 = vsel %vm385, %v4187, %v4385
        %4387 = vst [vmem:[%s1404 + $0x8c] sm:$0x1] %v4386
        %v4388 = vld [vmem:[%s1404 + $0x90] sm:$0xf]
        %v4389 = vsel %vm442, %v4194, %v4388
        %4390 = vst [vmem:[%s1404 + $0x90] sm:$0xf] %v4389
        %4391 = vst [vmem:[%s1404 + $0x94] sm:$0xf] %v4203
        %v4392 = vld [vmem:[%s1404 + $0x98] sm:$0x1]
        %v4393 = vsel %vm385, %v4204, %v4392
        %4394 = vst [vmem:[%s1404 + $0x98] sm:$0x1] %v4393
        %v4395 = vld [vmem:[%s1404 + $0x9c] sm:$0xf]
        %v4396 = vsel %vm442, %v4211, %v4395
        %4397 = vst [vmem:[%s1404 + $0x9c] sm:$0xf] %v4396
        %4398 = vst [vmem:[%s1404 + $0xa0] sm:$0xf] %v4220
        %v4399 = vld [vmem:[%s1404 + $0xa4] sm:$0x1]
        %v4400 = vsel %vm385, %v4221, %v4399
        %4401 = vst [vmem:[%s1404 + $0xa4] sm:$0x1] %v4400
        %v4402 = vld [vmem:[%s1404 + $0xa8] sm:$0xf]
        %v4403 = vsel %vm442, %v4228, %v4402
        %4404 = vst [vmem:[%s1404 + $0xa8] sm:$0xf] %v4403
        %4405 = vst [vmem:[%s1404 + $0xac] sm:$0xf] %v4237
        %v4406 = vld [vmem:[%s1404 + $0xb0] sm:$0x1]
        %v4407 = vsel %vm385, %v4238, %v4406
        %4408 = vst [vmem:[%s1404 + $0xb0] sm:$0x1] %v4407
        %v4409 = vld [vmem:[%s1404 + $0xb4] sm:$0xf]
        %v4410 = vsel %vm442, %v4245, %v4409
        %4411 = vst [vmem:[%s1404 + $0xb4] sm:$0xf] %v4410
        %4412 = vst [vmem:[%s1404 + $0xb8] sm:$0xf] %v4254
        %v4413 = vld [vmem:[%s1404 + $0xbc] sm:$0x1]
        %v4414 = vsel %vm385, %v4255, %v4413
        %4415 = vst [vmem:[%s1404 + $0xbc] sm:$0x1] %v4414
        %v4416 = vld [vmem:[#allocation2] sm:$0xf]
        %v4417 = vld [vmem:[#allocation2 + $0x4] sm:$0xf]
        %v4418 = vld [vmem:[#allocation2 + $0x8] sm:$0xf]
        %v4419 = vld [vmem:[#allocation2 + $0xc] sm:$0xf]
        %v4420 = vld [vmem:[#allocation2 + $0x10] sm:$0xf]
        %v4421 = vld [vmem:[#allocation2 + $0x14] sm:$0xf]
        %v4422 = vld [vmem:[#allocation2 + $0x18] sm:$0xf]
        %v4423 = vld [vmem:[#allocation2 + $0x1c] sm:$0xf]
        %v4424 = vld [vmem:[#allocation2 + $0x20] sm:$0xf]
        %v4425 = vld [vmem:[#allocation2 + $0x24] sm:$0xf]
        %v4426 = vld [vmem:[#allocation2 + $0x28] sm:$0xf]
        %v4427 = vld [vmem:[#allocation2 + $0x2c] sm:$0xf]
        %v4428 = vld [vmem:[#allocation2 + $0x30] sm:$0xf]
        %v4429 = vld [vmem:[#allocation2 + $0x34] sm:$0xf]
        %v4430 = vld [vmem:[#allocation2 + $0x38] sm:$0xf]
        %v4431 = vld [vmem:[#allocation2 + $0x3c] sm:$0xf]
        %v4432 = vld [vmem:[#allocation2 + $0x40] sm:$0xf]
        %v4433 = vld [vmem:[#allocation2 + $0x44] sm:$0xf]
        %v4434 = vld [vmem:[#allocation2 + $0x48] sm:$0xf]
        %v4435 = vld [vmem:[#allocation2 + $0x4c] sm:$0xf]
        %v4436 = vld [vmem:[#allocation2 + $0x50] sm:$0xf]
        %v4437 = vld [vmem:[#allocation2 + $0x54] sm:$0xf]
        %v4438 = vld [vmem:[#allocation2 + $0x58] sm:$0xf]
        %v4439 = vld [vmem:[#allocation2 + $0x5c] sm:$0xf]
        %v4440 = vld [vmem:[#allocation2 + $0x60] sm:$0xf]
        %v4441 = vld [vmem:[#allocation2 + $0x64] sm:$0xf]
        %v4442 = vld [vmem:[#allocation2 + $0x68] sm:$0xf]
        %v4443 = vld [vmem:[#allocation2 + $0x6c] sm:$0xf]
        %v4444 = vld [vmem:[#allocation2 + $0x70] sm:$0xf]
        %v4445 = vld [vmem:[#allocation2 + $0x74] sm:$0xf]
        %v4446 = vld [vmem:[#allocation2 + $0x78] sm:$0xf]
        %v4447 = vld [vmem:[#allocation2 + $0x7c] sm:$0xf]
        %v4448 = vld [vmem:[#allocation2 + $0x80] sm:$0xf]
        %v4449 = vld [vmem:[#allocation2 + $0x84] sm:$0xf]
        %v4450 = vld [vmem:[#allocation2 + $0x88] sm:$0xf]
        %v4451 = vld [vmem:[#allocation2 + $0x8c] sm:$0xf]
        %v4452 = vld [vmem:[#allocation2 + $0x90] sm:$0xf]
        %v4453 = vld [vmem:[#allocation2 + $0x94] sm:$0xf]
        %v4454 = vld [vmem:[#allocation2 + $0x98] sm:$0xf]
        %v4455 = vld [vmem:[#allocation2 + $0x9c] sm:$0xf]
        %v4456 = vld [vmem:[#allocation2 + $0xa0] sm:$0xf]
        %v4457 = vld [vmem:[#allocation2 + $0xa4] sm:$0xf]
        %v4458 = vld [vmem:[#allocation2 + $0xa8] sm:$0xf]
        %v4459 = vld [vmem:[#allocation2 + $0xac] sm:$0xf]
        %v4460 = vld [vmem:[#allocation2 + $0xb0] sm:$0xf]
        %v4461 = vld [vmem:[#allocation2 + $0xb4] sm:$0xf]
        %v4462 = vld [vmem:[#allocation2 + $0xb8] sm:$0xf]
        %v4463 = vld [vmem:[#allocation2 + $0xbc] sm:$0xf]
        %v4464 = vld [vmem:[#allocation2 + $0xc0] sm:$0xf]
        %v4465 = vld [vmem:[#allocation2 + $0xc4] sm:$0xf]
        %v4466 = vld [vmem:[#allocation2 + $0xc8] sm:$0xf]
        %v4467 = vld [vmem:[#allocation2 + $0xcc] sm:$0xf]
        %v4468 = vld [vmem:[#allocation2 + $0xd0] sm:$0xf]
        %v4469 = vld [vmem:[#allocation2 + $0xd4] sm:$0xf]
        %s4470 = scalar_lea.vmem %s6, 64
        %v4471 = vld [vmem:[%s4470] sm:$0xf]
        %v4472 = vld [vmem:[%s4470 + $0x4] sm:$0xf]
        %v4473 = vld [vmem:[%s4470 + $0x8] sm:$0xf]
        %v4474 = vld [vmem:[%s4470 + $0xc] sm:$0xf]
        %v4475 = vld [vmem:[%s4470 + $0x10] sm:$0xf]
        %v4476 = vld [vmem:[%s4470 + $0x14] sm:$0xf]
        %v4477 = vld [vmem:[%s4470 + $0x18] sm:$0xf]
        %v4478 = vld [vmem:[%s4470 + $0x1c] sm:$0xf]
        %v4479 = vld [vmem:[%s4470 + $0x20] sm:$0xf]
        %v4480 = vld [vmem:[%s4470 + $0x24] sm:$0xf]
        %v4481 = vld [vmem:[%s4470 + $0x28] sm:$0xf]
        %v4482 = vld [vmem:[%s4470 + $0x2c] sm:$0xf]
        %v4483 = vld [vmem:[%s4470 + $0x30] sm:$0xf]
        %v4484 = vld [vmem:[%s4470 + $0x34] sm:$0xf]
        %v4485 = vld [vmem:[%s4470 + $0x38] sm:$0xf]
        %v4486 = vld [vmem:[%s4470 + $0x3c] sm:$0xf]
        %v4541 = vunpack.c.l.b16 %v4416
        %v4542 = vunpack.c.l.b16 %v4417
        %v4543 = vunpack.c.l.b16 %v4418
        %v4544 = vunpack.c.l.b16 %v4419
        %v4545 = vunpack.c.l.b16 %v4420
        %v4546 = vunpack.c.l.b16 %v4421
        %v4547 = vunpack.c.l.b16 %v4422
        %v4548 = vunpack.c.l.b16 %v4423
        %v4549 = vunpack.c.l.b16 %v4424
        %v4550 = vunpack.c.l.b16 %v4425
        %v4551 = vunpack.c.l.b16 %v4426
        %v4552 = vunpack.c.l.b16 %v4427
        %v4553 = vunpack.c.l.b16 %v4428
        %v4554 = vunpack.c.l.b16 %v4429
        %v4555 = vunpack.c.l.b16 %v4430
        %v4556 = vunpack.c.l.b16 %v4431
        %v4557 = vunpack.c.l.b16 %v4432
        %v4558 = vunpack.c.l.b16 %v4433
        %v4559 = vunpack.c.l.b16 %v4434
        %v4560 = vunpack.c.l.b16 %v4435
        %v4561 = vunpack.c.l.b16 %v4436
        %v4562 = vunpack.c.l.b16 %v4437
        %v4563 = vunpack.c.l.b16 %v4438
        %v4564 = vunpack.c.l.b16 %v4439
        %v4565 = vunpack.c.l.b16 %v4440
        %v4566 = vunpack.c.l.b16 %v4441
        %v4567 = vunpack.c.l.b16 %v4442
        %v4568 = vunpack.c.l.b16 %v4443
        %v4569 = vunpack.c.l.b16 %v4444
        %v4570 = vunpack.c.l.b16 %v4445
        %v4571 = vunpack.c.l.b16 %v4446
        %v4572 = vunpack.c.l.b16 %v4447
        %v4573 = vunpack.c.l.b16 %v4448
        %v4574 = vunpack.c.l.b16 %v4449
        %v4575 = vunpack.c.l.b16 %v4450
        %v4576 = vunpack.c.l.b16 %v4451
        %v4577 = vunpack.c.l.b16 %v4452
        %v4578 = vunpack.c.l.b16 %v4453
        %v4579 = vunpack.c.l.b16 %v4454
        %v4580 = vunpack.c.l.b16 %v4455
        %v4581 = vunpack.c.l.b16 %v4456
        %v4582 = vunpack.c.l.b16 %v4457
        %v4583 = vunpack.c.l.b16 %v4458
        %v4584 = vunpack.c.l.b16 %v4459
        %v4585 = vunpack.c.l.b16 %v4460
        %v4586 = vunpack.c.l.b16 %v4461
        %v4587 = vunpack.c.l.b16 %v4462
        %v4588 = vunpack.c.l.b16 %v4463
        %v4589 = vunpack.c.l.b16 %v4464
        %v4590 = vunpack.c.l.b16 %v4465
        %v4591 = vunpack.c.l.b16 %v4466
        %v4592 = vunpack.c.l.b16 %v4467
        %v4593 = vunpack.c.l.b16 %v4468
        %v4594 = vunpack.c.l.b16 %v4469
        %v4595 = vpack.c.b16 %v4542, %v4541
        %v4596 = vpack.c.b16 %v4544, %v4543
        %v4597 = vpack.c.b16 %v4546, %v4545
        %v4598 = vpack.c.b16 %v4548, %v4547
        %v4599 = vpack.c.b16 %v4550, %v4549
        %v4600 = vpack.c.b16 %v4552, %v4551
        %v4601 = vpack.c.b16 %v4554, %v4553
        %v4602 = vpack.c.b16 %v4556, %v4555
        %v4603 = vpack.c.b16 %v4558, %v4557
        %v4604 = vpack.c.b16 %v4560, %v4559
        %v4605 = vpack.c.b16 %v4562, %v4561
        %v4606 = vpack.c.b16 %v4564, %v4563
        %v4607 = vpack.c.b16 %v4566, %v4565
        %v4608 = vpack.c.b16 %v4568, %v4567
        %v4609 = vpack.c.b16 %v4570, %v4569
        %v4610 = vpack.c.b16 %v4572, %v4571
        %v4611 = vpack.c.b16 %v4574, %v4573
        %v4612 = vpack.c.b16 %v4576, %v4575
        %v4613 = vpack.c.b16 %v4578, %v4577
        %v4614 = vpack.c.b16 %v4580, %v4579
        %v4615 = vpack.c.b16 %v4582, %v4581
        %v4616 = vpack.c.b16 %v4584, %v4583
        %v4617 = vpack.c.b16 %v4586, %v4585
        %v4618 = vpack.c.b16 %v4588, %v4587
        %v4619 = vpack.c.b16 %v4590, %v4589
        %v4620 = vpack.c.b16 %v4592, %v4591
        %v4621 = vpack.c.b16 %v4594, %v4593
        %v4665 = vunpack.c.l.b16 %v4471
        %v4666 = vunpack.c.l.b16 %v4472
        %v4667 = vunpack.c.l.b16 %v4473
        %v4668 = vunpack.c.l.b16 %v4474
        %v4669 = vunpack.c.l.b16 %v4475
        %v4670 = vunpack.c.l.b16 %v4476
        %v4671 = vunpack.c.l.b16 %v4477
        %v4672 = vunpack.c.l.b16 %v4478
        %v4673 = vunpack.c.l.b16 %v4479
        %v4674 = vunpack.c.l.b16 %v4480
        %v4675 = vunpack.c.l.b16 %v4481
        %v4676 = vunpack.c.l.b16 %v4482
        %v4677 = vunpack.c.l.b16 %v4483
        %v4678 = vunpack.c.l.b16 %v4484
        %v4679 = vunpack.c.l.b16 %v4485
        %v4680 = vunpack.c.l.b16 %v4486
        %v4681 = vpack.c.b16 %v4666, %v4665
        %v4682 = vpack.c.b16 %v4668, %v4667
        %v4683 = vpack.c.b16 %v4670, %v4669
        %v4684 = vpack.c.b16 %v4672, %v4671
        %v4685 = vpack.c.b16 %v4674, %v4673
        %v4686 = vpack.c.b16 %v4676, %v4675
        %v4687 = vpack.c.b16 %v4678, %v4677
        %v4688 = vpack.c.b16 %v4680, %v4679
        %4697 = vmatpush.bf16.msra.mxu0 %v4688
        %4698 = vmatpush.bf16.msra.mxu0 %v4687
        %4699 = vmatpush.bf16.msra.mxu0 %v4686
        %4700 = vmatpush.bf16.msra.mxu0 %v4685
        %4701 = vmatpush.bf16.msra.mxu0 %v4684
        %4702 = vmatpush.bf16.msra.mxu0 %v4683
        %4703 = vmatpush.bf16.msra.mxu0 %v4682
        %4704 = vmatpush.bf16.msra.mxu0 %v4681
        %4705 = vmatmul.bf16.gmra.mxu0 %v4595
        %v4706 = vpop.f32.mrf.mxu0
        %v4707 = vadd.f32 0.0, %v4706
        %v4708 = vpop.f32.mrf.mxu0
        %v4709 = vadd.f32 0.0, %v4708
        %4710 = vmatmul.bf16.gmra.mxu0 %v4596
        %v4711 = vpop.f32.mrf.mxu0
        %v4712 = vadd.f32 0.0, %v4711
        %v4713 = vpop.f32.mrf.mxu0
        %v4714 = vadd.f32 0.0, %v4713
        %4715 = vmatmul.bf16.gmra.mxu0 %v4597
        %v4716 = vpop.f32.mrf.mxu0
        %v4717 = vadd.f32 0.0, %v4716
        %v4718 = vpop.f32.mrf.mxu0
        %v4719 = vadd.f32 0.0, %v4718
        %4720 = vmatmul.bf16.gmra.mxu0 %v4598
        %v4721 = vpop.f32.mrf.mxu0
        %v4722 = vadd.f32 0.0, %v4721
        %v4723 = vpop.f32.mrf.mxu0
        %v4724 = vadd.f32 0.0, %v4723
        %4725 = vmatmul.bf16.gmra.mxu0 %v4599
        %v4726 = vpop.f32.mrf.mxu0
        %v4727 = vadd.f32 0.0, %v4726
        %v4728 = vpop.f32.mrf.mxu0
        %v4729 = vadd.f32 0.0, %v4728
        %4730 = vmatmul.bf16.gmra.mxu0 %v4600
        %v4731 = vpop.f32.mrf.mxu0
        %v4732 = vadd.f32 0.0, %v4731
        %v4733 = vpop.f32.mrf.mxu0
        %v4734 = vadd.f32 0.0, %v4733
        %4735 = vmatmul.bf16.gmra.mxu0 %v4601
        %v4736 = vpop.f32.mrf.mxu0
        %v4737 = vadd.f32 0.0, %v4736
        %v4738 = vpop.f32.mrf.mxu0
        %v4739 = vadd.f32 0.0, %v4738
        %4740 = vmatmul.bf16.gmra.mxu0 %v4602
        %v4741 = vpop.f32.mrf.mxu0
        %v4742 = vadd.f32 0.0, %v4741
        %v4743 = vpop.f32.mrf.mxu0
        %v4744 = vadd.f32 0.0, %v4743
        %4745 = vmatmul.bf16.gmra.mxu0 %v4603
        %v4746 = vpop.f32.mrf.mxu0
        %v4747 = vadd.f32 0.0, %v4746
        %v4748 = vpop.f32.mrf.mxu0
        %v4749 = vadd.f32 0.0, %v4748
        %4750 = vmatmul.bf16.gmra.mxu0 %v4604
        %v4751 = vpop.f32.mrf.mxu0
        %v4752 = vadd.f32 0.0, %v4751
        %v4753 = vpop.f32.mrf.mxu0
        %v4754 = vadd.f32 0.0, %v4753
        %4755 = vmatmul.bf16.gmra.mxu0 %v4605
        %v4756 = vpop.f32.mrf.mxu0
        %v4757 = vadd.f32 0.0, %v4756
        %v4758 = vpop.f32.mrf.mxu0
        %v4759 = vadd.f32 0.0, %v4758
        %4760 = vmatmul.bf16.gmra.mxu0 %v4606
        %v4761 = vpop.f32.mrf.mxu0
        %v4762 = vadd.f32 0.0, %v4761
        %v4763 = vpop.f32.mrf.mxu0
        %v4764 = vadd.f32 0.0, %v4763
        %4765 = vmatmul.bf16.gmra.mxu0 %v4607
        %v4766 = vpop.f32.mrf.mxu0
        %v4767 = vadd.f32 0.0, %v4766
        %v4768 = vpop.f32.mrf.mxu0
        %v4769 = vadd.f32 0.0, %v4768
        %4770 = vmatmul.bf16.gmra.mxu0 %v4608
        %v4771 = vpop.f32.mrf.mxu0
        %v4772 = vadd.f32 0.0, %v4771
        %v4773 = vpop.f32.mrf.mxu0
        %v4774 = vadd.f32 0.0, %v4773
        %4775 = vmatmul.bf16.gmra.mxu0 %v4609
        %v4776 = vpop.f32.mrf.mxu0
        %v4777 = vadd.f32 0.0, %v4776
        %v4778 = vpop.f32.mrf.mxu0
        %v4779 = vadd.f32 0.0, %v4778
        %4780 = vmatmul.bf16.gmra.mxu0 %v4610
        %v4781 = vpop.f32.mrf.mxu0
        %v4782 = vadd.f32 0.0, %v4781
        %v4783 = vpop.f32.mrf.mxu0
        %v4784 = vadd.f32 0.0, %v4783
        %4785 = vmatmul.bf16.gmra.mxu0 %v4611
        %v4786 = vpop.f32.mrf.mxu0
        %v4787 = vadd.f32 0.0, %v4786
        %v4788 = vpop.f32.mrf.mxu0
        %v4789 = vadd.f32 0.0, %v4788
        %4790 = vmatmul.bf16.gmra.mxu0 %v4612
        %v4791 = vpop.f32.mrf.mxu0
        %v4792 = vadd.f32 0.0, %v4791
        %v4793 = vpop.f32.mrf.mxu0
        %v4794 = vadd.f32 0.0, %v4793
        %4795 = vmatmul.bf16.gmra.mxu0 %v4613
        %v4796 = vpop.f32.mrf.mxu0
        %v4797 = vadd.f32 0.0, %v4796
        %v4798 = vpop.f32.mrf.mxu0
        %v4799 = vadd.f32 0.0, %v4798
        %4800 = vmatmul.bf16.gmra.mxu0 %v4614
        %v4801 = vpop.f32.mrf.mxu0
        %v4802 = vadd.f32 0.0, %v4801
        %v4803 = vpop.f32.mrf.mxu0
        %v4804 = vadd.f32 0.0, %v4803
        %4805 = vmatmul.bf16.gmra.mxu0 %v4615
        %v4806 = vpop.f32.mrf.mxu0
        %v4807 = vadd.f32 0.0, %v4806
        %v4808 = vpop.f32.mrf.mxu0
        %v4809 = vadd.f32 0.0, %v4808
        %4810 = vmatmul.bf16.gmra.mxu0 %v4616
        %v4811 = vpop.f32.mrf.mxu0
        %v4812 = vadd.f32 0.0, %v4811
        %v4813 = vpop.f32.mrf.mxu0
        %v4814 = vadd.f32 0.0, %v4813
        %4815 = vmatmul.bf16.gmra.mxu0 %v4617
        %v4816 = vpop.f32.mrf.mxu0
        %v4817 = vadd.f32 0.0, %v4816
        %v4818 = vpop.f32.mrf.mxu0
        %v4819 = vadd.f32 0.0, %v4818
        %4820 = vmatmul.bf16.gmra.mxu0 %v4618
        %v4821 = vpop.f32.mrf.mxu0
        %v4822 = vadd.f32 0.0, %v4821
        %v4823 = vpop.f32.mrf.mxu0
        %v4824 = vadd.f32 0.0, %v4823
        %4825 = vmatmul.bf16.gmra.mxu0 %v4619
        %v4826 = vpop.f32.mrf.mxu0
        %v4827 = vadd.f32 0.0, %v4826
        %v4828 = vpop.f32.mrf.mxu0
        %v4829 = vadd.f32 0.0, %v4828
        %4830 = vmatmul.bf16.gmra.mxu0 %v4620
        %v4831 = vpop.f32.mrf.mxu0
        %v4832 = vadd.f32 0.0, %v4831
        %v4833 = vpop.f32.mrf.mxu0
        %v4834 = vadd.f32 0.0, %v4833
        %4835 = vmatmul.bf16.gmra.mxu0 %v4621
        %v4836 = vpop.f32.mrf.mxu0
        %v4837 = vadd.f32 0.0, %v4836
        %v4838 = vpop.f32.mrf.mxu0
        %v4839 = vadd.f32 0.0, %v4838
        %4840 = vdwg.mxu0
        %v4889 = vrot.slane %v4707, 1
        %v4890 = vrot.slane %v4709, 1
        %v4891 = vsel %vm1989, %v4889, %v4890
        %v4892 = vrot.slane %v4712, 1
        %v4893 = vsel %vm1989, %v4890, %v4892
        %v4894 = vrot.slane %v4714, 1
        %v4895 = vrot.slane %v4717, 1
        %v4896 = vsel %vm1989, %v4894, %v4895
        %v4897 = vrot.slane %v4719, 1
        %v4898 = vsel %vm1989, %v4895, %v4897
        %v4899 = vrot.slane %v4722, 1
        %v4900 = vrot.slane %v4724, 1
        %v4901 = vsel %vm1989, %v4899, %v4900
        %v4902 = vrot.slane %v4727, 1
        %v4903 = vsel %vm1989, %v4900, %v4902
        %v4904 = vrot.slane %v4729, 1
        %v4905 = vrot.slane %v4732, 1
        %v4906 = vsel %vm1989, %v4904, %v4905
        %v4907 = vrot.slane %v4734, 1
        %v4908 = vsel %vm1989, %v4905, %v4907
        %v4909 = vrot.slane %v4737, 1
        %v4910 = vrot.slane %v4739, 1
        %v4911 = vsel %vm1989, %v4909, %v4910
        %v4912 = vrot.slane %v4742, 1
        %v4913 = vsel %vm1989, %v4910, %v4912
        %v4914 = vrot.slane %v4744, 1
        %v4915 = vrot.slane %v4747, 1
        %v4916 = vsel %vm1989, %v4914, %v4915
        %v4917 = vrot.slane %v4749, 1
        %v4918 = vsel %vm1989, %v4915, %v4917
        %v4919 = vrot.slane %v4752, 1
        %v4920 = vrot.slane %v4754, 1
        %v4921 = vsel %vm1989, %v4919, %v4920
        %v4922 = vrot.slane %v4757, 1
        %v4923 = vsel %vm1989, %v4920, %v4922
        %v4924 = vrot.slane %v4759, 1
        %v4925 = vrot.slane %v4762, 1
        %v4926 = vsel %vm1989, %v4924, %v4925
        %v4927 = vrot.slane %v4764, 1
        %v4928 = vsel %vm1989, %v4925, %v4927
        %v4929 = vrot.slane %v4767, 1
        %v4930 = vrot.slane %v4769, 1
        %v4931 = vsel %vm1989, %v4929, %v4930
        %v4932 = vrot.slane %v4772, 1
        %v4933 = vsel %vm1989, %v4930, %v4932
        %v4934 = vrot.slane %v4774, 1
        %v4935 = vrot.slane %v4777, 1
        %v4936 = vsel %vm1989, %v4934, %v4935
        %v4937 = vrot.slane %v4779, 1
        %v4938 = vsel %vm1989, %v4935, %v4937
        %v4939 = vrot.slane %v4782, 1
        %v4940 = vrot.slane %v4784, 1
        %v4941 = vsel %vm1989, %v4939, %v4940
        %v4942 = vrot.slane %v4787, 1
        %v4943 = vsel %vm1989, %v4940, %v4942
        %v4944 = vrot.slane %v4789, 1
        %v4945 = vrot.slane %v4792, 1
        %v4946 = vsel %vm1989, %v4944, %v4945
        %v4947 = vrot.slane %v4794, 1
        %v4948 = vsel %vm1989, %v4945, %v4947
        %v4949 = vrot.slane %v4797, 1
        %v4950 = vrot.slane %v4799, 1
        %v4951 = vsel %vm1989, %v4949, %v4950
        %v4952 = vrot.slane %v4802, 1
        %v4953 = vsel %vm1989, %v4950, %v4952
        %v4954 = vrot.slane %v4804, 1
        %v4955 = vrot.slane %v4807, 1
        %v4956 = vsel %vm1989, %v4954, %v4955
        %v4957 = vrot.slane %v4809, 1
        %v4958 = vsel %vm1989, %v4955, %v4957
        %v4959 = vrot.slane %v4812, 1
        %v4960 = vrot.slane %v4814, 1
        %v4961 = vsel %vm1989, %v4959, %v4960
        %v4962 = vrot.slane %v4817, 1
        %v4963 = vsel %vm1989, %v4960, %v4962
        %v4964 = vrot.slane %v4819, 1
        %v4965 = vrot.slane %v4822, 1
        %v4966 = vsel %vm1989, %v4964, %v4965
        %v4967 = vrot.slane %v4824, 1
        %v4968 = vsel %vm1989, %v4965, %v4967
        %4969 = vrot.lane.b32.xlu0 %v4891, 124
        %v4970 = vpop.permute.xlu0 %4969
        %4971 = vrot.lane.b32.xlu0 %v4893, 124
        %v4972 = vpop.permute.xlu0 %4971
        %4973 = vrot.lane.b32.xlu0 %v4896, 124
        %v4974 = vpop.permute.xlu0 %4973
        %4975 = vrot.lane.b32.xlu0 %v4898, 124
        %v4976 = vpop.permute.xlu0 %4975
        %4977 = vrot.lane.b32.xlu0 %v4901, 124
        %v4978 = vpop.permute.xlu0 %4977
        %4979 = vrot.lane.b32.xlu0 %v4903, 124
        %v4980 = vpop.permute.xlu0 %4979
        %4981 = vrot.lane.b32.xlu0 %v4906, 124
        %v4982 = vpop.permute.xlu0 %4981
        %4983 = vrot.lane.b32.xlu0 %v4908, 124
        %v4984 = vpop.permute.xlu0 %4983
        %4985 = vrot.lane.b32.xlu0 %v4911, 124
        %v4986 = vpop.permute.xlu0 %4985
        %4987 = vrot.lane.b32.xlu0 %v4913, 124
        %v4988 = vpop.permute.xlu0 %4987
        %4989 = vrot.lane.b32.xlu0 %v4916, 124
        %v4990 = vpop.permute.xlu0 %4989
        %4991 = vrot.lane.b32.xlu0 %v4918, 124
        %v4992 = vpop.permute.xlu0 %4991
        %4993 = vrot.lane.b32.xlu0 %v4921, 124
        %v4994 = vpop.permute.xlu0 %4993
        %4995 = vrot.lane.b32.xlu0 %v4923, 124
        %v4996 = vpop.permute.xlu0 %4995
        %4997 = vrot.lane.b32.xlu0 %v4926, 124
        %v4998 = vpop.permute.xlu0 %4997
        %4999 = vrot.lane.b32.xlu0 %v4928, 124
        %v5000 = vpop.permute.xlu0 %4999
        %5001 = vrot.lane.b32.xlu0 %v4931, 124
        %v5002 = vpop.permute.xlu0 %5001
        %5003 = vrot.lane.b32.xlu0 %v4933, 124
        %v5004 = vpop.permute.xlu0 %5003
        %5005 = vrot.lane.b32.xlu0 %v4936, 124
        %v5006 = vpop.permute.xlu0 %5005
        %5007 = vrot.lane.b32.xlu0 %v4938, 124
        %v5008 = vpop.permute.xlu0 %5007
        %5009 = vrot.lane.b32.xlu0 %v4941, 124
        %v5010 = vpop.permute.xlu0 %5009
        %5011 = vrot.lane.b32.xlu0 %v4943, 124
        %v5012 = vpop.permute.xlu0 %5011
        %5013 = vrot.lane.b32.xlu0 %v4946, 124
        %v5014 = vpop.permute.xlu0 %5013
        %5015 = vrot.lane.b32.xlu0 %v4948, 124
        %v5016 = vpop.permute.xlu0 %5015
        %5017 = vrot.lane.b32.xlu0 %v4951, 124
        %v5018 = vpop.permute.xlu0 %5017
        %5019 = vrot.lane.b32.xlu0 %v4953, 124
        %v5020 = vpop.permute.xlu0 %5019
        %5021 = vrot.lane.b32.xlu0 %v4956, 124
        %v5022 = vpop.permute.xlu0 %5021
        %5023 = vrot.lane.b32.xlu0 %v4958, 124
        %v5024 = vpop.permute.xlu0 %5023
        %5025 = vrot.lane.b32.xlu0 %v4961, 124
        %v5026 = vpop.permute.xlu0 %5025
        %5027 = vrot.lane.b32.xlu0 %v4963, 124
        %v5028 = vpop.permute.xlu0 %5027
        %5029 = vrot.lane.b32.xlu0 %v4966, 124
        %v5030 = vpop.permute.xlu0 %5029
        %5031 = vrot.lane.b32.xlu0 %v4968, 124
        %v5032 = vpop.permute.xlu0 %5031
        %v5065 = vadd.f32 %v4707, %v4970
        %v5066 = vadd.f32 %v4709, %v4972
        %v5067 = vadd.f32 %v4714, %v4974
        %v5068 = vadd.f32 %v4717, %v4976
        %v5069 = vadd.f32 %v4722, %v4978
        %v5070 = vadd.f32 %v4724, %v4980
        %v5071 = vadd.f32 %v4729, %v4982
        %v5072 = vadd.f32 %v4732, %v4984
        %v5073 = vadd.f32 %v4737, %v4986
        %v5074 = vadd.f32 %v4739, %v4988
        %v5075 = vadd.f32 %v4744, %v4990
        %v5076 = vadd.f32 %v4747, %v4992
        %v5077 = vadd.f32 %v4752, %v4994
        %v5078 = vadd.f32 %v4754, %v4996
        %v5079 = vadd.f32 %v4759, %v4998
        %v5080 = vadd.f32 %v4762, %v5000
        %v5081 = vadd.f32 %v4767, %v5002
        %v5082 = vadd.f32 %v4769, %v5004
        %v5083 = vadd.f32 %v4774, %v5006
        %v5084 = vadd.f32 %v4777, %v5008
        %v5085 = vadd.f32 %v4782, %v5010
        %v5086 = vadd.f32 %v4784, %v5012
        %v5087 = vadd.f32 %v4789, %v5014
        %v5088 = vadd.f32 %v4792, %v5016
        %v5089 = vadd.f32 %v4797, %v5018
        %v5090 = vadd.f32 %v4799, %v5020
        %v5091 = vadd.f32 %v4804, %v5022
        %v5092 = vadd.f32 %v4807, %v5024
        %v5093 = vadd.f32 %v4812, %v5026
        %v5094 = vadd.f32 %v4814, %v5028
        %v5095 = vadd.f32 %v4819, %v5030
        %v5096 = vadd.f32 %v4822, %v5032
        %v5097 = vrot.slane %v4707, 2
        %v5098 = vrot.slane %v4709, 2
        %v5099 = vsel %vm2198, %v5097, %v5098
        %v5100 = vrot.slane %v4712, 2
        %v5101 = vsel %vm2198, %v5098, %v5100
        %v5102 = vrot.slane %v4714, 2
        %v5103 = vrot.slane %v4717, 2
        %v5104 = vsel %vm2198, %v5102, %v5103
        %v5105 = vrot.slane %v4719, 2
        %v5106 = vsel %vm2198, %v5103, %v5105
        %v5107 = vrot.slane %v4722, 2
        %v5108 = vrot.slane %v4724, 2
        %v5109 = vsel %vm2198, %v5107, %v5108
        %v5110 = vrot.slane %v4727, 2
        %v5111 = vsel %vm2198, %v5108, %v5110
        %v5112 = vrot.slane %v4729, 2
        %v5113 = vrot.slane %v4732, 2
        %v5114 = vsel %vm2198, %v5112, %v5113
        %v5115 = vrot.slane %v4734, 2
        %v5116 = vsel %vm2198, %v5113, %v5115
        %v5117 = vrot.slane %v4737, 2
        %v5118 = vrot.slane %v4739, 2
        %v5119 = vsel %vm2198, %v5117, %v5118
        %v5120 = vrot.slane %v4742, 2
        %v5121 = vsel %vm2198, %v5118, %v5120
        %v5122 = vrot.slane %v4744, 2
        %v5123 = vrot.slane %v4747, 2
        %v5124 = vsel %vm2198, %v5122, %v5123
        %v5125 = vrot.slane %v4749, 2
        %v5126 = vsel %vm2198, %v5123, %v5125
        %v5127 = vrot.slane %v4752, 2
        %v5128 = vrot.slane %v4754, 2
        %v5129 = vsel %vm2198, %v5127, %v5128
        %v5130 = vrot.slane %v4757, 2
        %v5131 = vsel %vm2198, %v5128, %v5130
        %v5132 = vrot.slane %v4759, 2
        %v5133 = vrot.slane %v4762, 2
        %v5134 = vsel %vm2198, %v5132, %v5133
        %v5135 = vrot.slane %v4764, 2
        %v5136 = vsel %vm2198, %v5133, %v5135
        %v5137 = vrot.slane %v4767, 2
        %v5138 = vrot.slane %v4769, 2
        %v5139 = vsel %vm2198, %v5137, %v5138
        %v5140 = vrot.slane %v4772, 2
        %v5141 = vsel %vm2198, %v5138, %v5140
        %v5142 = vrot.slane %v4774, 2
        %v5143 = vrot.slane %v4777, 2
        %v5144 = vsel %vm2198, %v5142, %v5143
        %v5145 = vrot.slane %v4779, 2
        %v5146 = vsel %vm2198, %v5143, %v5145
        %v5147 = vrot.slane %v4782, 2
        %v5148 = vrot.slane %v4784, 2
        %v5149 = vsel %vm2198, %v5147, %v5148
        %v5150 = vrot.slane %v4787, 2
        %v5151 = vsel %vm2198, %v5148, %v5150
        %v5152 = vrot.slane %v4789, 2
        %v5153 = vrot.slane %v4792, 2
        %v5154 = vsel %vm2198, %v5152, %v5153
        %v5155 = vrot.slane %v4794, 2
        %v5156 = vsel %vm2198, %v5153, %v5155
        %v5157 = vrot.slane %v4797, 2
        %v5158 = vrot.slane %v4799, 2
        %v5159 = vsel %vm2198, %v5157, %v5158
        %v5160 = vrot.slane %v4802, 2
        %v5161 = vsel %vm2198, %v5158, %v5160
        %v5162 = vrot.slane %v4804, 2
        %v5163 = vrot.slane %v4807, 2
        %v5164 = vsel %vm2198, %v5162, %v5163
        %v5165 = vrot.slane %v4809, 2
        %v5166 = vsel %vm2198, %v5163, %v5165
        %v5167 = vrot.slane %v4812, 2
        %v5168 = vrot.slane %v4814, 2
        %v5169 = vsel %vm2198, %v5167, %v5168
        %v5170 = vrot.slane %v4817, 2
        %v5171 = vsel %vm2198, %v5168, %v5170
        %v5172 = vrot.slane %v4819, 2
        %v5173 = vrot.slane %v4822, 2
        %v5174 = vsel %vm2198, %v5172, %v5173
        %v5175 = vrot.slane %v4824, 2
        %v5176 = vsel %vm2198, %v5173, %v5175
        %5177 = vrot.lane.b32.xlu0 %v5099, 120
        %v5178 = vpop.permute.xlu0 %5177
        %5179 = vrot.lane.b32.xlu0 %v5101, 120
        %v5180 = vpop.permute.xlu0 %5179
        %5181 = vrot.lane.b32.xlu0 %v5104, 120
        %v5182 = vpop.permute.xlu0 %5181
        %5183 = vrot.lane.b32.xlu0 %v5106, 120
        %v5184 = vpop.permute.xlu0 %5183
        %5185 = vrot.lane.b32.xlu0 %v5109, 120
        %v5186 = vpop.permute.xlu0 %5185
        %5187 = vrot.lane.b32.xlu0 %v5111, 120
        %v5188 = vpop.permute.xlu0 %5187
        %5189 = vrot.lane.b32.xlu0 %v5114, 120
        %v5190 = vpop.permute.xlu0 %5189
        %5191 = vrot.lane.b32.xlu0 %v5116, 120
        %v5192 = vpop.permute.xlu0 %5191
        %5193 = vrot.lane.b32.xlu0 %v5119, 120
        %v5194 = vpop.permute.xlu0 %5193
        %5195 = vrot.lane.b32.xlu0 %v5121, 120
        %v5196 = vpop.permute.xlu0 %5195
        %5197 = vrot.lane.b32.xlu0 %v5124, 120
        %v5198 = vpop.permute.xlu0 %5197
        %5199 = vrot.lane.b32.xlu0 %v5126, 120
        %v5200 = vpop.permute.xlu0 %5199
        %5201 = vrot.lane.b32.xlu0 %v5129, 120
        %v5202 = vpop.permute.xlu0 %5201
        %5203 = vrot.lane.b32.xlu0 %v5131, 120
        %v5204 = vpop.permute.xlu0 %5203
        %5205 = vrot.lane.b32.xlu0 %v5134, 120
        %v5206 = vpop.permute.xlu0 %5205
        %5207 = vrot.lane.b32.xlu0 %v5136, 120
        %v5208 = vpop.permute.xlu0 %5207
        %5209 = vrot.lane.b32.xlu0 %v5139, 120
        %v5210 = vpop.permute.xlu0 %5209
        %5211 = vrot.lane.b32.xlu0 %v5141, 120
        %v5212 = vpop.permute.xlu0 %5211
        %5213 = vrot.lane.b32.xlu0 %v5144, 120
        %v5214 = vpop.permute.xlu0 %5213
        %5215 = vrot.lane.b32.xlu0 %v5146, 120
        %v5216 = vpop.permute.xlu0 %5215
        %5217 = vrot.lane.b32.xlu0 %v5149, 120
        %v5218 = vpop.permute.xlu0 %5217
        %5219 = vrot.lane.b32.xlu0 %v5151, 120
        %v5220 = vpop.permute.xlu0 %5219
        %5221 = vrot.lane.b32.xlu0 %v5154, 120
        %v5222 = vpop.permute.xlu0 %5221
        %5223 = vrot.lane.b32.xlu0 %v5156, 120
        %v5224 = vpop.permute.xlu0 %5223
        %5225 = vrot.lane.b32.xlu0 %v5159, 120
        %v5226 = vpop.permute.xlu0 %5225
        %5227 = vrot.lane.b32.xlu0 %v5161, 120
        %v5228 = vpop.permute.xlu0 %5227
        %5229 = vrot.lane.b32.xlu0 %v5164, 120
        %v5230 = vpop.permute.xlu0 %5229
        %5231 = vrot.lane.b32.xlu0 %v5166, 120
        %v5232 = vpop.permute.xlu0 %5231
        %5233 = vrot.lane.b32.xlu0 %v5169, 120
        %v5234 = vpop.permute.xlu0 %5233
        %5235 = vrot.lane.b32.xlu0 %v5171, 120
        %v5236 = vpop.permute.xlu0 %5235
        %5237 = vrot.lane.b32.xlu0 %v5174, 120
        %v5238 = vpop.permute.xlu0 %5237
        %5239 = vrot.lane.b32.xlu0 %v5176, 120
        %v5240 = vpop.permute.xlu0 %5239
        %v5273 = vadd.f32 %v5065, %v5178
        %v5274 = vadd.f32 %v5066, %v5180
        %v5275 = vadd.f32 %v5067, %v5182
        %v5276 = vadd.f32 %v5068, %v5184
        %v5277 = vadd.f32 %v5069, %v5186
        %v5278 = vadd.f32 %v5070, %v5188
        %v5279 = vadd.f32 %v5071, %v5190
        %v5280 = vadd.f32 %v5072, %v5192
        %v5281 = vadd.f32 %v5073, %v5194
        %v5282 = vadd.f32 %v5074, %v5196
        %v5283 = vadd.f32 %v5075, %v5198
        %v5284 = vadd.f32 %v5076, %v5200
        %v5285 = vadd.f32 %v5077, %v5202
        %v5286 = vadd.f32 %v5078, %v5204
        %v5287 = vadd.f32 %v5079, %v5206
        %v5288 = vadd.f32 %v5080, %v5208
        %v5289 = vadd.f32 %v5081, %v5210
        %v5290 = vadd.f32 %v5082, %v5212
        %v5291 = vadd.f32 %v5083, %v5214
        %v5292 = vadd.f32 %v5084, %v5216
        %v5293 = vadd.f32 %v5085, %v5218
        %v5294 = vadd.f32 %v5086, %v5220
        %v5295 = vadd.f32 %v5087, %v5222
        %v5296 = vadd.f32 %v5088, %v5224
        %v5297 = vadd.f32 %v5089, %v5226
        %v5298 = vadd.f32 %v5090, %v5228
        %v5299 = vadd.f32 %v5091, %v5230
        %v5300 = vadd.f32 %v5092, %v5232
        %v5301 = vadd.f32 %v5093, %v5234
        %v5302 = vadd.f32 %v5094, %v5236
        %v5303 = vadd.f32 %v5095, %v5238
        %v5304 = vadd.f32 %v5096, %v5240
        %5307 = vrot.lane.b32.xlu0 %v4714, 116
        %v5308 = vpop.permute.xlu0 %5307
        %5309 = vrot.lane.b32.xlu0 %v4717, 116
        %v5310 = vpop.permute.xlu0 %5309
        %5311 = vrot.lane.b32.xlu0 %v4722, 116
        %v5312 = vpop.permute.xlu0 %5311
        %5313 = vrot.lane.b32.xlu0 %v4724, 116
        %v5314 = vpop.permute.xlu0 %5313
        %5315 = vrot.lane.b32.xlu0 %v4729, 116
        %v5316 = vpop.permute.xlu0 %5315
        %5317 = vrot.lane.b32.xlu0 %v4732, 116
        %v5318 = vpop.permute.xlu0 %5317
        %5319 = vrot.lane.b32.xlu0 %v4737, 116
        %v5320 = vpop.permute.xlu0 %5319
        %5321 = vrot.lane.b32.xlu0 %v4739, 116
        %v5322 = vpop.permute.xlu0 %5321
        %5323 = vrot.lane.b32.xlu0 %v4744, 116
        %v5324 = vpop.permute.xlu0 %5323
        %5325 = vrot.lane.b32.xlu0 %v4747, 116
        %v5326 = vpop.permute.xlu0 %5325
        %5327 = vrot.lane.b32.xlu0 %v4752, 116
        %v5328 = vpop.permute.xlu0 %5327
        %5329 = vrot.lane.b32.xlu0 %v4754, 116
        %v5330 = vpop.permute.xlu0 %5329
        %5331 = vrot.lane.b32.xlu0 %v4759, 116
        %v5332 = vpop.permute.xlu0 %5331
        %5333 = vrot.lane.b32.xlu0 %v4762, 116
        %v5334 = vpop.permute.xlu0 %5333
        %5335 = vrot.lane.b32.xlu0 %v4767, 116
        %v5336 = vpop.permute.xlu0 %5335
        %5337 = vrot.lane.b32.xlu0 %v4769, 116
        %v5338 = vpop.permute.xlu0 %5337
        %5339 = vrot.lane.b32.xlu0 %v4774, 116
        %v5340 = vpop.permute.xlu0 %5339
        %5341 = vrot.lane.b32.xlu0 %v4777, 116
        %v5342 = vpop.permute.xlu0 %5341
        %5343 = vrot.lane.b32.xlu0 %v4782, 116
        %v5344 = vpop.permute.xlu0 %5343
        %5345 = vrot.lane.b32.xlu0 %v4784, 116
        %v5346 = vpop.permute.xlu0 %5345
        %5347 = vrot.lane.b32.xlu0 %v4789, 116
        %v5348 = vpop.permute.xlu0 %5347
        %5349 = vrot.lane.b32.xlu0 %v4792, 116
        %v5350 = vpop.permute.xlu0 %5349
        %5351 = vrot.lane.b32.xlu0 %v4797, 116
        %v5352 = vpop.permute.xlu0 %5351
        %5353 = vrot.lane.b32.xlu0 %v4799, 116
        %v5354 = vpop.permute.xlu0 %5353
        %5355 = vrot.lane.b32.xlu0 %v4804, 116
        %v5356 = vpop.permute.xlu0 %5355
        %5357 = vrot.lane.b32.xlu0 %v4807, 116
        %v5358 = vpop.permute.xlu0 %5357
        %5359 = vrot.lane.b32.xlu0 %v4812, 116
        %v5360 = vpop.permute.xlu0 %5359
        %5361 = vrot.lane.b32.xlu0 %v4814, 116
        %v5362 = vpop.permute.xlu0 %5361
        %5363 = vrot.lane.b32.xlu0 %v4819, 116
        %v5364 = vpop.permute.xlu0 %5363
        %5365 = vrot.lane.b32.xlu0 %v4822, 116
        %v5366 = vpop.permute.xlu0 %5365
        %5367 = vrot.lane.b32.xlu0 %v4827, 116
        %v5368 = vpop.permute.xlu0 %5367
        %5369 = vrot.lane.b32.xlu0 %v4829, 116
        %v5370 = vpop.permute.xlu0 %5369
        %v5403 = vadd.f32 %v5273, %v5308
        %v5404 = vadd.f32 %v5274, %v5310
        %v5405 = vadd.f32 %v5275, %v5312
        %v5406 = vadd.f32 %v5276, %v5314
        %v5407 = vadd.f32 %v5277, %v5316
        %v5408 = vadd.f32 %v5278, %v5318
        %v5409 = vadd.f32 %v5279, %v5320
        %v5410 = vadd.f32 %v5280, %v5322
        %v5411 = vadd.f32 %v5281, %v5324
        %v5412 = vadd.f32 %v5282, %v5326
        %v5413 = vadd.f32 %v5283, %v5328
        %v5414 = vadd.f32 %v5284, %v5330
        %v5415 = vadd.f32 %v5285, %v5332
        %v5416 = vadd.f32 %v5286, %v5334
        %v5417 = vadd.f32 %v5287, %v5336
        %v5418 = vadd.f32 %v5288, %v5338
        %v5419 = vadd.f32 %v5289, %v5340
        %v5420 = vadd.f32 %v5290, %v5342
        %v5421 = vadd.f32 %v5291, %v5344
        %v5422 = vadd.f32 %v5292, %v5346
        %v5423 = vadd.f32 %v5293, %v5348
        %v5424 = vadd.f32 %v5294, %v5350
        %v5425 = vadd.f32 %v5295, %v5352
        %v5426 = vadd.f32 %v5296, %v5354
        %v5427 = vadd.f32 %v5297, %v5356
        %v5428 = vadd.f32 %v5298, %v5358
        %v5429 = vadd.f32 %v5299, %v5360
        %v5430 = vadd.f32 %v5300, %v5362
        %v5431 = vadd.f32 %v5301, %v5364
        %v5432 = vadd.f32 %v5302, %v5366
        %v5433 = vadd.f32 %v5303, %v5368
        %v5434 = vadd.f32 %v5304, %v5370
        %v5436 = vrot.slane %v4827, 1
        %v5437 = vrot.slane %v4829, 1
        %v5438 = vsel %vm1989, %v5436, %v5437
        %v5439 = vrot.slane %v4832, 1
        %v5440 = vsel %vm1989, %v5437, %v5439
        %5441 = vrot.lane.b32.xlu0 %v4896, 112
        %v5442 = vpop.permute.xlu0 %5441
        %5443 = vrot.lane.b32.xlu0 %v4898, 112
        %v5444 = vpop.permute.xlu0 %5443
        %5445 = vrot.lane.b32.xlu0 %v4901, 112
        %v5446 = vpop.permute.xlu0 %5445
        %5447 = vrot.lane.b32.xlu0 %v4903, 112
        %v5448 = vpop.permute.xlu0 %5447
        %5449 = vrot.lane.b32.xlu0 %v4906, 112
        %v5450 = vpop.permute.xlu0 %5449
        %5451 = vrot.lane.b32.xlu0 %v4908, 112
        %v5452 = vpop.permute.xlu0 %5451
        %5453 = vrot.lane.b32.xlu0 %v4911, 112
        %v5454 = vpop.permute.xlu0 %5453
        %5455 = vrot.lane.b32.xlu0 %v4913, 112
        %v5456 = vpop.permute.xlu0 %5455
        %5457 = vrot.lane.b32.xlu0 %v4916, 112
        %v5458 = vpop.permute.xlu0 %5457
        %5459 = vrot.lane.b32.xlu0 %v4918, 112
        %v5460 = vpop.permute.xlu0 %5459
        %5461 = vrot.lane.b32.xlu0 %v4921, 112
        %v5462 = vpop.permute.xlu0 %5461
        %5463 = vrot.lane.b32.xlu0 %v4923, 112
        %v5464 = vpop.permute.xlu0 %5463
        %5465 = vrot.lane.b32.xlu0 %v4926, 112
        %v5466 = vpop.permute.xlu0 %5465
        %5467 = vrot.lane.b32.xlu0 %v4928, 112
        %v5468 = vpop.permute.xlu0 %5467
        %5469 = vrot.lane.b32.xlu0 %v4931, 112
        %v5470 = vpop.permute.xlu0 %5469
        %5471 = vrot.lane.b32.xlu0 %v4933, 112
        %v5472 = vpop.permute.xlu0 %5471
        %5473 = vrot.lane.b32.xlu0 %v4936, 112
        %v5474 = vpop.permute.xlu0 %5473
        %5475 = vrot.lane.b32.xlu0 %v4938, 112
        %v5476 = vpop.permute.xlu0 %5475
        %5477 = vrot.lane.b32.xlu0 %v4941, 112
        %v5478 = vpop.permute.xlu0 %5477
        %5479 = vrot.lane.b32.xlu0 %v4943, 112
        %v5480 = vpop.permute.xlu0 %5479
        %5481 = vrot.lane.b32.xlu0 %v4946, 112
        %v5482 = vpop.permute.xlu0 %5481
        %5483 = vrot.lane.b32.xlu0 %v4948, 112
        %v5484 = vpop.permute.xlu0 %5483
        %5485 = vrot.lane.b32.xlu0 %v4951, 112
        %v5486 = vpop.permute.xlu0 %5485
        %5487 = vrot.lane.b32.xlu0 %v4953, 112
        %v5488 = vpop.permute.xlu0 %5487
        %5489 = vrot.lane.b32.xlu0 %v4956, 112
        %v5490 = vpop.permute.xlu0 %5489
        %5491 = vrot.lane.b32.xlu0 %v4958, 112
        %v5492 = vpop.permute.xlu0 %5491
        %5493 = vrot.lane.b32.xlu0 %v4961, 112
        %v5494 = vpop.permute.xlu0 %5493
        %5495 = vrot.lane.b32.xlu0 %v4963, 112
        %v5496 = vpop.permute.xlu0 %5495
        %5497 = vrot.lane.b32.xlu0 %v4966, 112
        %v5498 = vpop.permute.xlu0 %5497
        %5499 = vrot.lane.b32.xlu0 %v4968, 112
        %v5500 = vpop.permute.xlu0 %5499
        %5501 = vrot.lane.b32.xlu0 %v5438, 112
        %v5502 = vpop.permute.xlu0 %5501
        %5503 = vrot.lane.b32.xlu0 %v5440, 112
        %v5504 = vpop.permute.xlu0 %5503
        %v5537 = vadd.f32 %v5403, %v5442
        %v5538 = vadd.f32 %v5404, %v5444
        %v5539 = vadd.f32 %v5405, %v5446
        %v5540 = vadd.f32 %v5406, %v5448
        %v5541 = vadd.f32 %v5407, %v5450
        %v5542 = vadd.f32 %v5408, %v5452
        %v5543 = vadd.f32 %v5409, %v5454
        %v5544 = vadd.f32 %v5410, %v5456
        %v5545 = vadd.f32 %v5411, %v5458
        %v5546 = vadd.f32 %v5412, %v5460
        %v5547 = vadd.f32 %v5413, %v5462
        %v5548 = vadd.f32 %v5414, %v5464
        %v5549 = vadd.f32 %v5415, %v5466
        %v5550 = vadd.f32 %v5416, %v5468
        %v5551 = vadd.f32 %v5417, %v5470
        %v5552 = vadd.f32 %v5418, %v5472
        %v5553 = vadd.f32 %v5419, %v5474
        %v5554 = vadd.f32 %v5420, %v5476
        %v5555 = vadd.f32 %v5421, %v5478
        %v5556 = vadd.f32 %v5422, %v5480
        %v5557 = vadd.f32 %v5423, %v5482
        %v5558 = vadd.f32 %v5424, %v5484
        %v5559 = vadd.f32 %v5425, %v5486
        %v5560 = vadd.f32 %v5426, %v5488
        %v5561 = vadd.f32 %v5427, %v5490
        %v5562 = vadd.f32 %v5428, %v5492
        %v5563 = vadd.f32 %v5429, %v5494
        %v5564 = vadd.f32 %v5430, %v5496
        %v5565 = vadd.f32 %v5431, %v5498
        %v5566 = vadd.f32 %v5432, %v5500
        %v5567 = vadd.f32 %v5433, %v5502
        %v5568 = vadd.f32 %v5434, %v5504
        %v5569 = vrot.slane %v4827, 2
        %v5570 = vrot.slane %v4829, 2
        %v5571 = vsel %vm2198, %v5569, %v5570
        %v5572 = vrot.slane %v4832, 2
        %v5573 = vsel %vm2198, %v5570, %v5572
        %5574 = vrot.lane.b32.xlu0 %v5104, 108
        %v5575 = vpop.permute.xlu0 %5574
        %5576 = vrot.lane.b32.xlu0 %v5106, 108
        %v5577 = vpop.permute.xlu0 %5576
        %5578 = vrot.lane.b32.xlu0 %v5109, 108
        %v5579 = vpop.permute.xlu0 %5578
        %5580 = vrot.lane.b32.xlu0 %v5111, 108
        %v5581 = vpop.permute.xlu0 %5580
        %5582 = vrot.lane.b32.xlu0 %v5114, 108
        %v5583 = vpop.permute.xlu0 %5582
        %5584 = vrot.lane.b32.xlu0 %v5116, 108
        %v5585 = vpop.permute.xlu0 %5584
        %5586 = vrot.lane.b32.xlu0 %v5119, 108
        %v5587 = vpop.permute.xlu0 %5586
        %5588 = vrot.lane.b32.xlu0 %v5121, 108
        %v5589 = vpop.permute.xlu0 %5588
        %5590 = vrot.lane.b32.xlu0 %v5124, 108
        %v5591 = vpop.permute.xlu0 %5590
        %5592 = vrot.lane.b32.xlu0 %v5126, 108
        %v5593 = vpop.permute.xlu0 %5592
        %5594 = vrot.lane.b32.xlu0 %v5129, 108
        %v5595 = vpop.permute.xlu0 %5594
        %5596 = vrot.lane.b32.xlu0 %v5131, 108
        %v5597 = vpop.permute.xlu0 %5596
        %5598 = vrot.lane.b32.xlu0 %v5134, 108
        %v5599 = vpop.permute.xlu0 %5598
        %5600 = vrot.lane.b32.xlu0 %v5136, 108
        %v5601 = vpop.permute.xlu0 %5600
        %5602 = vrot.lane.b32.xlu0 %v5139, 108
        %v5603 = vpop.permute.xlu0 %5602
        %5604 = vrot.lane.b32.xlu0 %v5141, 108
        %v5605 = vpop.permute.xlu0 %5604
        %5606 = vrot.lane.b32.xlu0 %v5144, 108
        %v5607 = vpop.permute.xlu0 %5606
        %5608 = vrot.lane.b32.xlu0 %v5146, 108
        %v5609 = vpop.permute.xlu0 %5608
        %5610 = vrot.lane.b32.xlu0 %v5149, 108
        %v5611 = vpop.permute.xlu0 %5610
        %5612 = vrot.lane.b32.xlu0 %v5151, 108
        %v5613 = vpop.permute.xlu0 %5612
        %5614 = vrot.lane.b32.xlu0 %v5154, 108
        %v5615 = vpop.permute.xlu0 %5614
        %5616 = vrot.lane.b32.xlu0 %v5156, 108
        %v5617 = vpop.permute.xlu0 %5616
        %5618 = vrot.lane.b32.xlu0 %v5159, 108
        %v5619 = vpop.permute.xlu0 %5618
        %5620 = vrot.lane.b32.xlu0 %v5161, 108
        %v5621 = vpop.permute.xlu0 %5620
        %5622 = vrot.lane.b32.xlu0 %v5164, 108
        %v5623 = vpop.permute.xlu0 %5622
        %5624 = vrot.lane.b32.xlu0 %v5166, 108
        %v5625 = vpop.permute.xlu0 %5624
        %5626 = vrot.lane.b32.xlu0 %v5169, 108
        %v5627 = vpop.permute.xlu0 %5626
        %5628 = vrot.lane.b32.xlu0 %v5171, 108
        %v5629 = vpop.permute.xlu0 %5628
        %5630 = vrot.lane.b32.xlu0 %v5174, 108
        %v5631 = vpop.permute.xlu0 %5630
        %5632 = vrot.lane.b32.xlu0 %v5176, 108
        %v5633 = vpop.permute.xlu0 %5632
        %5634 = vrot.lane.b32.xlu0 %v5571, 108
        %v5635 = vpop.permute.xlu0 %5634
        %5636 = vrot.lane.b32.xlu0 %v5573, 108
        %v5637 = vpop.permute.xlu0 %5636
        %v5670 = vadd.f32 %v5537, %v5575
        %v5671 = vadd.f32 %v5538, %v5577
        %v5672 = vadd.f32 %v5539, %v5579
        %v5673 = vadd.f32 %v5540, %v5581
        %v5674 = vadd.f32 %v5541, %v5583
        %v5675 = vadd.f32 %v5542, %v5585
        %v5676 = vadd.f32 %v5543, %v5587
        %v5677 = vadd.f32 %v5544, %v5589
        %v5678 = vadd.f32 %v5545, %v5591
        %v5679 = vadd.f32 %v5546, %v5593
        %v5680 = vadd.f32 %v5547, %v5595
        %v5681 = vadd.f32 %v5548, %v5597
        %v5682 = vadd.f32 %v5549, %v5599
        %v5683 = vadd.f32 %v5550, %v5601
        %v5684 = vadd.f32 %v5551, %v5603
        %v5685 = vadd.f32 %v5552, %v5605
        %v5686 = vadd.f32 %v5553, %v5607
        %v5687 = vadd.f32 %v5554, %v5609
        %v5688 = vadd.f32 %v5555, %v5611
        %v5689 = vadd.f32 %v5556, %v5613
        %v5690 = vadd.f32 %v5557, %v5615
        %v5691 = vadd.f32 %v5558, %v5617
        %v5692 = vadd.f32 %v5559, %v5619
        %v5693 = vadd.f32 %v5560, %v5621
        %v5694 = vadd.f32 %v5561, %v5623
        %v5695 = vadd.f32 %v5562, %v5625
        %v5696 = vadd.f32 %v5563, %v5627
        %v5697 = vadd.f32 %v5564, %v5629
        %v5698 = vadd.f32 %v5565, %v5631
        %v5699 = vadd.f32 %v5566, %v5633
        %v5700 = vadd.f32 %v5567, %v5635
        %v5701 = vadd.f32 %v5568, %v5637
        %5704 = vrot.lane.b32.xlu0 %v4722, 104
        %v5705 = vpop.permute.xlu0 %5704
        %5706 = vrot.lane.b32.xlu0 %v4724, 104
        %v5707 = vpop.permute.xlu0 %5706
        %5708 = vrot.lane.b32.xlu0 %v4729, 104
        %v5709 = vpop.permute.xlu0 %5708
        %5710 = vrot.lane.b32.xlu0 %v4732, 104
        %v5711 = vpop.permute.xlu0 %5710
        %5712 = vrot.lane.b32.xlu0 %v4737, 104
        %v5713 = vpop.permute.xlu0 %5712
        %5714 = vrot.lane.b32.xlu0 %v4739, 104
        %v5715 = vpop.permute.xlu0 %5714
        %5716 = vrot.lane.b32.xlu0 %v4744, 104
        %v5717 = vpop.permute.xlu0 %5716
        %5718 = vrot.lane.b32.xlu0 %v4747, 104
        %v5719 = vpop.permute.xlu0 %5718
        %5720 = vrot.lane.b32.xlu0 %v4752, 104
        %v5721 = vpop.permute.xlu0 %5720
        %5722 = vrot.lane.b32.xlu0 %v4754, 104
        %v5723 = vpop.permute.xlu0 %5722
        %5724 = vrot.lane.b32.xlu0 %v4759, 104
        %v5725 = vpop.permute.xlu0 %5724
        %5726 = vrot.lane.b32.xlu0 %v4762, 104
        %v5727 = vpop.permute.xlu0 %5726
        %5728 = vrot.lane.b32.xlu0 %v4767, 104
        %v5729 = vpop.permute.xlu0 %5728
        %5730 = vrot.lane.b32.xlu0 %v4769, 104
        %v5731 = vpop.permute.xlu0 %5730
        %5732 = vrot.lane.b32.xlu0 %v4774, 104
        %v5733 = vpop.permute.xlu0 %5732
        %5734 = vrot.lane.b32.xlu0 %v4777, 104
        %v5735 = vpop.permute.xlu0 %5734
        %5736 = vrot.lane.b32.xlu0 %v4782, 104
        %v5737 = vpop.permute.xlu0 %5736
        %5738 = vrot.lane.b32.xlu0 %v4784, 104
        %v5739 = vpop.permute.xlu0 %5738
        %5740 = vrot.lane.b32.xlu0 %v4789, 104
        %v5741 = vpop.permute.xlu0 %5740
        %5742 = vrot.lane.b32.xlu0 %v4792, 104
        %v5743 = vpop.permute.xlu0 %5742
        %5744 = vrot.lane.b32.xlu0 %v4797, 104
        %v5745 = vpop.permute.xlu0 %5744
        %5746 = vrot.lane.b32.xlu0 %v4799, 104
        %v5747 = vpop.permute.xlu0 %5746
        %5748 = vrot.lane.b32.xlu0 %v4804, 104
        %v5749 = vpop.permute.xlu0 %5748
        %5750 = vrot.lane.b32.xlu0 %v4807, 104
        %v5751 = vpop.permute.xlu0 %5750
        %5752 = vrot.lane.b32.xlu0 %v4812, 104
        %v5753 = vpop.permute.xlu0 %5752
        %5754 = vrot.lane.b32.xlu0 %v4814, 104
        %v5755 = vpop.permute.xlu0 %5754
        %5756 = vrot.lane.b32.xlu0 %v4819, 104
        %v5757 = vpop.permute.xlu0 %5756
        %5758 = vrot.lane.b32.xlu0 %v4822, 104
        %v5759 = vpop.permute.xlu0 %5758
        %5760 = vrot.lane.b32.xlu0 %v4827, 104
        %v5761 = vpop.permute.xlu0 %5760
        %5762 = vrot.lane.b32.xlu0 %v4829, 104
        %v5763 = vpop.permute.xlu0 %5762
        %5764 = vrot.lane.b32.xlu0 %v4834, 104
        %v5765 = vpop.permute.xlu0 %5764
        %5766 = vrot.lane.b32.xlu0 %v4837, 104
        %v5767 = vpop.permute.xlu0 %5766
        %v5800 = vadd.f32 %v5670, %v5705
        %v5801 = vadd.f32 %v5671, %v5707
        %v5802 = vadd.f32 %v5672, %v5709
        %v5803 = vadd.f32 %v5673, %v5711
        %v5804 = vadd.f32 %v5674, %v5713
        %v5805 = vadd.f32 %v5675, %v5715
        %v5806 = vadd.f32 %v5676, %v5717
        %v5807 = vadd.f32 %v5677, %v5719
        %v5808 = vadd.f32 %v5678, %v5721
        %v5809 = vadd.f32 %v5679, %v5723
        %v5810 = vadd.f32 %v5680, %v5725
        %v5811 = vadd.f32 %v5681, %v5727
        %v5812 = vadd.f32 %v5682, %v5729
        %v5813 = vadd.f32 %v5683, %v5731
        %v5814 = vadd.f32 %v5684, %v5733
        %v5815 = vadd.f32 %v5685, %v5735
        %v5816 = vadd.f32 %v5686, %v5737
        %v5817 = vadd.f32 %v5687, %v5739
        %v5818 = vadd.f32 %v5688, %v5741
        %v5819 = vadd.f32 %v5689, %v5743
        %v5820 = vadd.f32 %v5690, %v5745
        %v5821 = vadd.f32 %v5691, %v5747
        %v5822 = vadd.f32 %v5692, %v5749
        %v5823 = vadd.f32 %v5693, %v5751
        %v5824 = vadd.f32 %v5694, %v5753
        %v5825 = vadd.f32 %v5695, %v5755
        %v5826 = vadd.f32 %v5696, %v5757
        %v5827 = vadd.f32 %v5697, %v5759
        %v5828 = vadd.f32 %v5698, %v5761
        %v5829 = vadd.f32 %v5699, %v5763
        %v5830 = vadd.f32 %v5700, %v5765
        %v5831 = vadd.f32 %v5701, %v5767
        %v5833 = vrot.slane %v4834, 1
        %v5834 = vrot.slane %v4837, 1
        %v5835 = vsel %vm1989, %v5833, %v5834
        %v5836 = vrot.slane %v4839, 1
        %v5837 = vsel %vm1989, %v5834, %v5836
        %5838 = vrot.lane.b32.xlu0 %v4901, 100
        %v5839 = vpop.permute.xlu0 %5838
        %5840 = vrot.lane.b32.xlu0 %v4903, 100
        %v5841 = vpop.permute.xlu0 %5840
        %5842 = vrot.lane.b32.xlu0 %v4906, 100
        %v5843 = vpop.permute.xlu0 %5842
        %5844 = vrot.lane.b32.xlu0 %v4908, 100
        %v5845 = vpop.permute.xlu0 %5844
        %5846 = vrot.lane.b32.xlu0 %v4911, 100
        %v5847 = vpop.permute.xlu0 %5846
        %5848 = vrot.lane.b32.xlu0 %v4913, 100
        %v5849 = vpop.permute.xlu0 %5848
        %5850 = vrot.lane.b32.xlu0 %v4916, 100
        %v5851 = vpop.permute.xlu0 %5850
        %5852 = vrot.lane.b32.xlu0 %v4918, 100
        %v5853 = vpop.permute.xlu0 %5852
        %5854 = vrot.lane.b32.xlu0 %v4921, 100
        %v5855 = vpop.permute.xlu0 %5854
        %5856 = vrot.lane.b32.xlu0 %v4923, 100
        %v5857 = vpop.permute.xlu0 %5856
        %5858 = vrot.lane.b32.xlu0 %v4926, 100
        %v5859 = vpop.permute.xlu0 %5858
        %5860 = vrot.lane.b32.xlu0 %v4928, 100
        %v5861 = vpop.permute.xlu0 %5860
        %5862 = vrot.lane.b32.xlu0 %v4931, 100
        %v5863 = vpop.permute.xlu0 %5862
        %5864 = vrot.lane.b32.xlu0 %v4933, 100
        %v5865 = vpop.permute.xlu0 %5864
        %5866 = vrot.lane.b32.xlu0 %v4936, 100
        %v5867 = vpop.permute.xlu0 %5866
        %5868 = vrot.lane.b32.xlu0 %v4938, 100
        %v5869 = vpop.permute.xlu0 %5868
        %5870 = vrot.lane.b32.xlu0 %v4941, 100
        %v5871 = vpop.permute.xlu0 %5870
        %5872 = vrot.lane.b32.xlu0 %v4943, 100
        %v5873 = vpop.permute.xlu0 %5872
        %5874 = vrot.lane.b32.xlu0 %v4946, 100
        %v5875 = vpop.permute.xlu0 %5874
        %5876 = vrot.lane.b32.xlu0 %v4948, 100
        %v5877 = vpop.permute.xlu0 %5876
        %5878 = vrot.lane.b32.xlu0 %v4951, 100
        %v5879 = vpop.permute.xlu0 %5878
        %5880 = vrot.lane.b32.xlu0 %v4953, 100
        %v5881 = vpop.permute.xlu0 %5880
        %5882 = vrot.lane.b32.xlu0 %v4956, 100
        %v5883 = vpop.permute.xlu0 %5882
        %5884 = vrot.lane.b32.xlu0 %v4958, 100
        %v5885 = vpop.permute.xlu0 %5884
        %5886 = vrot.lane.b32.xlu0 %v4961, 100
        %v5887 = vpop.permute.xlu0 %5886
        %5888 = vrot.lane.b32.xlu0 %v4963, 100
        %v5889 = vpop.permute.xlu0 %5888
        %5890 = vrot.lane.b32.xlu0 %v4966, 100
        %v5891 = vpop.permute.xlu0 %5890
        %5892 = vrot.lane.b32.xlu0 %v4968, 100
        %v5893 = vpop.permute.xlu0 %5892
        %5894 = vrot.lane.b32.xlu0 %v5438, 100
        %v5895 = vpop.permute.xlu0 %5894
        %5896 = vrot.lane.b32.xlu0 %v5440, 100
        %v5897 = vpop.permute.xlu0 %5896
        %5898 = vrot.lane.b32.xlu0 %v5835, 100
        %v5899 = vpop.permute.xlu0 %5898
        %5900 = vrot.lane.b32.xlu0 %v5837, 100
        %v5901 = vpop.permute.xlu0 %5900
        %v5934 = vadd.f32 %v5800, %v5839
        %v5935 = vadd.f32 %v5801, %v5841
        %v5936 = vadd.f32 %v5802, %v5843
        %v5937 = vadd.f32 %v5803, %v5845
        %v5938 = vadd.f32 %v5804, %v5847
        %v5939 = vadd.f32 %v5805, %v5849
        %v5940 = vadd.f32 %v5806, %v5851
        %v5941 = vadd.f32 %v5807, %v5853
        %v5942 = vadd.f32 %v5808, %v5855
        %v5943 = vadd.f32 %v5809, %v5857
        %v5944 = vadd.f32 %v5810, %v5859
        %v5945 = vadd.f32 %v5811, %v5861
        %v5946 = vadd.f32 %v5812, %v5863
        %v5947 = vadd.f32 %v5813, %v5865
        %v5948 = vadd.f32 %v5814, %v5867
        %v5949 = vadd.f32 %v5815, %v5869
        %v5950 = vadd.f32 %v5816, %v5871
        %v5951 = vadd.f32 %v5817, %v5873
        %v5952 = vadd.f32 %v5818, %v5875
        %v5953 = vadd.f32 %v5819, %v5877
        %v5954 = vadd.f32 %v5820, %v5879
        %v5955 = vadd.f32 %v5821, %v5881
        %v5956 = vadd.f32 %v5822, %v5883
        %v5957 = vadd.f32 %v5823, %v5885
        %v5958 = vadd.f32 %v5824, %v5887
        %v5959 = vadd.f32 %v5825, %v5889
        %v5960 = vadd.f32 %v5826, %v5891
        %v5961 = vadd.f32 %v5827, %v5893
        %v5962 = vadd.f32 %v5828, %v5895
        %v5963 = vadd.f32 %v5829, %v5897
        %v5964 = vadd.f32 %v5830, %v5899
        %v5965 = vadd.f32 %v5831, %v5901
        %v5966 = vrot.slane %v4834, 2
        %v5967 = vrot.slane %v4837, 2
        %v5968 = vsel %vm2198, %v5966, %v5967
        %v5969 = vrot.slane %v4839, 2
        %v5970 = vsel %vm2198, %v5967, %v5969
        %5971 = vrot.lane.b32.xlu0 %v5109, 96
        %v5972 = vpop.permute.xlu0 %5971
        %5973 = vrot.lane.b32.xlu0 %v5111, 96
        %v5974 = vpop.permute.xlu0 %5973
        %5975 = vrot.lane.b32.xlu0 %v5114, 96
        %v5976 = vpop.permute.xlu0 %5975
        %5977 = vrot.lane.b32.xlu0 %v5116, 96
        %v5978 = vpop.permute.xlu0 %5977
        %5979 = vrot.lane.b32.xlu0 %v5119, 96
        %v5980 = vpop.permute.xlu0 %5979
        %5981 = vrot.lane.b32.xlu0 %v5121, 96
        %v5982 = vpop.permute.xlu0 %5981
        %5983 = vrot.lane.b32.xlu0 %v5124, 96
        %v5984 = vpop.permute.xlu0 %5983
        %5985 = vrot.lane.b32.xlu0 %v5126, 96
        %v5986 = vpop.permute.xlu0 %5985
        %5987 = vrot.lane.b32.xlu0 %v5129, 96
        %v5988 = vpop.permute.xlu0 %5987
        %5989 = vrot.lane.b32.xlu0 %v5131, 96
        %v5990 = vpop.permute.xlu0 %5989
        %5991 = vrot.lane.b32.xlu0 %v5134, 96
        %v5992 = vpop.permute.xlu0 %5991
        %5993 = vrot.lane.b32.xlu0 %v5136, 96
        %v5994 = vpop.permute.xlu0 %5993
        %5995 = vrot.lane.b32.xlu0 %v5139, 96
        %v5996 = vpop.permute.xlu0 %5995
        %5997 = vrot.lane.b32.xlu0 %v5141, 96
        %v5998 = vpop.permute.xlu0 %5997
        %5999 = vrot.lane.b32.xlu0 %v5144, 96
        %v6000 = vpop.permute.xlu0 %5999
        %6001 = vrot.lane.b32.xlu0 %v5146, 96
        %v6002 = vpop.permute.xlu0 %6001
        %6003 = vrot.lane.b32.xlu0 %v5149, 96
        %v6004 = vpop.permute.xlu0 %6003
        %6005 = vrot.lane.b32.xlu0 %v5151, 96
        %v6006 = vpop.permute.xlu0 %6005
        %6007 = vrot.lane.b32.xlu0 %v5154, 96
        %v6008 = vpop.permute.xlu0 %6007
        %6009 = vrot.lane.b32.xlu0 %v5156, 96
        %v6010 = vpop.permute.xlu0 %6009
        %6011 = vrot.lane.b32.xlu0 %v5159, 96
        %v6012 = vpop.permute.xlu0 %6011
        %6013 = vrot.lane.b32.xlu0 %v5161, 96
        %v6014 = vpop.permute.xlu0 %6013
        %6015 = vrot.lane.b32.xlu0 %v5164, 96
        %v6016 = vpop.permute.xlu0 %6015
        %6017 = vrot.lane.b32.xlu0 %v5166, 96
        %v6018 = vpop.permute.xlu0 %6017
        %6019 = vrot.lane.b32.xlu0 %v5169, 96
        %v6020 = vpop.permute.xlu0 %6019
        %6021 = vrot.lane.b32.xlu0 %v5171, 96
        %v6022 = vpop.permute.xlu0 %6021
        %6023 = vrot.lane.b32.xlu0 %v5174, 96
        %v6024 = vpop.permute.xlu0 %6023
        %6025 = vrot.lane.b32.xlu0 %v5176, 96
        %v6026 = vpop.permute.xlu0 %6025
        %6027 = vrot.lane.b32.xlu0 %v5571, 96
        %v6028 = vpop.permute.xlu0 %6027
        %6029 = vrot.lane.b32.xlu0 %v5573, 96
        %v6030 = vpop.permute.xlu0 %6029
        %6031 = vrot.lane.b32.xlu0 %v5968, 96
        %v6032 = vpop.permute.xlu0 %6031
        %6033 = vrot.lane.b32.xlu0 %v5970, 96
        %v6034 = vpop.permute.xlu0 %6033
        %v6067 = vadd.f32 %v5934, %v5972
        %v6068 = vadd.f32 %v5935, %v5974
        %v6069 = vadd.f32 %v5936, %v5976
        %v6070 = vadd.f32 %v5937, %v5978
        %v6071 = vadd.f32 %v5938, %v5980
        %v6072 = vadd.f32 %v5939, %v5982
        %v6073 = vadd.f32 %v5940, %v5984
        %v6074 = vadd.f32 %v5941, %v5986
        %v6075 = vadd.f32 %v5942, %v5988
        %v6076 = vadd.f32 %v5943, %v5990
        %v6077 = vadd.f32 %v5944, %v5992
        %v6078 = vadd.f32 %v5945, %v5994
        %v6079 = vadd.f32 %v5946, %v5996
        %v6080 = vadd.f32 %v5947, %v5998
        %v6081 = vadd.f32 %v5948, %v6000
        %v6082 = vadd.f32 %v5949, %v6002
        %v6083 = vadd.f32 %v5950, %v6004
        %v6084 = vadd.f32 %v5951, %v6006
        %v6085 = vadd.f32 %v5952, %v6008
        %v6086 = vadd.f32 %v5953, %v6010
        %v6087 = vadd.f32 %v5954, %v6012
        %v6088 = vadd.f32 %v5955, %v6014
        %v6089 = vadd.f32 %v5956, %v6016
        %v6090 = vadd.f32 %v5957, %v6018
        %v6091 = vadd.f32 %v5958, %v6020
        %v6092 = vadd.f32 %v5959, %v6022
        %v6093 = vadd.f32 %v5960, %v6024
        %v6094 = vadd.f32 %v5961, %v6026
        %v6095 = vadd.f32 %v5962, %v6028
        %v6096 = vadd.f32 %v5963, %v6030
        %v6097 = vadd.f32 %v5964, %v6032
        %v6098 = vadd.f32 %v5965, %v6034
        %v6099 = vpack.c.bf16 %v6067, %v6067
        %v6100 = vpack.c.bf16 %v6068, %v6068
        %v6101 = vpack.c.bf16 %v6069, %v6069
        %v6102 = vpack.c.bf16 %v6070, %v6070
        %v6103 = vpack.c.bf16 %v6071, %v6071
        %v6104 = vpack.c.bf16 %v6072, %v6072
        %v6105 = vpack.c.bf16 %v6073, %v6073
        %v6106 = vpack.c.bf16 %v6074, %v6074
        %v6107 = vpack.c.bf16 %v6075, %v6075
        %v6108 = vpack.c.bf16 %v6076, %v6076
        %v6109 = vpack.c.bf16 %v6077, %v6077
        %v6110 = vpack.c.bf16 %v6078, %v6078
        %v6111 = vpack.c.bf16 %v6079, %v6079
        %v6112 = vpack.c.bf16 %v6080, %v6080
        %v6113 = vpack.c.bf16 %v6081, %v6081
        %v6114 = vpack.c.bf16 %v6082, %v6082
        %v6115 = vpack.c.bf16 %v6083, %v6083
        %v6116 = vpack.c.bf16 %v6084, %v6084
        %v6117 = vpack.c.bf16 %v6085, %v6085
        %v6118 = vpack.c.bf16 %v6086, %v6086
        %v6119 = vpack.c.bf16 %v6087, %v6087
        %v6120 = vpack.c.bf16 %v6088, %v6088
        %v6121 = vpack.c.bf16 %v6089, %v6089
        %v6122 = vpack.c.bf16 %v6090, %v6090
        %v6123 = vpack.c.bf16 %v6091, %v6091
        %v6124 = vpack.c.bf16 %v6092, %v6092
        %v6125 = vpack.c.bf16 %v6093, %v6093
        %v6126 = vpack.c.bf16 %v6094, %v6094
        %v6127 = vpack.c.bf16 %v6095, %v6095
        %v6128 = vpack.c.bf16 %v6096, %v6096
        %v6129 = vpack.c.bf16 %v6097, %v6097
        %v6130 = vpack.c.bf16 %v6098, %v6098
        %6163 = vrot.lane.b32.xlu0 %v6099, 8
        %v6164 = vpop.permute.xlu0 %6163
        %6165 = vrot.lane.b32.xlu0 %v6100, 8
        %v6166 = vpop.permute.xlu0 %6165
        %6167 = vrot.lane.b32.xlu0 %v6101, 8
        %v6168 = vpop.permute.xlu0 %6167
        %6169 = vrot.lane.b32.xlu0 %v6102, 8
        %v6170 = vpop.permute.xlu0 %6169
        %6171 = vrot.lane.b32.xlu0 %v6103, 8
        %v6172 = vpop.permute.xlu0 %6171
        %6173 = vrot.lane.b32.xlu0 %v6104, 8
        %v6174 = vpop.permute.xlu0 %6173
        %6175 = vrot.lane.b32.xlu0 %v6105, 8
        %v6176 = vpop.permute.xlu0 %6175
        %6177 = vrot.lane.b32.xlu0 %v6106, 8
        %v6178 = vpop.permute.xlu0 %6177
        %6179 = vrot.lane.b32.xlu0 %v6107, 8
        %v6180 = vpop.permute.xlu0 %6179
        %6181 = vrot.lane.b32.xlu0 %v6108, 8
        %v6182 = vpop.permute.xlu0 %6181
        %6183 = vrot.lane.b32.xlu0 %v6109, 8
        %v6184 = vpop.permute.xlu0 %6183
        %6185 = vrot.lane.b32.xlu0 %v6110, 8
        %v6186 = vpop.permute.xlu0 %6185
        %6187 = vrot.lane.b32.xlu0 %v6111, 8
        %v6188 = vpop.permute.xlu0 %6187
        %6189 = vrot.lane.b32.xlu0 %v6112, 8
        %v6190 = vpop.permute.xlu0 %6189
        %6191 = vrot.lane.b32.xlu0 %v6113, 8
        %v6192 = vpop.permute.xlu0 %6191
        %6193 = vrot.lane.b32.xlu0 %v6114, 8
        %v6194 = vpop.permute.xlu0 %6193
        %6195 = vrot.lane.b32.xlu0 %v6115, 8
        %v6196 = vpop.permute.xlu0 %6195
        %6197 = vrot.lane.b32.xlu0 %v6116, 8
        %v6198 = vpop.permute.xlu0 %6197
        %6199 = vrot.lane.b32.xlu0 %v6117, 8
        %v6200 = vpop.permute.xlu0 %6199
        %6201 = vrot.lane.b32.xlu0 %v6118, 8
        %v6202 = vpop.permute.xlu0 %6201
        %6203 = vrot.lane.b32.xlu0 %v6119, 8
        %v6204 = vpop.permute.xlu0 %6203
        %6205 = vrot.lane.b32.xlu0 %v6120, 8
        %v6206 = vpop.permute.xlu0 %6205
        %6207 = vrot.lane.b32.xlu0 %v6121, 8
        %v6208 = vpop.permute.xlu0 %6207
        %6209 = vrot.lane.b32.xlu0 %v6122, 8
        %v6210 = vpop.permute.xlu0 %6209
        %6211 = vrot.lane.b32.xlu0 %v6123, 8
        %v6212 = vpop.permute.xlu0 %6211
        %6213 = vrot.lane.b32.xlu0 %v6124, 8
        %v6214 = vpop.permute.xlu0 %6213
        %6215 = vrot.lane.b32.xlu0 %v6125, 8
        %v6216 = vpop.permute.xlu0 %6215
        %6217 = vrot.lane.b32.xlu0 %v6126, 8
        %v6218 = vpop.permute.xlu0 %6217
        %6219 = vrot.lane.b32.xlu0 %v6127, 8
        %v6220 = vpop.permute.xlu0 %6219
        %6221 = vrot.lane.b32.xlu0 %v6128, 8
        %v6222 = vpop.permute.xlu0 %6221
        %6223 = vrot.lane.b32.xlu0 %v6129, 8
        %v6224 = vpop.permute.xlu0 %6223
        %6225 = vrot.lane.b32.xlu0 %v6130, 8
        %v6226 = vpop.permute.xlu0 %6225
        %vm6259 = vcmask 93248
        %6260 = vst.msk [vmem:[%s271] sm:$0xf] %vm6259, %v6164
        %6261 = vst.msk [vmem:[%s271 + $0x4] sm:$0xf] %vm6259, %v6166
        %6262 = vst.msk [vmem:[%s271 + $0x8] sm:$0xf] %vm6259, %v6168
        %6263 = vst.msk [vmem:[%s271 + $0xc] sm:$0xf] %vm6259, %v6170
        %6264 = vst.msk [vmem:[%s271 + $0x10] sm:$0xf] %vm6259, %v6172
        %6265 = vst.msk [vmem:[%s271 + $0x14] sm:$0xf] %vm6259, %v6174
        %6266 = vst.msk [vmem:[%s271 + $0x18] sm:$0xf] %vm6259, %v6176
        %6267 = vst.msk [vmem:[%s271 + $0x1c] sm:$0xf] %vm6259, %v6178
        %6268 = vst.msk [vmem:[%s271 + $0x20] sm:$0xf] %vm6259, %v6180
        %6269 = vst.msk [vmem:[%s271 + $0x24] sm:$0xf] %vm6259, %v6182
        %6270 = vst.msk [vmem:[%s271 + $0x28] sm:$0xf] %vm6259, %v6184
        %6271 = vst.msk [vmem:[%s271 + $0x2c] sm:$0xf] %vm6259, %v6186
        %6272 = vst.msk [vmem:[%s271 + $0x30] sm:$0xf] %vm6259, %v6188
        %6273 = vst.msk [vmem:[%s271 + $0x34] sm:$0xf] %vm6259, %v6190
        %6274 = vst.msk [vmem:[%s271 + $0x38] sm:$0xf] %vm6259, %v6192
        %6275 = vst.msk [vmem:[%s271 + $0x3c] sm:$0xf] %vm6259, %v6194
        %6276 = vst.msk [vmem:[%s271 + $0x40] sm:$0xf] %vm6259, %v6196
        %6277 = vst.msk [vmem:[%s271 + $0x44] sm:$0xf] %vm6259, %v6198
        %6278 = vst.msk [vmem:[%s271 + $0x48] sm:$0xf] %vm6259, %v6200
        %6279 = vst.msk [vmem:[%s271 + $0x4c] sm:$0xf] %vm6259, %v6202
        %6280 = vst.msk [vmem:[%s271 + $0x50] sm:$0xf] %vm6259, %v6204
        %6281 = vst.msk [vmem:[%s271 + $0x54] sm:$0xf] %vm6259, %v6206
        %6282 = vst.msk [vmem:[%s271 + $0x58] sm:$0xf] %vm6259, %v6208
        %6283 = vst.msk [vmem:[%s271 + $0x5c] sm:$0xf] %vm6259, %v6210
        %6284 = vst.msk [vmem:[%s271 + $0x60] sm:$0xf] %vm6259, %v6212
        %6285 = vst.msk [vmem:[%s271 + $0x64] sm:$0xf] %vm6259, %v6214
        %6286 = vst.msk [vmem:[%s271 + $0x68] sm:$0xf] %vm6259, %v6216
        %6287 = vst.msk [vmem:[%s271 + $0x6c] sm:$0xf] %vm6259, %v6218
        %6288 = vst.msk [vmem:[%s271 + $0x70] sm:$0xf] %vm6259, %v6220
        %6289 = vst.msk [vmem:[%s271 + $0x74] sm:$0xf] %vm6259, %v6222
        %6290 = vst.msk [vmem:[%s271 + $0x78] sm:$0xf] %vm6259, %v6224
        %6291 = vst.msk [vmem:[%s271 + $0x7c] sm:$0xf] %vm6259, %v6226
        %s6292 = sand.u32 %s181, 1
        %s6293 = scalar_lea.sflag [#allocation4], %s6292
        %s6294 = sand.u32 %s181, 1
        %s6295 = smul.addr %s6294, 128
        %s6296 = scalar_lea.vmem [#allocation3], %s6295
        // Predicated region
        $region49: #{tpu_custom_call.1} parent=47 // pred_check
          %p6297 = pneg %p191
        $region50: #{tpu_custom_call.1} parent=47 // pred_check_branch
          %6299 = sbr.rel (%p6297) target = $region52
        $region51: #{tpu_custom_call.1} parent=47 // pred_region
          %6301 = vsyncadd %s6293, 0
          %s6302 = smul.addr %s21, 32
          %s6303 = smul.addr %s6302, 4
          %s6304 = scalar_lea.hbm %s7, %s6303
          %s6305 = sshll.u32 %s6296, 4
          %s6306 = int_to_ptr.vmem [resolvable:$true] %s6305
          %s6307 = sshll.u32 %s6304, 4
          %s6308 = int_to_ptr.hbm [resolvable:$true] %s6307
          %6313 = dma.vmem_to_hbm [thread:$0]  %s6306, 2048, %s6308, %s6293, 64, 64, 4
        $region52: #{tpu_custom_call.1} parent=47 // pred_fallthru
          _
      $region48: #{tpu_custom_call.1} parent=5 // pred_fallthru
        _
      %p6314 = scmp.le.s32.totalorder 2, %s16
      // Predicated region
      $region53: #{tpu_custom_call.1} parent=5 // pred_check
        %p6315 = pneg %p6314
      $region54: #{tpu_custom_call.1} parent=5 // pred_check_branch
        %6317 = sbr.rel (%p6315) target = $region56
      $region55: #{tpu_custom_call.1} parent=5 // pred_region
        %s6318 = ssub.s32 %s16, 2
        // Predicated region
        $region57: #{tpu_custom_call.1} parent=55 // pred_check
          %p6319 = pneg %p197
        $region58: #{tpu_custom_call.1} parent=55 // pred_check_branch
          %6321 = sbr.rel (%p6319) target = $region60
        $region59: #{tpu_custom_call.1} parent=55 // pred_region
          %s6322 = sand.u32 %s182, 1
          %s6323 = scalar_lea.sflag [#allocation4], %s6322
          %s6324 = sand.u32 %s182, 1
          %s6325 = smul.addr %s6324, 128
          %s6326 = scalar_lea.vmem [#allocation3], %s6325
          %6328 = dma.done %s6323, 2048
        $region60: #{tpu_custom_call.1} parent=55 // pred_fallthru
          _
      $region56: #{tpu_custom_call.1} parent=5 // pred_fallthru
        _
    $region6: #{tpu_custom_call.1} parent=1 // loop_footer
      %s20 = sadd.s32 1, %s16
    $region7: #{tpu_custom_call.1} parent=1 // loop_footer_branch
      %15 = sbr.rel target = $region3
    $region8: #{tpu_custom_call.1} parent=1 // loop_exit
      _
    %6329 = vsyncpa [#allocation4], 1
    %s6330 = scalar_lea.sflag [#allocation4], 1
    %6331 = vsyncpa %s6330, 1

</llo_original>
